<compile_context>
chip_gen: v7x
topology: tpu7x:2x2x1
jax: 0.10.0
libtpu: 0.0.40
codegen_flags: <defaults>
</compile_context>

<pallas_src>
import math
import jax
import jax.numpy as jnp
from jax import lax
from jax.experimental import pallas as pl
from jax.experimental.pallas import tpu as pltpu

# ----------------------------- model config ---------------------------------
vocab_size = 40
maxlen     = 16
n_segments = 2
d_model    = 32
d_ff       = 64
d_k = d_v  = 8
n_heads    = 4
n_layers   = 2
LN_EPS     = 1e-5

V_PAD = ((vocab_size + 127) // 128) * 128      # vocab lanes padded to 128
C_PAD = 128                                    # classifier lanes padded to 128
_SQRT_2_OVER_PI = math.sqrt(2.0 / math.pi)


# ------------------------------ small helpers -------------------------------
def _gelu_exact(x):
    # Matches HuggingFace / the PyTorch reference: x * 0.5 * (1 + erf(x/sqrt(2)))
    return x * 0.5 * (1.0 + lax.erf(x / math.sqrt(2.0)))


def _gelu_tanh(x):
    # tanh-approximate GELU: runs on the EUP (tanh) instead of a long VPU erf
    # polynomial chain; |error| vs exact GELU is < ~3e-4 and negligible at the
    # activation scales of this model (validated against the erf reference).
    return 0.5 * x * (1.0 + jnp.tanh(_SQRT_2_OVER_PI * (x + 0.044715 * x * x * x)))


def _layernorm(x, gamma, beta):
    mu = jnp.mean(x, axis=-1, keepdims=True)
    var = jnp.mean((x - mu) ** 2, axis=-1, keepdims=True)
    return (x - mu) * lax.rsqrt(var + LN_EPS) * gamma + beta


def _ceil_to(n, m):
    return ((n + m - 1) // m) * m


# --------------------------- fused Pallas kernel -----------------------------
def _bert_fused_kernel(
        emb_ref, amask_ref, selc_ref, selm_ref,
        eg_ref, eb_ref,
        wqkv_ref, bqkv_ref, wo_ref, bo_ref, lng_ref, lnb_ref,
        w1_ref, b1_ref, w2_ref, b2_ref,
        fcw_ref, fcb_ref, clw_ref, clb_ref,
        liw_ref, lib_ref, nmg_ref, nmb_ref, dcw_ref, dcb_ref,
        lm_ref, clsf_ref):
    # One grid step == one sequence of the batch ("parallel" -> both TCs on v7x).
    x = _layernorm(emb_ref[0], eg_ref[...], eb_ref[...])            # (S, D)
    amask = amask_ref[0]                                             # (S, S) additive, hoisted
    HD = n_heads * d_k

    for l in range(n_layers):                                        # static unroll
        # ---- fused QKV projection: one (S,D) @ (D, 3*H*dk) matmul -----------
        # (1/sqrt(d_k) is pre-folded into the Q columns/bias at init)
        qkv = jnp.dot(x, wqkv_ref[l],
                      preferred_element_type=jnp.float32) + bqkv_ref[l]   # (S, 96)

        # ---- per-head attention (intrinsically K = d_k = 8 contractions) ----
        ctx_parts = []
        for h in range(n_heads):
            qh = qkv[:, h * d_k:(h + 1) * d_k]                       # (S, dk)
            kh = qkv[:, HD + h * d_k:HD + (h + 1) * d_k]             # (S, dk)
            vh = qkv[:, 2 * HD + h * d_v:2 * HD + (h + 1) * d_v]     # (S, dv)
            s = jnp.einsum("qd,kd->qk", qh, kh,
                           preferred_element_type=jnp.float32) + amask
            s = s - jnp.max(s, axis=-1, keepdims=True)
            e = jnp.exp(s)
            p = e * pl.reciprocal(jnp.sum(e, axis=-1, keepdims=True), approx=True)
            ctx_parts.append(jnp.dot(p, vh, preferred_element_type=jnp.float32))
        ctx = jnp.concatenate(ctx_parts, axis=-1)                    # (S, H*dv) head-merged

        # ---- fused output projection + head-sum: single K = H*dv matmul -----
        attn_out = jnp.dot(ctx, wo_ref[l],
                           preferred_element_type=jnp.float32) + bo_ref[l]
        y = _layernorm(attn_out + x, lng_ref[l], lnb_ref[l])         # residual + LN

        # ---- position-wise FFN (no residual in this BERT variant) -----------
        hid = _gelu_tanh(jnp.dot(y, w1_ref[l],
                                 preferred_element_type=jnp.float32) + b1_ref[l])
        x = jnp.dot(hid, w2_ref[l],
                    preferred_element_type=jnp.float32) + b2_ref[l]

    # ---- pooler / classifier head (rows padded to 8, lanes to 128) ----------
    cls = jnp.dot(selc_ref[0], x, preferred_element_type=jnp.float32)    # (R, D)
    pooled = jnp.tanh(jnp.dot(cls, fcw_ref[...],
                              preferred_element_type=jnp.float32) + fcb_ref[...])
    clsf_ref[0] = jnp.dot(pooled, clw_ref[...],
                          preferred_element_type=jnp.float32) + clb_ref[...]

    # ---- masked LM head (gather via one-hot selector matmul) ----------------
    hm = jnp.dot(selm_ref[0], x, preferred_element_type=jnp.float32)     # (R, D)
    hm = _gelu_tanh(jnp.dot(hm, liw_ref[...],
                            preferred_element_type=jnp.float32) + lib_ref[...])
    hm = _layernorm(hm, nmg_ref[...], nmb_ref[...])
    lm_ref[0] = jnp.dot(hm, dcw_ref[...],
                        preferred_element_type=jnp.float32) + dcb_ref[...]


# ------------------------------ parameters ----------------------------------
def init_params(key):
    keys = jax.random.split(key, 64)
    it = iter(keys)

    def nrm(shape, scale=0.02):
        return (scale * jax.random.normal(next(it), shape)).astype(jnp.float32)

    params = {
        "tok_embed": nrm((vocab_size, d_model)),
        "pos_embed": nrm((maxlen, d_model)),
        "seg_embed": nrm((n_segments, d_model)),
        "emb_ln_g": jnp.ones((d_model,), jnp.float32),
        "emb_ln_b": jnp.zeros((d_model,), jnp.float32),
        "layers": [],
        "fc_w": nrm((d_model, d_model)),
        "fc_b": jnp.zeros((d_model,), jnp.float32),
        "cls_w": nrm((d_model, 2)),
        "cls_b": jnp.zeros((2,), jnp.float32),
        "lin_w": nrm((d_model, d_model)),
        "lin_b": jnp.zeros((d_model,), jnp.float32),
        "norm_g": jnp.ones((d_model,), jnp.float32),
        "norm_b": jnp.zeros((d_model,), jnp.float32),
        "dec_bias": jnp.zeros((vocab_size,), jnp.float32),
    }
    for _ in range(n_layers):
        params["layers"].append({
            "wq": nrm((d_model, n_heads * d_k)), "bq": jnp.zeros((n_heads * d_k,), jnp.float32),
            "wk": nrm((d_model, n_heads * d_k)), "bk": jnp.zeros((n_heads * d_k,), jnp.float32),
            "wv": nrm((d_model, n_heads * d_v)), "bv": jnp.zeros((n_heads * d_v,), jnp.float32),
            "wo": nrm((n_heads * d_v, d_model)), "bo": jnp.zeros((d_model,), jnp.float32),
            "ln_g": jnp.ones((d_model,), jnp.float32), "ln_b": jnp.zeros((d_model,), jnp.float32),
            "w1": nrm((d_model, d_ff)), "b1": jnp.zeros((d_ff,), jnp.float32),
            "w2": nrm((d_ff, d_model)), "b2": jnp.zeros((d_model,), jnp.float32),
        })
    return params


def prepare_kernel_params(params):
    """One-time weight re-layout (NOT per forward call): fuse QKV, fold the
    1/sqrt(d_k) score scale into Q, stack layers on a leading axis, lane-pad
    the classifier/vocab head matrices to 128."""
    Ls = params["layers"]
    scale = 1.0 / math.sqrt(d_k)

    wqkv = jnp.stack([jnp.concatenate([lp["wq"] * scale, lp["wk"], lp["wv"]], axis=1)
                      for lp in Ls], axis=0)                              # (L, D, 3*H*dk)
    bqkv = jnp.stack([jnp.concatenate([lp["bq"] * scale, lp["bk"], lp["bv"]]).reshape(1, -1)
                      for lp in Ls], axis=0)                              # (L, 1, 3*H*dk)
    wo  = jnp.stack([lp["wo"] for lp in Ls], axis=0)                      # (L, H*dv, D)
    bo  = jnp.stack([lp["bo"].reshape(1, -1) for lp in Ls], axis=0)
    lng = jnp.stack([lp["ln_g"].reshape(1, -1) for lp in Ls], axis=0)
    lnb = jnp.stack([lp["ln_b"].reshape(1, -1) for lp in Ls], axis=0)
    w1  = jnp.stack([lp["w1"] for lp in Ls], axis=0)
    b1  = jnp.stack([lp["b1"].reshape(1, -1) for lp in Ls], axis=0)
    w2  = jnp.stack([lp["w2"] for lp in Ls], axis=0)
    b2  = jnp.stack([lp["b2"].reshape(1, -1) for lp in Ls], axis=0)

    clw = jnp.zeros((d_model, C_PAD), jnp.float32).at[:, :2].set(params["cls_w"])
    clb = jnp.zeros((1, C_PAD), jnp.float32).at[0, :2].set(params["cls_b"])
    dcw = jnp.zeros((d_model, V_PAD), jnp.float32).at[:, :vocab_size].set(params["tok_embed"].T)
    dcb = jnp.zeros((1, V_PAD), jnp.float32).at[0, :vocab_size].set(params["dec_bias"])

    return {
        "tok_embed": params["tok_embed"],
        "pos_embed": params["pos_embed"],
        "seg_embed": params["seg_embed"],
        "emb_ln_g": params["emb_ln_g"].reshape(1, -1),
        "emb_ln_b": params["emb_ln_b"].reshape(1, -1),
        "wqkv": wqkv, "bqkv": bqkv, "wo": wo, "bo": bo,
        "lng": lng, "lnb": lnb, "w1": w1, "b1": b1, "w2": w2, "b2": b2,
        "fc_w": params["fc_w"], "fc_b": params["fc_b"].reshape(1, -1),
        "clw": clw, "clb": clb,
        "lin_w": params["lin_w"], "lin_b": params["lin_b"].reshape(1, -1),
        "norm_g": params["norm_g"].reshape(1, -1),
        "norm_b": params["norm_b"].reshape(1, -1),
        "dcw": dcw, "dcb": dcb,
    }


# ------------------------------ full forward ---------------------------------
def bert_forward(kp, input_ids, segment_ids, masked_pos):
    B, S = input_ids.shape
    P = masked_pos.shape[1]
    R = _ceil_to(max(P, 1), 8)                       # padded head-row count

    # ---- embedding gathers (tiny JAX glue) -----------------------------------
    pos = jnp.arange(S, dtype=jnp.int32)
    emb = (kp["tok_embed"][input_ids]
           + kp["pos_embed"][pos][None, :, :]
           + kp["seg_embed"][segment_ids])                               # (B, S, D)

    # ---- per-sequence additive key-pad mask ----------------------------------
    key_is_pad = (input_ids == 0)[:, None, :]                            # (B, 1, S)
    amask = jnp.where(key_is_pad, -1e9, 0.0).astype(jnp.float32)
    amask = jnp.broadcast_to(amask, (B, S, S))

    # ---- row selectors (gathers become dense matmuls inside the kernel) ------
    sel_cls = jnp.zeros((B, R, S), jnp.float32).at[:, 0, 0].set(1.0)     # CLS row
    sel_lm = jax.nn.one_hot(masked_pos.astype(jnp.int32), S, dtype=jnp.float32)
    sel_lm = jnp.pad(sel_lm, ((0, 0), (0, R - P), (0, 0)))               # (B, R, S)

    args = (emb, amask, sel_cls, sel_lm,
            kp["emb_ln_g"], kp["emb_ln_b"],
            kp["wqkv"], kp["bqkv"], kp["wo"], kp["bo"], kp["lng"], kp["lnb"],
            kp["w1"], kp["b1"], kp["w2"], kp["b2"],
            kp["fc_w"], kp["fc_b"], kp["clw"], kp["clb"],
            kp["lin_w"], kp["lin_b"], kp["norm_g"], kp["norm_b"],
            kp["dcw"], kp["dcb"])

    def batch_spec(a):
        shape = tuple(a.shape)
        return pl.BlockSpec((1,) + shape[1:], lambda b: (b,) + (0,) * (len(shape) - 1))

    def full_spec(a):
        shape = tuple(a.shape)
        nd = len(shape)
        return pl.BlockSpec(shape, lambda b: (0,) * nd)

    in_specs = [batch_spec(emb), batch_spec(amask), batch_spec(sel_cls), batch_spec(sel_lm)]
    in_specs += [full_spec(a) for a in args[4:]]

    out_lm, out_clsf = pl.pallas_call(
        _bert_fused_kernel,
        grid=(B,),
        in_specs=in_specs,
        out_specs=(pl.BlockSpec((1, R, V_PAD), lambda b: (b, 0, 0)),
                   pl.BlockSpec((1, R, C_PAD), lambda b: (b, 0, 0))),
        out_shape=(jax.ShapeDtypeStruct((B, R, V_PAD), jnp.float32),
                   jax.ShapeDtypeStruct((B, R, C_PAD), jnp.float32)),
        compiler_params=pltpu.CompilerParams(dimension_semantics=("parallel",)),
    )(*args)

    logits_lm = out_lm[:, :P, :vocab_size]
    logits_clsf = out_clsf[:, 0, :2]
    return logits_lm, logits_clsf


# ---------------------------- pure-JAX reference ------------------------------
def bert_reference(params, input_ids, segment_ids, masked_pos):
    B, S = input_ids.shape
    pos = jnp.arange(S, dtype=jnp.int32)
    emb = (params["tok_embed"][input_ids]
           + params["pos_embed"][pos][None, :, :]
           + params["seg_embed"][segment_ids])
    x = _layernorm(emb, params["emb_ln_g"], params["emb_ln_b"])
    pad = (input_ids == 0)[:, None, :]
    mask = jnp.broadcast_to(pad, (B, S, S))

    for lp in params["layers"]:
        q = x @ lp["wq"] + lp["bq"]
        k = x @ lp["wk"] + lp["bk"]
        v = x @ lp["wv"] + lp["bv"]
        q = q.reshape(B, S, n_heads, d_k).transpose(0, 2, 1, 3)
        k = k.reshape(B, S, n_heads, d_k).transpose(0, 2, 1, 3)
        v = v.reshape(B, S, n_heads, d_v).transpose(0, 2, 1, 3)
        scores = jnp.einsum("bhqd,bhkd->bhqk", q, k) / math.sqrt(d_k)
        scores = jnp.where(mask[:, None, :, :], -1e9, scores)
        attn = jax.nn.softmax(scores, axis=-1)
        ctx = jnp.einsum("bhqk,bhkd->bhqd", attn, v)
        ctx = ctx.transpose(0, 2, 1, 3).reshape(B, S, n_heads * d_v)
        out = ctx @ lp["wo"] + lp["bo"]
        x = _layernorm(out + x, lp["ln_g"], lp["ln_b"])
        x = _gelu_exact(x @ lp["w1"] + lp["b1"]) @ lp["w2"] + lp["b2"]

    h_pooled = jnp.tanh(x[:, 0] @ params["fc_w"] + params["fc_b"])
    logits_clsf = h_pooled @ params["cls_w"] + params["cls_b"]

    h_masked = jnp.take_along_axis(x, masked_pos[:, :, None].astype(jnp.int32), axis=1)
    h_masked = _layernorm(_gelu_exact(h_masked @ params["lin_w"] + params["lin_b"]),
                          params["norm_g"], params["norm_b"])
    logits_lm = h_masked @ params["tok_embed"].T + params["dec_bias"]
    return logits_lm, logits_clsf


# ---------------------------------- main --------------------------------------
if __name__ == "__main__":
    key = jax.random.PRNGKey(0)
    pkey, ikey = jax.random.split(key)
    params = init_params(pkey)
    kparams = prepare_kernel_params(params)        # one-time weight re-layout

    B, S, P = 2, 8, 3
    # token ids in [1, vocab); last two positions of each sequence are padding (0)
    input_ids = jax.random.randint(ikey, (B, S), 1, vocab_size, dtype=jnp.int32)
    input_ids = input_ids.at[:, -2:].set(0)
    segment_ids = jnp.array([[0, 0, 0, 0, 1, 1, 0, 0],
                             [0, 0, 0, 1, 1, 1, 0, 0]], dtype=jnp.int32)
    masked_pos = jnp.array([[1, 3, 5], [2, 4, 5]], dtype=jnp.int32)

    fwd = jax.jit(bert_forward)
    logits_lm, logits_clsf = fwd(kparams, input_ids, segment_ids, masked_pos)
    jax.block_until_ready((logits_lm, logits_clsf))

    ref_lm, ref_clsf = bert_reference(params, input_ids, segment_ids, masked_pos)
    assert logits_lm.shape == (B, P, vocab_size)
    assert logits_clsf.shape == (B, 2)
    assert jnp.allclose(logits_lm, ref_lm, atol=1e-3, rtol=1e-3)
    assert jnp.allclose(logits_clsf, ref_clsf, atol=1e-3, rtol=1e-3)

    print("KERNEL_OK")
</pallas_src>

<mosaic_0001>
module attributes {stable_mosaic.version = 11 : i64} {
  func.func @_bert_fused_kernel(%arg0: i32, %arg1: memref<1x8x32xf32, #tpu.memory_space<vmem>>, %arg2: memref<1x8x8xf32, #tpu.memory_space<vmem>>, %arg3: memref<1x8x8xf32, #tpu.memory_space<vmem>>, %arg4: memref<1x8x8xf32, #tpu.memory_space<vmem>>, %arg5: memref<1x32xf32, #tpu.memory_space<vmem>>, %arg6: memref<1x32xf32, #tpu.memory_space<vmem>>, %arg7: memref<2x32x96xf32, #tpu.memory_space<vmem>>, %arg8: memref<2x1x96xf32, #tpu.memory_space<vmem>>, %arg9: memref<2x32x32xf32, #tpu.memory_space<vmem>>, %arg10: memref<2x1x32xf32, #tpu.memory_space<vmem>>, %arg11: memref<2x1x32xf32, #tpu.memory_space<vmem>>, %arg12: memref<2x1x32xf32, #tpu.memory_space<vmem>>, %arg13: memref<2x32x64xf32, #tpu.memory_space<vmem>>, %arg14: memref<2x1x64xf32, #tpu.memory_space<vmem>>, %arg15: memref<2x64x32xf32, #tpu.memory_space<vmem>>, %arg16: memref<2x1x32xf32, #tpu.memory_space<vmem>>, %arg17: memref<32x32xf32, #tpu.memory_space<vmem>>, %arg18: memref<1x32xf32, #tpu.memory_space<vmem>>, %arg19: memref<32x128xf32, #tpu.memory_space<vmem>>, %arg20: memref<1x128xf32, #tpu.memory_space<vmem>>, %arg21: memref<32x32xf32, #tpu.memory_space<vmem>>, %arg22: memref<1x32xf32, #tpu.memory_space<vmem>>, %arg23: memref<1x32xf32, #tpu.memory_space<vmem>>, %arg24: memref<1x32xf32, #tpu.memory_space<vmem>>, %arg25: memref<32x128xf32, #tpu.memory_space<vmem>>, %arg26: memref<1x128xf32, #tpu.memory_space<vmem>>, %arg27: memref<1x8x128xf32, #tpu.memory_space<vmem>>, %arg28: memref<1x8x128xf32, #tpu.memory_space<vmem>>) attributes {dimension_semantics = [#tpu.dimension_semantics<parallel>], iteration_bounds = array<i64: 2>, scalar_prefetch = 0 : i64, scratch_operands = 0 : i64, tpu.core_type = #tpu.core_type<tc>, window_params = [{transform_indices = @transform_0, window_bounds = array<i64: 1, 8, 32>}, {transform_indices = @transform_1, window_bounds = array<i64: 1, 8, 8>}, {transform_indices = @transform_2, window_bounds = array<i64: 1, 8, 8>}, {transform_indices = @transform_3, window_bounds = array<i64: 1, 8, 8>}, {pipeline_mode = #tpu.pipeline_mode<synchronous>, transform_indices = @transform_4, window_bounds = array<i64: 1, 32>}, {pipeline_mode = #tpu.pipeline_mode<synchronous>, transform_indices = @transform_5, window_bounds = array<i64: 1, 32>}, {pipeline_mode = #tpu.pipeline_mode<synchronous>, transform_indices = @transform_6, window_bounds = array<i64: 2, 32, 96>}, {pipeline_mode = #tpu.pipeline_mode<synchronous>, transform_indices = @transform_7, window_bounds = array<i64: 2, 1, 96>}, {pipeline_mode = #tpu.pipeline_mode<synchronous>, transform_indices = @transform_8, window_bounds = array<i64: 2, 32, 32>}, {pipeline_mode = #tpu.pipeline_mode<synchronous>, transform_indices = @transform_9, window_bounds = array<i64: 2, 1, 32>}, {pipeline_mode = #tpu.pipeline_mode<synchronous>, transform_indices = @transform_10, window_bounds = array<i64: 2, 1, 32>}, {pipeline_mode = #tpu.pipeline_mode<synchronous>, transform_indices = @transform_11, window_bounds = array<i64: 2, 1, 32>}, {pipeline_mode = #tpu.pipeline_mode<synchronous>, transform_indices = @transform_12, window_bounds = array<i64: 2, 32, 64>}, {pipeline_mode = #tpu.pipeline_mode<synchronous>, transform_indices = @transform_13, window_bounds = array<i64: 2, 1, 64>}, {pipeline_mode = #tpu.pipeline_mode<synchronous>, transform_indices = @transform_14, window_bounds = array<i64: 2, 64, 32>}, {pipeline_mode = #tpu.pipeline_mode<synchronous>, transform_indices = @transform_15, window_bounds = array<i64: 2, 1, 32>}, {pipeline_mode = #tpu.pipeline_mode<synchronous>, transform_indices = @transform_16, window_bounds = array<i64: 32, 32>}, {pipeline_mode = #tpu.pipeline_mode<synchronous>, transform_indices = @transform_17, window_bounds = array<i64: 1, 32>}, {pipeline_mode = #tpu.pipeline_mode<synchronous>, transform_indices = @transform_18, window_bounds = array<i64: 32, 128>}, {pipeline_mode = #tpu.pipeline_mode<synchronous>, transform_indices = @transform_19, window_bounds = array<i64: 1, 128>}, {pipeline_mode = #tpu.pipeline_mode<synchronous>, transform_indices = @transform_20, window_bounds = array<i64: 32, 32>}, {pipeline_mode = #tpu.pipeline_mode<synchronous>, transform_indices = @transform_21, window_bounds = array<i64: 1, 32>}, {pipeline_mode = #tpu.pipeline_mode<synchronous>, transform_indices = @transform_22, window_bounds = array<i64: 1, 32>}, {pipeline_mode = #tpu.pipeline_mode<synchronous>, transform_indices = @transform_23, window_bounds = array<i64: 1, 32>}, {pipeline_mode = #tpu.pipeline_mode<synchronous>, transform_indices = @transform_24, window_bounds = array<i64: 32, 128>}, {pipeline_mode = #tpu.pipeline_mode<synchronous>, transform_indices = @transform_25, window_bounds = array<i64: 1, 128>}, {transform_indices = @transform_26, window_bounds = array<i64: 1, 8, 128>}, {transform_indices = @transform_27, window_bounds = array<i64: 1, 8, 128>}]} {
    %c0 = arith.constant 0 : index
    %c0_0 = arith.constant 0 : index
    %c0_1 = arith.constant 0 : index
    %0 = vector.load %arg1[%c0, %c0_0, %c0_1] : memref<1x8x32xf32, #tpu.memory_space<vmem>>, vector<1x8x32xf32>
    %1 = vector.shape_cast %0 : vector<1x8x32xf32> to vector<8x32xf32>
    %c0_2 = arith.constant 0 : index
    %c0_3 = arith.constant 0 : index
    %2 = vector.load %arg5[%c0_2, %c0_3] : memref<1x32xf32, #tpu.memory_space<vmem>>, vector<1x32xf32>
    %c0_4 = arith.constant 0 : index
    %c0_5 = arith.constant 0 : index
    %3 = vector.load %arg6[%c0_4, %c0_5] : memref<1x32xf32, #tpu.memory_space<vmem>>, vector<1x32xf32>
    %cst = arith.constant dense<0.000000e+00> : vector<8xf32>
    %4 = vector.multi_reduction <add>, %1, %cst [1] : vector<8x32xf32> to vector<8xf32>
    %5 = vector.shape_cast %4 : vector<8xf32> to vector<8x1xf32>
    %cst_6 = arith.constant 3.200000e+01 : f32
    %6 = vector.broadcast %cst_6 : f32 to vector<8x1xf32>
    %7 = arith.divf %5, %6 : vector<8x1xf32>
    %8 = vector.broadcast %7 : vector<8x1xf32> to vector<8x32xf32>
    %9 = arith.subf %1, %8 : vector<8x32xf32>
    %10 = arith.mulf %9, %9 : vector<8x32xf32>
    %cst_7 = arith.constant dense<0.000000e+00> : vector<8xf32>
    %11 = vector.multi_reduction <add>, %10, %cst_7 [1] : vector<8x32xf32> to vector<8xf32>
    %12 = vector.shape_cast %11 : vector<8xf32> to vector<8x1xf32>
    %cst_8 = arith.constant 3.200000e+01 : f32
    %13 = vector.broadcast %cst_8 : f32 to vector<8x1xf32>
    %14 = arith.divf %12, %13 : vector<8x1xf32>
    %15 = vector.broadcast %7 : vector<8x1xf32> to vector<8x32xf32>
    %16 = arith.subf %1, %15 : vector<8x32xf32>
    %cst_9 = arith.constant 9.99999974E-6 : f32
    %17 = vector.broadcast %cst_9 : f32 to vector<8x1xf32>
    %18 = arith.addf %14, %17 : vector<8x1xf32>
    %19 = math.rsqrt %18 : vector<8x1xf32>
    %20 = vector.broadcast %19 : vector<8x1xf32> to vector<8x32xf32>
    %21 = arith.mulf %16, %20 : vector<8x32xf32>
    %22 = vector.broadcast %2 : vector<1x32xf32> to vector<8x32xf32>
    %23 = arith.mulf %21, %22 : vector<8x32xf32>
    %24 = vector.broadcast %3 : vector<1x32xf32> to vector<8x32xf32>
    %25 = arith.addf %23, %24 : vector<8x32xf32>
    %c0_10 = arith.constant 0 : index
    %c0_11 = arith.constant 0 : index
    %c0_12 = arith.constant 0 : index
    %26 = vector.load %arg2[%c0_10, %c0_11, %c0_12] : memref<1x8x8xf32, #tpu.memory_space<vmem>>, vector<1x8x8xf32>
    %27 = vector.shape_cast %26 : vector<1x8x8xf32> to vector<8x8xf32>
    %c0_13 = arith.constant 0 : index
    %c0_14 = arith.constant 0 : index
    %c0_15 = arith.constant 0 : index
    %28 = vector.load %arg7[%c0_13, %c0_14, %c0_15] : memref<2x32x96xf32, #tpu.memory_space<vmem>>, vector<1x32x96xf32>
    %29 = vector.shape_cast %28 : vector<1x32x96xf32> to vector<32x96xf32>
    %cst_16 = arith.constant dense<0.000000e+00> : vector<8x96xf32>
    %30 = tpu.matmul %25, %29, %cst_16 {dimension_numbers = #tpu.dot_dimension_numbers<[1], [0], [0], [1], [0, 0, 1, 1], [], []>} : vector<8x32xf32>, vector<32x96xf32>, vector<8x96xf32> -> vector<8x96xf32>
    %c0_17 = arith.constant 0 : index
    %c0_18 = arith.constant 0 : index
    %c0_19 = arith.constant 0 : index
    %31 = vector.load %arg8[%c0_17, %c0_18, %c0_19] : memref<2x1x96xf32, #tpu.memory_space<vmem>>, vector<1x1x96xf32>
    %32 = vector.shape_cast %31 : vector<1x1x96xf32> to vector<1x96xf32>
    %33 = vector.broadcast %32 : vector<1x96xf32> to vector<8x96xf32>
    %34 = arith.addf %30, %33 : vector<8x96xf32>
    %35 = vector.extract_strided_slice %34 {offsets = [0, 0], sizes = [8, 8], strides = [1, 1]} : vector<8x96xf32> to vector<8x8xf32>
    %36 = vector.extract_strided_slice %34 {offsets = [0, 32], sizes = [8, 8], strides = [1, 1]} : vector<8x96xf32> to vector<8x8xf32>
    %37 = vector.extract_strided_slice %34 {offsets = [0, 64], sizes = [8, 8], strides = [1, 1]} : vector<8x96xf32> to vector<8x8xf32>
    "tpu.trace_start"() <{level = 10 : i32, message = "qd,kd->qk"}> : () -> ()
    %cst_20 = arith.constant dense<0.000000e+00> : vector<8x8xf32>
    %38 = tpu.matmul %35, %36, %cst_20 {dimension_numbers = #tpu.dot_dimension_numbers<[1], [1], [0], [0], [0, 0, 1, 0], [], []>} : vector<8x8xf32>, vector<8x8xf32>, vector<8x8xf32> -> vector<8x8xf32>
    "tpu.trace_stop"() : () -> ()
    %39 = arith.addf %38, %27 : vector<8x8xf32>
    %cst_21 = arith.constant dense<0xFF800000> : vector<8xf32>
    %40 = vector.multi_reduction <maximumf>, %39, %cst_21 [1] : vector<8x8xf32> to vector<8xf32>
    %41 = vector.shape_cast %40 : vector<8xf32> to vector<8x1xf32>
    %42 = vector.broadcast %41 : vector<8x1xf32> to vector<8x8xf32>
    %43 = arith.subf %39, %42 : vector<8x8xf32>
    %44 = math.exp %43 : vector<8x8xf32>
    %cst_22 = arith.constant dense<0.000000e+00> : vector<8xf32>
    %45 = vector.multi_reduction <add>, %44, %cst_22 [1] : vector<8x8xf32> to vector<8xf32>
    %46 = vector.shape_cast %45 : vector<8xf32> to vector<8x1xf32>
    %47 = tpu.reciprocal %46 {approx = true} : vector<8x1xf32> -> vector<8x1xf32>
    %48 = vector.broadcast %47 : vector<8x1xf32> to vector<8x8xf32>
    %49 = arith.mulf %44, %48 : vector<8x8xf32>
    %cst_23 = arith.constant dense<0.000000e+00> : vector<8x8xf32>
    %50 = tpu.matmul %49, %37, %cst_23 {dimension_numbers = #tpu.dot_dimension_numbers<[1], [0], [0], [1], [0, 0, 1, 1], [], []>} : vector<8x8xf32>, vector<8x8xf32>, vector<8x8xf32> -> vector<8x8xf32>
    %51 = vector.extract_strided_slice %34 {offsets = [0, 8], sizes = [8, 8], strides = [1, 1]} : vector<8x96xf32> to vector<8x8xf32>
    %52 = vector.extract_strided_slice %34 {offsets = [0, 40], sizes = [8, 8], strides = [1, 1]} : vector<8x96xf32> to vector<8x8xf32>
    %53 = vector.extract_strided_slice %34 {offsets = [0, 72], sizes = [8, 8], strides = [1, 1]} : vector<8x96xf32> to vector<8x8xf32>
    "tpu.trace_start"() <{level = 10 : i32, message = "qd,kd->qk"}> : () -> ()
    %cst_24 = arith.constant dense<0.000000e+00> : vector<8x8xf32>
    %54 = tpu.matmul %51, %52, %cst_24 {dimension_numbers = #tpu.dot_dimension_numbers<[1], [1], [0], [0], [0, 0, 1, 0], [], []>} : vector<8x8xf32>, vector<8x8xf32>, vector<8x8xf32> -> vector<8x8xf32>
    "tpu.trace_stop"() : () -> ()
    %55 = arith.addf %54, %27 : vector<8x8xf32>
    %cst_25 = arith.constant dense<0xFF800000> : vector<8xf32>
    %56 = vector.multi_reduction <maximumf>, %55, %cst_25 [1] : vector<8x8xf32> to vector<8xf32>
    %57 = vector.shape_cast %56 : vector<8xf32> to vector<8x1xf32>
    %58 = vector.broadcast %57 : vector<8x1xf32> to vector<8x8xf32>
    %59 = arith.subf %55, %58 : vector<8x8xf32>
    %60 = math.exp %59 : vector<8x8xf32>
    %cst_26 = arith.constant dense<0.000000e+00> : vector<8xf32>
    %61 = vector.multi_reduction <add>, %60, %cst_26 [1] : vector<8x8xf32> to vector<8xf32>
    %62 = vector.shape_cast %61 : vector<8xf32> to vector<8x1xf32>
    %63 = tpu.reciprocal %62 {approx = true} : vector<8x1xf32> -> vector<8x1xf32>
    %64 = vector.broadcast %63 : vector<8x1xf32> to vector<8x8xf32>
    %65 = arith.mulf %60, %64 : vector<8x8xf32>
    %cst_27 = arith.constant dense<0.000000e+00> : vector<8x8xf32>
    %66 = tpu.matmul %65, %53, %cst_27 {dimension_numbers = #tpu.dot_dimension_numbers<[1], [0], [0], [1], [0, 0, 1, 1], [], []>} : vector<8x8xf32>, vector<8x8xf32>, vector<8x8xf32> -> vector<8x8xf32>
    %67 = vector.extract_strided_slice %34 {offsets = [0, 16], sizes = [8, 8], strides = [1, 1]} : vector<8x96xf32> to vector<8x8xf32>
    %68 = vector.extract_strided_slice %34 {offsets = [0, 48], sizes = [8, 8], strides = [1, 1]} : vector<8x96xf32> to vector<8x8xf32>
    %69 = vector.extract_strided_slice %34 {offsets = [0, 80], sizes = [8, 8], strides = [1, 1]} : vector<8x96xf32> to vector<8x8xf32>
    "tpu.trace_start"() <{level = 10 : i32, message = "qd,kd->qk"}> : () -> ()
    %cst_28 = arith.constant dense<0.000000e+00> : vector<8x8xf32>
    %70 = tpu.matmul %67, %68, %cst_28 {dimension_numbers = #tpu.dot_dimension_numbers<[1], [1], [0], [0], [0, 0, 1, 0], [], []>} : vector<8x8xf32>, vector<8x8xf32>, vector<8x8xf32> -> vector<8x8xf32>
    "tpu.trace_stop"() : () -> ()
    %71 = arith.addf %70, %27 : vector<8x8xf32>
    %cst_29 = arith.constant dense<0xFF800000> : vector<8xf32>
    %72 = vector.multi_reduction <maximumf>, %71, %cst_29 [1] : vector<8x8xf32> to vector<8xf32>
    %73 = vector.shape_cast %72 : vector<8xf32> to vector<8x1xf32>
    %74 = vector.broadcast %73 : vector<8x1xf32> to vector<8x8xf32>
    %75 = arith.subf %71, %74 : vector<8x8xf32>
    %76 = math.exp %75 : vector<8x8xf32>
    %cst_30 = arith.constant dense<0.000000e+00> : vector<8xf32>
    %77 = vector.multi_reduction <add>, %76, %cst_30 [1] : vector<8x8xf32> to vector<8xf32>
    %78 = vector.shape_cast %77 : vector<8xf32> to vector<8x1xf32>
    %79 = tpu.reciprocal %78 {approx = true} : vector<8x1xf32> -> vector<8x1xf32>
    %80 = vector.broadcast %79 : vector<8x1xf32> to vector<8x8xf32>
    %81 = arith.mulf %76, %80 : vector<8x8xf32>
    %cst_31 = arith.constant dense<0.000000e+00> : vector<8x8xf32>
    %82 = tpu.matmul %81, %69, %cst_31 {dimension_numbers = #tpu.dot_dimension_numbers<[1], [0], [0], [1], [0, 0, 1, 1], [], []>} : vector<8x8xf32>, vector<8x8xf32>, vector<8x8xf32> -> vector<8x8xf32>
    %83 = vector.extract_strided_slice %34 {offsets = [0, 24], sizes = [8, 8], strides = [1, 1]} : vector<8x96xf32> to vector<8x8xf32>
    %84 = vector.extract_strided_slice %34 {offsets = [0, 56], sizes = [8, 8], strides = [1, 1]} : vector<8x96xf32> to vector<8x8xf32>
    %85 = vector.extract_strided_slice %34 {offsets = [0, 88], sizes = [8, 8], strides = [1, 1]} : vector<8x96xf32> to vector<8x8xf32>
    "tpu.trace_start"() <{level = 10 : i32, message = "qd,kd->qk"}> : () -> ()
    %cst_32 = arith.constant dense<0.000000e+00> : vector<8x8xf32>
    %86 = tpu.matmul %83, %84, %cst_32 {dimension_numbers = #tpu.dot_dimension_numbers<[1], [1], [0], [0], [0, 0, 1, 0], [], []>} : vector<8x8xf32>, vector<8x8xf32>, vector<8x8xf32> -> vector<8x8xf32>
    "tpu.trace_stop"() : () -> ()
    %87 = arith.addf %86, %27 : vector<8x8xf32>
    %cst_33 = arith.constant dense<0xFF800000> : vector<8xf32>
    %88 = vector.multi_reduction <maximumf>, %87, %cst_33 [1] : vector<8x8xf32> to vector<8xf32>
    %89 = vector.shape_cast %88 : vector<8xf32> to vector<8x1xf32>
    %90 = vector.broadcast %89 : vector<8x1xf32> to vector<8x8xf32>
    %91 = arith.subf %87, %90 : vector<8x8xf32>
    %92 = math.exp %91 : vector<8x8xf32>
    %cst_34 = arith.constant dense<0.000000e+00> : vector<8xf32>
    %93 = vector.multi_reduction <add>, %92, %cst_34 [1] : vector<8x8xf32> to vector<8xf32>
    %94 = vector.shape_cast %93 : vector<8xf32> to vector<8x1xf32>
    %95 = tpu.reciprocal %94 {approx = true} : vector<8x1xf32> -> vector<8x1xf32>
    %96 = vector.broadcast %95 : vector<8x1xf32> to vector<8x8xf32>
    %97 = arith.mulf %92, %96 : vector<8x8xf32>
    %cst_35 = arith.constant dense<0.000000e+00> : vector<8x8xf32>
    %98 = tpu.matmul %97, %85, %cst_35 {dimension_numbers = #tpu.dot_dimension_numbers<[1], [0], [0], [1], [0, 0, 1, 1], [], []>} : vector<8x8xf32>, vector<8x8xf32>, vector<8x8xf32> -> vector<8x8xf32>
    %99 = tpu.concatenate %50, %66, %82, %98 in 1 : vector<8x8xf32>, vector<8x8xf32>, vector<8x8xf32>, vector<8x8xf32> -> vector<8x32xf32>
    %c0_36 = arith.constant 0 : index
    %c0_37 = arith.constant 0 : index
    %c0_38 = arith.constant 0 : index
    %100 = vector.load %arg9[%c0_36, %c0_37, %c0_38] : memref<2x32x32xf32, #tpu.memory_space<vmem>>, vector<1x32x32xf32>
    %101 = vector.shape_cast %100 : vector<1x32x32xf32> to vector<32x32xf32>
    %cst_39 = arith.constant dense<0.000000e+00> : vector<8x32xf32>
    %102 = tpu.matmul %99, %101, %cst_39 {dimension_numbers = #tpu.dot_dimension_numbers<[1], [0], [0], [1], [0, 0, 1, 1], [], []>} : vector<8x32xf32>, vector<32x32xf32>, vector<8x32xf32> -> vector<8x32xf32>
    %c0_40 = arith.constant 0 : index
    %c0_41 = arith.constant 0 : index
    %c0_42 = arith.constant 0 : index
    %103 = vector.load %arg10[%c0_40, %c0_41, %c0_42] : memref<2x1x32xf32, #tpu.memory_space<vmem>>, vector<1x1x32xf32>
    %104 = vector.shape_cast %103 : vector<1x1x32xf32> to vector<1x32xf32>
    %105 = vector.broadcast %104 : vector<1x32xf32> to vector<8x32xf32>
    %106 = arith.addf %102, %105 : vector<8x32xf32>
    %107 = arith.addf %106, %25 : vector<8x32xf32>
    %c0_43 = arith.constant 0 : index
    %c0_44 = arith.constant 0 : index
    %c0_45 = arith.constant 0 : index
    %108 = vector.load %arg11[%c0_43, %c0_44, %c0_45] : memref<2x1x32xf32, #tpu.memory_space<vmem>>, vector<1x1x32xf32>
    %109 = vector.shape_cast %108 : vector<1x1x32xf32> to vector<1x32xf32>
    %c0_46 = arith.constant 0 : index
    %c0_47 = arith.constant 0 : index
    %c0_48 = arith.constant 0 : index
    %110 = vector.load %arg12[%c0_46, %c0_47, %c0_48] : memref<2x1x32xf32, #tpu.memory_space<vmem>>, vector<1x1x32xf32>
    %111 = vector.shape_cast %110 : vector<1x1x32xf32> to vector<1x32xf32>
    %cst_49 = arith.constant dense<0.000000e+00> : vector<8xf32>
    %112 = vector.multi_reduction <add>, %107, %cst_49 [1] : vector<8x32xf32> to vector<8xf32>
    %113 = vector.shape_cast %112 : vector<8xf32> to vector<8x1xf32>
    %cst_50 = arith.constant 3.200000e+01 : f32
    %114 = vector.broadcast %cst_50 : f32 to vector<8x1xf32>
    %115 = arith.divf %113, %114 : vector<8x1xf32>
    %116 = vector.broadcast %115 : vector<8x1xf32> to vector<8x32xf32>
    %117 = arith.subf %107, %116 : vector<8x32xf32>
    %118 = arith.mulf %117, %117 : vector<8x32xf32>
    %cst_51 = arith.constant dense<0.000000e+00> : vector<8xf32>
    %119 = vector.multi_reduction <add>, %118, %cst_51 [1] : vector<8x32xf32> to vector<8xf32>
    %120 = vector.shape_cast %119 : vector<8xf32> to vector<8x1xf32>
    %cst_52 = arith.constant 3.200000e+01 : f32
    %121 = vector.broadcast %cst_52 : f32 to vector<8x1xf32>
    %122 = arith.divf %120, %121 : vector<8x1xf32>
    %123 = vector.broadcast %115 : vector<8x1xf32> to vector<8x32xf32>
    %124 = arith.subf %107, %123 : vector<8x32xf32>
    %cst_53 = arith.constant 9.99999974E-6 : f32
    %125 = vector.broadcast %cst_53 : f32 to vector<8x1xf32>
    %126 = arith.addf %122, %125 : vector<8x1xf32>
    %127 = math.rsqrt %126 : vector<8x1xf32>
    %128 = vector.broadcast %127 : vector<8x1xf32> to vector<8x32xf32>
    %129 = arith.mulf %124, %128 : vector<8x32xf32>
    %130 = vector.broadcast %109 : vector<1x32xf32> to vector<8x32xf32>
    %131 = arith.mulf %129, %130 : vector<8x32xf32>
    %132 = vector.broadcast %111 : vector<1x32xf32> to vector<8x32xf32>
    %133 = arith.addf %131, %132 : vector<8x32xf32>
    %c0_54 = arith.constant 0 : index
    %c0_55 = arith.constant 0 : index
    %c0_56 = arith.constant 0 : index
    %134 = vector.load %arg13[%c0_54, %c0_55, %c0_56] : memref<2x32x64xf32, #tpu.memory_space<vmem>>, vector<1x32x64xf32>
    %135 = vector.shape_cast %134 : vector<1x32x64xf32> to vector<32x64xf32>
    %cst_57 = arith.constant dense<0.000000e+00> : vector<8x64xf32>
    %136 = tpu.matmul %133, %135, %cst_57 {dimension_numbers = #tpu.dot_dimension_numbers<[1], [0], [0], [1], [0, 0, 1, 1], [], []>} : vector<8x32xf32>, vector<32x64xf32>, vector<8x64xf32> -> vector<8x64xf32>
    %c0_58 = arith.constant 0 : index
    %c0_59 = arith.constant 0 : index
    %c0_60 = arith.constant 0 : index
    %137 = vector.load %arg14[%c0_58, %c0_59, %c0_60] : memref<2x1x64xf32, #tpu.memory_space<vmem>>, vector<1x1x64xf32>
    %138 = vector.shape_cast %137 : vector<1x1x64xf32> to vector<1x64xf32>
    %139 = vector.broadcast %138 : vector<1x64xf32> to vector<8x64xf32>
    %140 = arith.addf %136, %139 : vector<8x64xf32>
    %cst_61 = arith.constant 5.000000e-01 : f32
    %141 = vector.broadcast %cst_61 : f32 to vector<8x64xf32>
    %142 = arith.mulf %141, %140 : vector<8x64xf32>
    %cst_62 = arith.constant 4.471500e-02 : f32
    %143 = vector.broadcast %cst_62 : f32 to vector<8x64xf32>
    %144 = arith.mulf %143, %140 : vector<8x64xf32>
    %145 = arith.mulf %144, %140 : vector<8x64xf32>
    %146 = arith.mulf %145, %140 : vector<8x64xf32>
    %147 = arith.addf %140, %146 : vector<8x64xf32>
    %cst_63 = arith.constant 0.797884583 : f32
    %148 = vector.broadcast %cst_63 : f32 to vector<8x64xf32>
    %149 = arith.mulf %148, %147 : vector<8x64xf32>
    %150 = math.tanh %149 : vector<8x64xf32>
    %cst_64 = arith.constant 1.000000e+00 : f32
    %151 = vector.broadcast %cst_64 : f32 to vector<8x64xf32>
    %152 = arith.addf %151, %150 : vector<8x64xf32>
    %153 = arith.mulf %142, %152 : vector<8x64xf32>
    %c0_65 = arith.constant 0 : index
    %c0_66 = arith.constant 0 : index
    %c0_67 = arith.constant 0 : index
    %154 = vector.load %arg15[%c0_65, %c0_66, %c0_67] : memref<2x64x32xf32, #tpu.memory_space<vmem>>, vector<1x64x32xf32>
    %155 = vector.shape_cast %154 : vector<1x64x32xf32> to vector<64x32xf32>
    %cst_68 = arith.constant dense<0.000000e+00> : vector<8x32xf32>
    %156 = tpu.matmul %153, %155, %cst_68 {dimension_numbers = #tpu.dot_dimension_numbers<[1], [0], [0], [1], [0, 0, 1, 1], [], []>} : vector<8x64xf32>, vector<64x32xf32>, vector<8x32xf32> -> vector<8x32xf32>
    %c0_69 = arith.constant 0 : index
    %c0_70 = arith.constant 0 : index
    %c0_71 = arith.constant 0 : index
    %157 = vector.load %arg16[%c0_69, %c0_70, %c0_71] : memref<2x1x32xf32, #tpu.memory_space<vmem>>, vector<1x1x32xf32>
    %158 = vector.shape_cast %157 : vector<1x1x32xf32> to vector<1x32xf32>
    %159 = vector.broadcast %158 : vector<1x32xf32> to vector<8x32xf32>
    %160 = arith.addf %156, %159 : vector<8x32xf32>
    %c1 = arith.constant 1 : index
    %c0_72 = arith.constant 0 : index
    %c0_73 = arith.constant 0 : index
    %161 = vector.load %arg7[%c1, %c0_72, %c0_73] : memref<2x32x96xf32, #tpu.memory_space<vmem>>, vector<1x32x96xf32>
    %162 = vector.shape_cast %161 : vector<1x32x96xf32> to vector<32x96xf32>
    %cst_74 = arith.constant dense<0.000000e+00> : vector<8x96xf32>
    %163 = tpu.matmul %160, %162, %cst_74 {dimension_numbers = #tpu.dot_dimension_numbers<[1], [0], [0], [1], [0, 0, 1, 1], [], []>} : vector<8x32xf32>, vector<32x96xf32>, vector<8x96xf32> -> vector<8x96xf32>
    %c1_75 = arith.constant 1 : index
    %c0_76 = arith.constant 0 : index
    %c0_77 = arith.constant 0 : index
    %164 = vector.load %arg8[%c1_75, %c0_76, %c0_77] : memref<2x1x96xf32, #tpu.memory_space<vmem>>, vector<1x1x96xf32>
    %165 = vector.shape_cast %164 : vector<1x1x96xf32> to vector<1x96xf32>
    %166 = vector.broadcast %165 : vector<1x96xf32> to vector<8x96xf32>
    %167 = arith.addf %163, %166 : vector<8x96xf32>
    %168 = vector.extract_strided_slice %167 {offsets = [0, 0], sizes = [8, 8], strides = [1, 1]} : vector<8x96xf32> to vector<8x8xf32>
    %169 = vector.extract_strided_slice %167 {offsets = [0, 32], sizes = [8, 8], strides = [1, 1]} : vector<8x96xf32> to vector<8x8xf32>
    %170 = vector.extract_strided_slice %167 {offsets = [0, 64], sizes = [8, 8], strides = [1, 1]} : vector<8x96xf32> to vector<8x8xf32>
    "tpu.trace_start"() <{level = 10 : i32, message = "qd,kd->qk"}> : () -> ()
    %cst_78 = arith.constant dense<0.000000e+00> : vector<8x8xf32>
    %171 = tpu.matmul %168, %169, %cst_78 {dimension_numbers = #tpu.dot_dimension_numbers<[1], [1], [0], [0], [0, 0, 1, 0], [], []>} : vector<8x8xf32>, vector<8x8xf32>, vector<8x8xf32> -> vector<8x8xf32>
    "tpu.trace_stop"() : () -> ()
    %172 = arith.addf %171, %27 : vector<8x8xf32>
    %cst_79 = arith.constant dense<0xFF800000> : vector<8xf32>
    %173 = vector.multi_reduction <maximumf>, %172, %cst_79 [1] : vector<8x8xf32> to vector<8xf32>
    %174 = vector.shape_cast %173 : vector<8xf32> to vector<8x1xf32>
    %175 = vector.broadcast %174 : vector<8x1xf32> to vector<8x8xf32>
    %176 = arith.subf %172, %175 : vector<8x8xf32>
    %177 = math.exp %176 : vector<8x8xf32>
    %cst_80 = arith.constant dense<0.000000e+00> : vector<8xf32>
    %178 = vector.multi_reduction <add>, %177, %cst_80 [1] : vector<8x8xf32> to vector<8xf32>
    %179 = vector.shape_cast %178 : vector<8xf32> to vector<8x1xf32>
    %180 = tpu.reciprocal %179 {approx = true} : vector<8x1xf32> -> vector<8x1xf32>
    %181 = vector.broadcast %180 : vector<8x1xf32> to vector<8x8xf32>
    %182 = arith.mulf %177, %181 : vector<8x8xf32>
    %cst_81 = arith.constant dense<0.000000e+00> : vector<8x8xf32>
    %183 = tpu.matmul %182, %170, %cst_81 {dimension_numbers = #tpu.dot_dimension_numbers<[1], [0], [0], [1], [0, 0, 1, 1], [], []>} : vector<8x8xf32>, vector<8x8xf32>, vector<8x8xf32> -> vector<8x8xf32>
    %184 = vector.extract_strided_slice %167 {offsets = [0, 8], sizes = [8, 8], strides = [1, 1]} : vector<8x96xf32> to vector<8x8xf32>
    %185 = vector.extract_strided_slice %167 {offsets = [0, 40], sizes = [8, 8], strides = [1, 1]} : vector<8x96xf32> to vector<8x8xf32>
    %186 = vector.extract_strided_slice %167 {offsets = [0, 72], sizes = [8, 8], strides = [1, 1]} : vector<8x96xf32> to vector<8x8xf32>
    "tpu.trace_start"() <{level = 10 : i32, message = "qd,kd->qk"}> : () -> ()
    %cst_82 = arith.constant dense<0.000000e+00> : vector<8x8xf32>
    %187 = tpu.matmul %184, %185, %cst_82 {dimension_numbers = #tpu.dot_dimension_numbers<[1], [1], [0], [0], [0, 0, 1, 0], [], []>} : vector<8x8xf32>, vector<8x8xf32>, vector<8x8xf32> -> vector<8x8xf32>
    "tpu.trace_stop"() : () -> ()
    %188 = arith.addf %187, %27 : vector<8x8xf32>
    %cst_83 = arith.constant dense<0xFF800000> : vector<8xf32>
    %189 = vector.multi_reduction <maximumf>, %188, %cst_83 [1] : vector<8x8xf32> to vector<8xf32>
    %190 = vector.shape_cast %189 : vector<8xf32> to vector<8x1xf32>
    %191 = vector.broadcast %190 : vector<8x1xf32> to vector<8x8xf32>
    %192 = arith.subf %188, %191 : vector<8x8xf32>
    %193 = math.exp %192 : vector<8x8xf32>
    %cst_84 = arith.constant dense<0.000000e+00> : vector<8xf32>
    %194 = vector.multi_reduction <add>, %193, %cst_84 [1] : vector<8x8xf32> to vector<8xf32>
    %195 = vector.shape_cast %194 : vector<8xf32> to vector<8x1xf32>
    %196 = tpu.reciprocal %195 {approx = true} : vector<8x1xf32> -> vector<8x1xf32>
    %197 = vector.broadcast %196 : vector<8x1xf32> to vector<8x8xf32>
    %198 = arith.mulf %193, %197 : vector<8x8xf32>
    %cst_85 = arith.constant dense<0.000000e+00> : vector<8x8xf32>
    %199 = tpu.matmul %198, %186, %cst_85 {dimension_numbers = #tpu.dot_dimension_numbers<[1], [0], [0], [1], [0, 0, 1, 1], [], []>} : vector<8x8xf32>, vector<8x8xf32>, vector<8x8xf32> -> vector<8x8xf32>
    %200 = vector.extract_strided_slice %167 {offsets = [0, 16], sizes = [8, 8], strides = [1, 1]} : vector<8x96xf32> to vector<8x8xf32>
    %201 = vector.extract_strided_slice %167 {offsets = [0, 48], sizes = [8, 8], strides = [1, 1]} : vector<8x96xf32> to vector<8x8xf32>
    %202 = vector.extract_strided_slice %167 {offsets = [0, 80], sizes = [8, 8], strides = [1, 1]} : vector<8x96xf32> to vector<8x8xf32>
    "tpu.trace_start"() <{level = 10 : i32, message = "qd,kd->qk"}> : () -> ()
    %cst_86 = arith.constant dense<0.000000e+00> : vector<8x8xf32>
    %203 = tpu.matmul %200, %201, %cst_86 {dimension_numbers = #tpu.dot_dimension_numbers<[1], [1], [0], [0], [0, 0, 1, 0], [], []>} : vector<8x8xf32>, vector<8x8xf32>, vector<8x8xf32> -> vector<8x8xf32>
    "tpu.trace_stop"() : () -> ()
    %204 = arith.addf %203, %27 : vector<8x8xf32>
    %cst_87 = arith.constant dense<0xFF800000> : vector<8xf32>
    %205 = vector.multi_reduction <maximumf>, %204, %cst_87 [1] : vector<8x8xf32> to vector<8xf32>
    %206 = vector.shape_cast %205 : vector<8xf32> to vector<8x1xf32>
    %207 = vector.broadcast %206 : vector<8x1xf32> to vector<8x8xf32>
    %208 = arith.subf %204, %207 : vector<8x8xf32>
    %209 = math.exp %208 : vector<8x8xf32>
    %cst_88 = arith.constant dense<0.000000e+00> : vector<8xf32>
    %210 = vector.multi_reduction <add>, %209, %cst_88 [1] : vector<8x8xf32> to vector<8xf32>
    %211 = vector.shape_cast %210 : vector<8xf32> to vector<8x1xf32>
    %212 = tpu.reciprocal %211 {approx = true} : vector<8x1xf32> -> vector<8x1xf32>
    %213 = vector.broadcast %212 : vector<8x1xf32> to vector<8x8xf32>
    %214 = arith.mulf %209, %213 : vector<8x8xf32>
    %cst_89 = arith.constant dense<0.000000e+00> : vector<8x8xf32>
    %215 = tpu.matmul %214, %202, %cst_89 {dimension_numbers = #tpu.dot_dimension_numbers<[1], [0], [0], [1], [0, 0, 1, 1], [], []>} : vector<8x8xf32>, vector<8x8xf32>, vector<8x8xf32> -> vector<8x8xf32>
    %216 = vector.extract_strided_slice %167 {offsets = [0, 24], sizes = [8, 8], strides = [1, 1]} : vector<8x96xf32> to vector<8x8xf32>
    %217 = vector.extract_strided_slice %167 {offsets = [0, 56], sizes = [8, 8], strides = [1, 1]} : vector<8x96xf32> to vector<8x8xf32>
    %218 = vector.extract_strided_slice %167 {offsets = [0, 88], sizes = [8, 8], strides = [1, 1]} : vector<8x96xf32> to vector<8x8xf32>
    "tpu.trace_start"() <{level = 10 : i32, message = "qd,kd->qk"}> : () -> ()
    %cst_90 = arith.constant dense<0.000000e+00> : vector<8x8xf32>
    %219 = tpu.matmul %216, %217, %cst_90 {dimension_numbers = #tpu.dot_dimension_numbers<[1], [1], [0], [0], [0, 0, 1, 0], [], []>} : vector<8x8xf32>, vector<8x8xf32>, vector<8x8xf32> -> vector<8x8xf32>
    "tpu.trace_stop"() : () -> ()
    %220 = arith.addf %219, %27 : vector<8x8xf32>
    %cst_91 = arith.constant dense<0xFF800000> : vector<8xf32>
    %221 = vector.multi_reduction <maximumf>, %220, %cst_91 [1] : vector<8x8xf32> to vector<8xf32>
    %222 = vector.shape_cast %221 : vector<8xf32> to vector<8x1xf32>
    %223 = vector.broadcast %222 : vector<8x1xf32> to vector<8x8xf32>
    %224 = arith.subf %220, %223 : vector<8x8xf32>
    %225 = math.exp %224 : vector<8x8xf32>
    %cst_92 = arith.constant dense<0.000000e+00> : vector<8xf32>
    %226 = vector.multi_reduction <add>, %225, %cst_92 [1] : vector<8x8xf32> to vector<8xf32>
    %227 = vector.shape_cast %226 : vector<8xf32> to vector<8x1xf32>
    %228 = tpu.reciprocal %227 {approx = true} : vector<8x1xf32> -> vector<8x1xf32>
    %229 = vector.broadcast %228 : vector<8x1xf32> to vector<8x8xf32>
    %230 = arith.mulf %225, %229 : vector<8x8xf32>
    %cst_93 = arith.constant dense<0.000000e+00> : vector<8x8xf32>
    %231 = tpu.matmul %230, %218, %cst_93 {dimension_numbers = #tpu.dot_dimension_numbers<[1], [0], [0], [1], [0, 0, 1, 1], [], []>} : vector<8x8xf32>, vector<8x8xf32>, vector<8x8xf32> -> vector<8x8xf32>
    %232 = tpu.concatenate %183, %199, %215, %231 in 1 : vector<8x8xf32>, vector<8x8xf32>, vector<8x8xf32>, vector<8x8xf32> -> vector<8x32xf32>
    %c1_94 = arith.constant 1 : index
    %c0_95 = arith.constant 0 : index
    %c0_96 = arith.constant 0 : index
    %233 = vector.load %arg9[%c1_94, %c0_95, %c0_96] : memref<2x32x32xf32, #tpu.memory_space<vmem>>, vector<1x32x32xf32>
    %234 = vector.shape_cast %233 : vector<1x32x32xf32> to vector<32x32xf32>
    %cst_97 = arith.constant dense<0.000000e+00> : vector<8x32xf32>
    %235 = tpu.matmul %232, %234, %cst_97 {dimension_numbers = #tpu.dot_dimension_numbers<[1], [0], [0], [1], [0, 0, 1, 1], [], []>} : vector<8x32xf32>, vector<32x32xf32>, vector<8x32xf32> -> vector<8x32xf32>
    %c1_98 = arith.constant 1 : index
    %c0_99 = arith.constant 0 : index
    %c0_100 = arith.constant 0 : index
    %236 = vector.load %arg10[%c1_98, %c0_99, %c0_100] : memref<2x1x32xf32, #tpu.memory_space<vmem>>, vector<1x1x32xf32>
    %237 = vector.shape_cast %236 : vector<1x1x32xf32> to vector<1x32xf32>
    %238 = vector.broadcast %237 : vector<1x32xf32> to vector<8x32xf32>
    %239 = arith.addf %235, %238 : vector<8x32xf32>
    %240 = arith.addf %239, %160 : vector<8x32xf32>
    %c1_101 = arith.constant 1 : index
    %c0_102 = arith.constant 0 : index
    %c0_103 = arith.constant 0 : index
    %241 = vector.load %arg11[%c1_101, %c0_102, %c0_103] : memref<2x1x32xf32, #tpu.memory_space<vmem>>, vector<1x1x32xf32>
    %242 = vector.shape_cast %241 : vector<1x1x32xf32> to vector<1x32xf32>
    %c1_104 = arith.constant 1 : index
    %c0_105 = arith.constant 0 : index
    %c0_106 = arith.constant 0 : index
    %243 = vector.load %arg12[%c1_104, %c0_105, %c0_106] : memref<2x1x32xf32, #tpu.memory_space<vmem>>, vector<1x1x32xf32>
    %244 = vector.shape_cast %243 : vector<1x1x32xf32> to vector<1x32xf32>
    %cst_107 = arith.constant dense<0.000000e+00> : vector<8xf32>
    %245 = vector.multi_reduction <add>, %240, %cst_107 [1] : vector<8x32xf32> to vector<8xf32>
    %246 = vector.shape_cast %245 : vector<8xf32> to vector<8x1xf32>
    %cst_108 = arith.constant 3.200000e+01 : f32
    %247 = vector.broadcast %cst_108 : f32 to vector<8x1xf32>
    %248 = arith.divf %246, %247 : vector<8x1xf32>
    %249 = vector.broadcast %248 : vector<8x1xf32> to vector<8x32xf32>
    %250 = arith.subf %240, %249 : vector<8x32xf32>
    %251 = arith.mulf %250, %250 : vector<8x32xf32>
    %cst_109 = arith.constant dense<0.000000e+00> : vector<8xf32>
    %252 = vector.multi_reduction <add>, %251, %cst_109 [1] : vector<8x32xf32> to vector<8xf32>
    %253 = vector.shape_cast %252 : vector<8xf32> to vector<8x1xf32>
    %cst_110 = arith.constant 3.200000e+01 : f32
    %254 = vector.broadcast %cst_110 : f32 to vector<8x1xf32>
    %255 = arith.divf %253, %254 : vector<8x1xf32>
    %256 = vector.broadcast %248 : vector<8x1xf32> to vector<8x32xf32>
    %257 = arith.subf %240, %256 : vector<8x32xf32>
    %cst_111 = arith.constant 9.99999974E-6 : f32
    %258 = vector.broadcast %cst_111 : f32 to vector<8x1xf32>
    %259 = arith.addf %255, %258 : vector<8x1xf32>
    %260 = math.rsqrt %259 : vector<8x1xf32>
    %261 = vector.broadcast %260 : vector<8x1xf32> to vector<8x32xf32>
    %262 = arith.mulf %257, %261 : vector<8x32xf32>
    %263 = vector.broadcast %242 : vector<1x32xf32> to vector<8x32xf32>
    %264 = arith.mulf %262, %263 : vector<8x32xf32>
    %265 = vector.broadcast %244 : vector<1x32xf32> to vector<8x32xf32>
    %266 = arith.addf %264, %265 : vector<8x32xf32>
    %c1_112 = arith.constant 1 : index
    %c0_113 = arith.constant 0 : index
    %c0_114 = arith.constant 0 : index
    %267 = vector.load %arg13[%c1_112, %c0_113, %c0_114] : memref<2x32x64xf32, #tpu.memory_space<vmem>>, vector<1x32x64xf32>
    %268 = vector.shape_cast %267 : vector<1x32x64xf32> to vector<32x64xf32>
    %cst_115 = arith.constant dense<0.000000e+00> : vector<8x64xf32>
    %269 = tpu.matmul %266, %268, %cst_115 {dimension_numbers = #tpu.dot_dimension_numbers<[1], [0], [0], [1], [0, 0, 1, 1], [], []>} : vector<8x32xf32>, vector<32x64xf32>, vector<8x64xf32> -> vector<8x64xf32>
    %c1_116 = arith.constant 1 : index
    %c0_117 = arith.constant 0 : index
    %c0_118 = arith.constant 0 : index
    %270 = vector.load %arg14[%c1_116, %c0_117, %c0_118] : memref<2x1x64xf32, #tpu.memory_space<vmem>>, vector<1x1x64xf32>
    %271 = vector.shape_cast %270 : vector<1x1x64xf32> to vector<1x64xf32>
    %272 = vector.broadcast %271 : vector<1x64xf32> to vector<8x64xf32>
    %273 = arith.addf %269, %272 : vector<8x64xf32>
    %cst_119 = arith.constant 5.000000e-01 : f32
    %274 = vector.broadcast %cst_119 : f32 to vector<8x64xf32>
    %275 = arith.mulf %274, %273 : vector<8x64xf32>
    %cst_120 = arith.constant 4.471500e-02 : f32
    %276 = vector.broadcast %cst_120 : f32 to vector<8x64xf32>
    %277 = arith.mulf %276, %273 : vector<8x64xf32>
    %278 = arith.mulf %277, %273 : vector<8x64xf32>
    %279 = arith.mulf %278, %273 : vector<8x64xf32>
    %280 = arith.addf %273, %279 : vector<8x64xf32>
    %cst_121 = arith.constant 0.797884583 : f32
    %281 = vector.broadcast %cst_121 : f32 to vector<8x64xf32>
    %282 = arith.mulf %281, %280 : vector<8x64xf32>
    %283 = math.tanh %282 : vector<8x64xf32>
    %cst_122 = arith.constant 1.000000e+00 : f32
    %284 = vector.broadcast %cst_122 : f32 to vector<8x64xf32>
    %285 = arith.addf %284, %283 : vector<8x64xf32>
    %286 = arith.mulf %275, %285 : vector<8x64xf32>
    %c1_123 = arith.constant 1 : index
    %c0_124 = arith.constant 0 : index
    %c0_125 = arith.constant 0 : index
    %287 = vector.load %arg15[%c1_123, %c0_124, %c0_125] : memref<2x64x32xf32, #tpu.memory_space<vmem>>, vector<1x64x32xf32>
    %288 = vector.shape_cast %287 : vector<1x64x32xf32> to vector<64x32xf32>
    %cst_126 = arith.constant dense<0.000000e+00> : vector<8x32xf32>
    %289 = tpu.matmul %286, %288, %cst_126 {dimension_numbers = #tpu.dot_dimension_numbers<[1], [0], [0], [1], [0, 0, 1, 1], [], []>} : vector<8x64xf32>, vector<64x32xf32>, vector<8x32xf32> -> vector<8x32xf32>
    %c1_127 = arith.constant 1 : index
    %c0_128 = arith.constant 0 : index
    %c0_129 = arith.constant 0 : index
    %290 = vector.load %arg16[%c1_127, %c0_128, %c0_129] : memref<2x1x32xf32, #tpu.memory_space<vmem>>, vector<1x1x32xf32>
    %291 = vector.shape_cast %290 : vector<1x1x32xf32> to vector<1x32xf32>
    %292 = vector.broadcast %291 : vector<1x32xf32> to vector<8x32xf32>
    %293 = arith.addf %289, %292 : vector<8x32xf32>
    %c0_130 = arith.constant 0 : index
    %c0_131 = arith.constant 0 : index
    %c0_132 = arith.constant 0 : index
    %294 = vector.load %arg3[%c0_130, %c0_131, %c0_132] : memref<1x8x8xf32, #tpu.memory_space<vmem>>, vector<1x8x8xf32>
    %295 = vector.shape_cast %294 : vector<1x8x8xf32> to vector<8x8xf32>
    %cst_133 = arith.constant dense<0.000000e+00> : vector<8x32xf32>
    %296 = tpu.matmul %295, %293, %cst_133 {dimension_numbers = #tpu.dot_dimension_numbers<[1], [0], [0], [1], [0, 0, 1, 1], [], []>} : vector<8x8xf32>, vector<8x32xf32>, vector<8x32xf32> -> vector<8x32xf32>
    %c0_134 = arith.constant 0 : index
    %c0_135 = arith.constant 0 : index
    %297 = vector.load %arg17[%c0_134, %c0_135] : memref<32x32xf32, #tpu.memory_space<vmem>>, vector<32x32xf32>
    %cst_136 = arith.constant dense<0.000000e+00> : vector<8x32xf32>
    %298 = tpu.matmul %296, %297, %cst_136 {dimension_numbers = #tpu.dot_dimension_numbers<[1], [0], [0], [1], [0, 0, 1, 1], [], []>} : vector<8x32xf32>, vector<32x32xf32>, vector<8x32xf32> -> vector<8x32xf32>
    %c0_137 = arith.constant 0 : index
    %c0_138 = arith.constant 0 : index
    %299 = vector.load %arg18[%c0_137, %c0_138] : memref<1x32xf32, #tpu.memory_space<vmem>>, vector<1x32xf32>
    %300 = vector.broadcast %299 : vector<1x32xf32> to vector<8x32xf32>
    %301 = arith.addf %298, %300 : vector<8x32xf32>
    %302 = math.tanh %301 : vector<8x32xf32>
    %c0_139 = arith.constant 0 : index
    %c0_140 = arith.constant 0 : index
    %303 = vector.load %arg19[%c0_139, %c0_140] : memref<32x128xf32, #tpu.memory_space<vmem>>, vector<32x128xf32>
    %cst_141 = arith.constant dense<0.000000e+00> : vector<8x128xf32>
    %304 = tpu.matmul %302, %303, %cst_141 {dimension_numbers = #tpu.dot_dimension_numbers<[1], [0], [0], [1], [0, 0, 1, 1], [], []>} : vector<8x32xf32>, vector<32x128xf32>, vector<8x128xf32> -> vector<8x128xf32>
    %c0_142 = arith.constant 0 : index
    %c0_143 = arith.constant 0 : index
    %305 = vector.load %arg20[%c0_142, %c0_143] : memref<1x128xf32, #tpu.memory_space<vmem>>, vector<1x128xf32>
    %306 = vector.broadcast %305 : vector<1x128xf32> to vector<8x128xf32>
    %307 = arith.addf %304, %306 : vector<8x128xf32>
    %c0_144 = arith.constant 0 : index
    %c0_145 = arith.constant 0 : index
    %c0_146 = arith.constant 0 : index
    %308 = vector.load %arg28[%c0_144, %c0_145, %c0_146] : memref<1x8x128xf32, #tpu.memory_space<vmem>>, vector<1x8x128xf32>
    %309 = vector.shape_cast %308 : vector<1x8x128xf32> to vector<8x128xf32>
    %310 = vector.shape_cast %307 : vector<8x128xf32> to vector<1x8x128xf32>
    tpu.vector_store %arg28[%c0_144, %c0_145, %c0_146], %310 {strides = array<i32>} : memref<1x8x128xf32, #tpu.memory_space<vmem>>, vector<1x8x128xf32>,
    %c0_147 = arith.constant 0 : index
    %c0_148 = arith.constant 0 : index
    %c0_149 = arith.constant 0 : index
    %311 = vector.load %arg4[%c0_147, %c0_148, %c0_149] : memref<1x8x8xf32, #tpu.memory_space<vmem>>, vector<1x8x8xf32>
    %312 = vector.shape_cast %311 : vector<1x8x8xf32> to vector<8x8xf32>
    %cst_150 = arith.constant dense<0.000000e+00> : vector<8x32xf32>
    %313 = tpu.matmul %312, %293, %cst_150 {dimension_numbers = #tpu.dot_dimension_numbers<[1], [0], [0], [1], [0, 0, 1, 1], [], []>} : vector<8x8xf32>, vector<8x32xf32>, vector<8x32xf32> -> vector<8x32xf32>
    %c0_151 = arith.constant 0 : index
    %c0_152 = arith.constant 0 : index
    %314 = vector.load %arg21[%c0_151, %c0_152] : memref<32x32xf32, #tpu.memory_space<vmem>>, vector<32x32xf32>
    %cst_153 = arith.constant dense<0.000000e+00> : vector<8x32xf32>
    %315 = tpu.matmul %313, %314, %cst_153 {dimension_numbers = #tpu.dot_dimension_numbers<[1], [0], [0], [1], [0, 0, 1, 1], [], []>} : vector<8x32xf32>, vector<32x32xf32>, vector<8x32xf32> -> vector<8x32xf32>
    %c0_154 = arith.constant 0 : index
    %c0_155 = arith.constant 0 : index
    %316 = vector.load %arg22[%c0_154, %c0_155] : memref<1x32xf32, #tpu.memory_space<vmem>>, vector<1x32xf32>
    %317 = vector.broadcast %316 : vector<1x32xf32> to vector<8x32xf32>
    %318 = arith.addf %315, %317 : vector<8x32xf32>
    %cst_156 = arith.constant 5.000000e-01 : f32
    %319 = vector.broadcast %cst_156 : f32 to vector<8x32xf32>
    %320 = arith.mulf %319, %318 : vector<8x32xf32>
    %cst_157 = arith.constant 4.471500e-02 : f32
    %321 = vector.broadcast %cst_157 : f32 to vector<8x32xf32>
    %322 = arith.mulf %321, %318 : vector<8x32xf32>
    %323 = arith.mulf %322, %318 : vector<8x32xf32>
    %324 = arith.mulf %323, %318 : vector<8x32xf32>
    %325 = arith.addf %318, %324 : vector<8x32xf32>
    %cst_158 = arith.constant 0.797884583 : f32
    %326 = vector.broadcast %cst_158 : f32 to vector<8x32xf32>
    %327 = arith.mulf %326, %325 : vector<8x32xf32>
    %328 = math.tanh %327 : vector<8x32xf32>
    %cst_159 = arith.constant 1.000000e+00 : f32
    %329 = vector.broadcast %cst_159 : f32 to vector<8x32xf32>
    %330 = arith.addf %329, %328 : vector<8x32xf32>
    %331 = arith.mulf %320, %330 : vector<8x32xf32>
    %c0_160 = arith.constant 0 : index
    %c0_161 = arith.constant 0 : index
    %332 = vector.load %arg23[%c0_160, %c0_161] : memref<1x32xf32, #tpu.memory_space<vmem>>, vector<1x32xf32>
    %c0_162 = arith.constant 0 : index
    %c0_163 = arith.constant 0 : index
    %333 = vector.load %arg24[%c0_162, %c0_163] : memref<1x32xf32, #tpu.memory_space<vmem>>, vector<1x32xf32>
    %cst_164 = arith.constant dense<0.000000e+00> : vector<8xf32>
    %334 = vector.multi_reduction <add>, %331, %cst_164 [1] : vector<8x32xf32> to vector<8xf32>
    %335 = vector.shape_cast %334 : vector<8xf32> to vector<8x1xf32>
    %cst_165 = arith.constant 3.200000e+01 : f32
    %336 = vector.broadcast %cst_165 : f32 to vector<8x1xf32>
    %337 = arith.divf %335, %336 : vector<8x1xf32>
    %338 = vector.broadcast %337 : vector<8x1xf32> to vector<8x32xf32>
    %339 = arith.subf %331, %338 : vector<8x32xf32>
    %340 = arith.mulf %339, %339 : vector<8x32xf32>
    %cst_166 = arith.constant dense<0.000000e+00> : vector<8xf32>
    %341 = vector.multi_reduction <add>, %340, %cst_166 [1] : vector<8x32xf32> to vector<8xf32>
    %342 = vector.shape_cast %341 : vector<8xf32> to vector<8x1xf32>
    %cst_167 = arith.constant 3.200000e+01 : f32
    %343 = vector.broadcast %cst_167 : f32 to vector<8x1xf32>
    %344 = arith.divf %342, %343 : vector<8x1xf32>
    %345 = vector.broadcast %337 : vector<8x1xf32> to vector<8x32xf32>
    %346 = arith.subf %331, %345 : vector<8x32xf32>
    %cst_168 = arith.constant 9.99999974E-6 : f32
    %347 = vector.broadcast %cst_168 : f32 to vector<8x1xf32>
    %348 = arith.addf %344, %347 : vector<8x1xf32>
    %349 = math.rsqrt %348 : vector<8x1xf32>
    %350 = vector.broadcast %349 : vector<8x1xf32> to vector<8x32xf32>
    %351 = arith.mulf %346, %350 : vector<8x32xf32>
    %352 = vector.broadcast %332 : vector<1x32xf32> to vector<8x32xf32>
    %353 = arith.mulf %351, %352 : vector<8x32xf32>
    %354 = vector.broadcast %333 : vector<1x32xf32> to vector<8x32xf32>
    %355 = arith.addf %353, %354 : vector<8x32xf32>
    %c0_169 = arith.constant 0 : index
    %c0_170 = arith.constant 0 : index
    %356 = vector.load %arg25[%c0_169, %c0_170] : memref<32x128xf32, #tpu.memory_space<vmem>>, vector<32x128xf32>
    %cst_171 = arith.constant dense<0.000000e+00> : vector<8x128xf32>
    %357 = tpu.matmul %355, %356, %cst_171 {dimension_numbers = #tpu.dot_dimension_numbers<[1], [0], [0], [1], [0, 0, 1, 1], [], []>} : vector<8x32xf32>, vector<32x128xf32>, vector<8x128xf32> -> vector<8x128xf32>
    %c0_172 = arith.constant 0 : index
    %c0_173 = arith.constant 0 : index
    %358 = vector.load %arg26[%c0_172, %c0_173] : memref<1x128xf32, #tpu.memory_space<vmem>>, vector<1x128xf32>
    %359 = vector.broadcast %358 : vector<1x128xf32> to vector<8x128xf32>
    %360 = arith.addf %357, %359 : vector<8x128xf32>
    %c0_174 = arith.constant 0 : index
    %c0_175 = arith.constant 0 : index
    %c0_176 = arith.constant 0 : index
    %361 = vector.load %arg27[%c0_174, %c0_175, %c0_176] : memref<1x8x128xf32, #tpu.memory_space<vmem>>, vector<1x8x128xf32>
    %362 = vector.shape_cast %361 : vector<1x8x128xf32> to vector<8x128xf32>
    %363 = vector.shape_cast %360 : vector<8x128xf32> to vector<1x8x128xf32>
    tpu.vector_store %arg27[%c0_174, %c0_175, %c0_176], %363 {strides = array<i32>} : memref<1x8x128xf32, #tpu.memory_space<vmem>>, vector<1x8x128xf32>,
    return
  }
  func.func @transform_0(%arg0: i32) -> (i32, i32, i32) {
    %c0_i32 = arith.constant 0 : i32
    %c0_i32_0 = arith.constant 0 : i32
    %c0_i32_1 = arith.constant 0 : i32
    return %arg0, %c0_i32, %c0_i32_0 : i32, i32, i32
  }
  func.func @transform_1(%arg0: i32) -> (i32, i32, i32) {
    %c0_i32 = arith.constant 0 : i32
    %c0_i32_0 = arith.constant 0 : i32
    %c0_i32_1 = arith.constant 0 : i32
    return %arg0, %c0_i32, %c0_i32_0 : i32, i32, i32
  }
  func.func @transform_2(%arg0: i32) -> (i32, i32, i32) {
    %c0_i32 = arith.constant 0 : i32
    %c0_i32_0 = arith.constant 0 : i32
    %c0_i32_1 = arith.constant 0 : i32
    return %arg0, %c0_i32, %c0_i32_0 : i32, i32, i32
  }
  func.func @transform_3(%arg0: i32) -> (i32, i32, i32) {
    %c0_i32 = arith.constant 0 : i32
    %c0_i32_0 = arith.constant 0 : i32
    %c0_i32_1 = arith.constant 0 : i32
    return %arg0, %c0_i32, %c0_i32_0 : i32, i32, i32
  }
  func.func @transform_4(%arg0: i32) -> (i32, i32) {
    %c0_i32 = arith.constant 0 : i32
    %c0_i32_0 = arith.constant 0 : i32
    %c0_i32_1 = arith.constant 0 : i32
    return %c0_i32, %c0_i32_0 : i32, i32
  }
  func.func @transform_5(%arg0: i32) -> (i32, i32) {
    %c0_i32 = arith.constant 0 : i32
    %c0_i32_0 = arith.constant 0 : i32
    %c0_i32_1 = arith.constant 0 : i32
    return %c0_i32, %c0_i32_0 : i32, i32
  }
  func.func @transform_6(%arg0: i32) -> (i32, i32, i32) {
    %c0_i32 = arith.constant 0 : i32
    %c0_i32_0 = arith.constant 0 : i32
    %c0_i32_1 = arith.constant 0 : i32
    %c0_i32_2 = arith.constant 0 : i32
    return %c0_i32, %c0_i32_0, %c0_i32_1 : i32, i32, i32
  }
  func.func @transform_7(%arg0: i32) -> (i32, i32, i32) {
    %c0_i32 = arith.constant 0 : i32
    %c0_i32_0 = arith.constant 0 : i32
    %c0_i32_1 = arith.constant 0 : i32
    %c0_i32_2 = arith.constant 0 : i32
    return %c0_i32, %c0_i32_0, %c0_i32_1 : i32, i32, i32
  }
  func.func @transform_8(%arg0: i32) -> (i32, i32, i32) {
    %c0_i32 = arith.constant 0 : i32
    %c0_i32_0 = arith.constant 0 : i32
    %c0_i32_1 = arith.constant 0 : i32
    %c0_i32_2 = arith.constant 0 : i32
    return %c0_i32, %c0_i32_0, %c0_i32_1 : i32, i32, i32
  }
  func.func @transform_9(%arg0: i32) -> (i32, i32, i32) {
    %c0_i32 = arith.constant 0 : i32
    %c0_i32_0 = arith.constant 0 : i32
    %c0_i32_1 = arith.constant 0 : i32
    %c0_i32_2 = arith.constant 0 : i32
    return %c0_i32, %c0_i32_0, %c0_i32_1 : i32, i32, i32
  }
  func.func @transform_10(%arg0: i32) -> (i32, i32, i32) {
    %c0_i32 = arith.constant 0 : i32
    %c0_i32_0 = arith.constant 0 : i32
    %c0_i32_1 = arith.constant 0 : i32
    %c0_i32_2 = arith.constant 0 : i32
    return %c0_i32, %c0_i32_0, %c0_i32_1 : i32, i32, i32
  }
  func.func @transform_11(%arg0: i32) -> (i32, i32, i32) {
    %c0_i32 = arith.constant 0 : i32
    %c0_i32_0 = arith.constant 0 : i32
    %c0_i32_1 = arith.constant 0 : i32
    %c0_i32_2 = arith.constant 0 : i32
    return %c0_i32, %c0_i32_0, %c0_i32_1 : i32, i32, i32
  }
  func.func @transform_12(%arg0: i32) -> (i32, i32, i32) {
    %c0_i32 = arith.constant 0 : i32
    %c0_i32_0 = arith.constant 0 : i32
    %c0_i32_1 = arith.constant 0 : i32
    %c0_i32_2 = arith.constant 0 : i32
    return %c0_i32, %c0_i32_0, %c0_i32_1 : i32, i32, i32
  }
  func.func @transform_13(%arg0: i32) -> (i32, i32, i32) {
    %c0_i32 = arith.constant 0 : i32
    %c0_i32_0 = arith.constant 0 : i32
    %c0_i32_1 = arith.constant 0 : i32
    %c0_i32_2 = arith.constant 0 : i32
    return %c0_i32, %c0_i32_0, %c0_i32_1 : i32, i32, i32
  }
  func.func @transform_14(%arg0: i32) -> (i32, i32, i32) {
    %c0_i32 = arith.constant 0 : i32
    %c0_i32_0 = arith.constant 0 : i32
    %c0_i32_1 = arith.constant 0 : i32
    %c0_i32_2 = arith.constant 0 : i32
    return %c0_i32, %c0_i32_0, %c0_i32_1 : i32, i32, i32
  }
  func.func @transform_15(%arg0: i32) -> (i32, i32, i32) {
    %c0_i32 = arith.constant 0 : i32
    %c0_i32_0 = arith.constant 0 : i32
    %c0_i32_1 = arith.constant 0 : i32
    %c0_i32_2 = arith.constant 0 : i32
    return %c0_i32, %c0_i32_0, %c0_i32_1 : i32, i32, i32
  }
  func.func @transform_16(%arg0: i32) -> (i32, i32) {
    %c0_i32 = arith.constant 0 : i32
    %c0_i32_0 = arith.constant 0 : i32
    %c0_i32_1 = arith.constant 0 : i32
    return %c0_i32, %c0_i32_0 : i32, i32
  }
  func.func @transform_17(%arg0: i32) -> (i32, i32) {
    %c0_i32 = arith.constant 0 : i32
    %c0_i32_0 = arith.constant 0 : i32
    %c0_i32_1 = arith.constant 0 : i32
    return %c0_i32, %c0_i32_0 : i32, i32
  }
  func.func @transform_18(%arg0: i32) -> (i32, i32) {
    %c0_i32 = arith.constant 0 : i32
    %c0_i32_0 = arith.constant 0 : i32
    %c0_i32_1 = arith.constant 0 : i32
    return %c0_i32, %c0_i32_0 : i32, i32
  }
  func.func @transform_19(%arg0: i32) -> (i32, i32) {
    %c0_i32 = arith.constant 0 : i32
    %c0_i32_0 = arith.constant 0 : i32
    %c0_i32_1 = arith.constant 0 : i32
    return %c0_i32, %c0_i32_0 : i32, i32
  }
  func.func @transform_20(%arg0: i32) -> (i32, i32) {
    %c0_i32 = arith.constant 0 : i32
    %c0_i32_0 = arith.constant 0 : i32
    %c0_i32_1 = arith.constant 0 : i32
    return %c0_i32, %c0_i32_0 : i32, i32
  }
  func.func @transform_21(%arg0: i32) -> (i32, i32) {
    %c0_i32 = arith.constant 0 : i32
    %c0_i32_0 = arith.constant 0 : i32
    %c0_i32_1 = arith.constant 0 : i32
    return %c0_i32, %c0_i32_0 : i32, i32
  }
  func.func @transform_22(%arg0: i32) -> (i32, i32) {
    %c0_i32 = arith.constant 0 : i32
    %c0_i32_0 = arith.constant 0 : i32
    %c0_i32_1 = arith.constant 0 : i32
    return %c0_i32, %c0_i32_0 : i32, i32
  }
  func.func @transform_23(%arg0: i32) -> (i32, i32) {
    %c0_i32 = arith.constant 0 : i32
    %c0_i32_0 = arith.constant 0 : i32
    %c0_i32_1 = arith.constant 0 : i32
    return %c0_i32, %c0_i32_0 : i32, i32
  }
  func.func @transform_24(%arg0: i32) -> (i32, i32) {
    %c0_i32 = arith.constant 0 : i32
    %c0_i32_0 = arith.constant 0 : i32
    %c0_i32_1 = arith.constant 0 : i32
    return %c0_i32, %c0_i32_0 : i32, i32
  }
  func.func @transform_25(%arg0: i32) -> (i32, i32) {
    %c0_i32 = arith.constant 0 : i32
    %c0_i32_0 = arith.constant 0 : i32
    %c0_i32_1 = arith.constant 0 : i32
    return %c0_i32, %c0_i32_0 : i32, i32
  }
  func.func @transform_26(%arg0: i32) -> (i32, i32, i32) {
    %c0_i32 = arith.constant 0 : i32
    %c0_i32_0 = arith.constant 0 : i32
    %c0_i32_1 = arith.constant 0 : i32
    return %arg0, %c0_i32, %c0_i32_0 : i32, i32, i32
  }
  func.func @transform_27(%arg0: i32) -> (i32, i32, i32) {
    %c0_i32 = arith.constant 0 : i32
    %c0_i32_0 = arith.constant 0 : i32
    %c0_i32_1 = arith.constant 0 : i32
    return %arg0, %c0_i32, %c0_i32_0 : i32, i32, i32
  }
}

</mosaic_0001>

<llo_original>
// kernel: bert_forward.1
$region0: #{bert_forward.1}
  #allocation0 [shape = 'u32[]', space=smem, size = 0x4, offset = 0x4, fixed_abs, tag = 'smem constant byte address 0x4 - core index']
  #allocation1 [shape = 'u32[144,128]{1,0:T(1,128)}', space=vmem, size = 0x12000, scoped, tag = 'internal scratch']
  %s0 = inlined_call_operand.vmem [shape: f32[2,8,32], index: 0, kind: input, shape index: {}]
  %s1 = inlined_call_operand.vmem [shape: f32[2,8,8], index: 1, kind: input, shape index: {}]
  %s2 = inlined_call_operand.vmem [shape: f32[2,8,8], index: 2, kind: input, shape index: {}]
  %s3 = inlined_call_operand.vmem [shape: f32[2,8,8], index: 3, kind: input, shape index: {}]
  %s4 = inlined_call_operand.vmem [shape: f32[1,32], index: 4, kind: input, shape index: {}]
  %s5 = inlined_call_operand.vmem [shape: f32[1,32], index: 5, kind: input, shape index: {}]
  %s6 = inlined_call_operand.vmem [shape: f32[2,32,96], index: 6, kind: input, shape index: {}]
  %s7 = inlined_call_operand.vmem [shape: f32[2,1,96], index: 7, kind: input, shape index: {}]
  %s8 = inlined_call_operand.vmem [shape: f32[2,32,32], index: 8, kind: input, shape index: {}]
  %s9 = inlined_call_operand.vmem [shape: f32[2,1,32], index: 9, kind: input, shape index: {}]
  %s10 = inlined_call_operand.vmem [shape: f32[2,1,32], index: 10, kind: input, shape index: {}]
  %s11 = inlined_call_operand.vmem [shape: f32[2,1,32], index: 11, kind: input, shape index: {}]
  %s12 = inlined_call_operand.vmem [shape: f32[2,32,64], index: 12, kind: input, shape index: {}]
  %s13 = inlined_call_operand.vmem [shape: f32[2,1,64], index: 13, kind: input, shape index: {}]
  %s14 = inlined_call_operand.vmem [shape: f32[2,64,32], index: 14, kind: input, shape index: {}]
  %s15 = inlined_call_operand.vmem [shape: f32[2,1,32], index: 15, kind: input, shape index: {}]
  %s16 = inlined_call_operand.vmem [shape: f32[32,32], index: 16, kind: input, shape index: {}]
  %s17 = inlined_call_operand.vmem [shape: f32[1,32], index: 17, kind: input, shape index: {}]
  %s18 = inlined_call_operand.vmem [shape: f32[32,128], index: 18, kind: input, shape index: {}]
  %s19 = inlined_call_operand.vmem [shape: f32[1,128], index: 19, kind: input, shape index: {}]
  %s20 = inlined_call_operand.vmem [shape: f32[32,32], index: 20, kind: input, shape index: {}]
  %s21 = inlined_call_operand.vmem [shape: f32[1,32], index: 21, kind: input, shape index: {}]
  %s22 = inlined_call_operand.vmem [shape: f32[1,32], index: 22, kind: input, shape index: {}]
  %s23 = inlined_call_operand.vmem [shape: f32[1,32], index: 23, kind: input, shape index: {}]
  %s24 = inlined_call_operand.vmem [shape: f32[32,128], index: 24, kind: input, shape index: {}]
  %s25 = inlined_call_operand.vmem [shape: f32[1,128], index: 25, kind: input, shape index: {}]
  %s26 = inlined_call_operand.vmem [shape: f32[2,8,128], index: 26, kind: output, shape index: {0}]
  %s27 = inlined_call_operand.vmem [shape: f32[2,8,128], index: 27, kind: output, shape index: {1}]
  %28 = xla_tuple %s26, %s27
  %s29 = sld [smem:[#allocation0]]
  $region145: #{bert_forward.1} parent=0
    _
  %s31 = ssub.s32 1, %s29
  %s32 = scalar_select 0, %s31, %s29
  loop: start=0, step=1, limit=4
  $region2: #{bert_forward.1} parent=0 // loop_pre_header
    _
  $region3: #{bert_forward.1} parent=0 // loop_header
    %s34 = sphi 0, %s38
    %p35 = scmp.ge.s32.totalorder %s34, 4
    %s44 = sphi 0, %s46
    %s47 = sphi 0, %s44
    %s48 = sphi 0, %s47
    %s64 = sphi 0, %s48
    %s70 = sphi 0, %s72
    %s73 = sphi 0, %s70
    %s74 = sphi 0, %s73
    %s90 = sphi 0, %s74
    %s96 = sphi 0, %s98
    %s99 = sphi 0, %s96
    %s100 = sphi 0, %s99
    %s116 = sphi 0, %s100
    %s122 = sphi 0, %s124
    %s125 = sphi 0, %s122
    %s126 = sphi 0, %s125
    %s142 = sphi 0, %s126
    %s146 = sphi 0, %s146
    %s148 = sphi 0, %s146
    %s149 = sphi 0, %s148
    %s163 = sphi 0, %s149
    %s167 = sphi 0, %s167
    %s169 = sphi 0, %s167
    %s170 = sphi 0, %s169
    %s184 = sphi 0, %s170
    %s188 = sphi 0, %s188
    %s190 = sphi 0, %s188
    %s191 = sphi 0, %s190
    %s205 = sphi 0, %s191
    %s209 = sphi 0, %s209
    %s211 = sphi 0, %s209
    %s212 = sphi 0, %s211
    %s226 = sphi 0, %s212
    %s230 = sphi 0, %s230
    %s232 = sphi 0, %s230
    %s233 = sphi 0, %s232
    %s247 = sphi 0, %s233
    %s251 = sphi 0, %s251
    %s253 = sphi 0, %s251
    %s254 = sphi 0, %s253
    %s268 = sphi 0, %s254
    %s272 = sphi 0, %s272
    %s274 = sphi 0, %s272
    %s275 = sphi 0, %s274
    %s289 = sphi 0, %s275
    %s293 = sphi 0, %s293
    %s295 = sphi 0, %s293
    %s296 = sphi 0, %s295
    %s310 = sphi 0, %s296
    %s314 = sphi 0, %s314
    %s316 = sphi 0, %s314
    %s317 = sphi 0, %s316
    %s331 = sphi 0, %s317
    %s335 = sphi 0, %s335
    %s337 = sphi 0, %s335
    %s338 = sphi 0, %s337
    %s352 = sphi 0, %s338
    %s356 = sphi 0, %s356
    %s358 = sphi 0, %s356
    %s359 = sphi 0, %s358
    %s373 = sphi 0, %s359
    %s377 = sphi 0, %s377
    %s379 = sphi 0, %s377
    %s380 = sphi 0, %s379
    %s394 = sphi 0, %s380
    %s398 = sphi 0, %s398
    %s400 = sphi 0, %s398
    %s401 = sphi 0, %s400
    %s415 = sphi 0, %s401
    %s419 = sphi 0, %s419
    %s421 = sphi 0, %s419
    %s422 = sphi 0, %s421
    %s436 = sphi 0, %s422
    %s440 = sphi 0, %s440
    %s442 = sphi 0, %s440
    %s443 = sphi 0, %s442
    %s457 = sphi 0, %s443
    %s461 = sphi 0, %s461
    %s463 = sphi 0, %s461
    %s464 = sphi 0, %s463
    %s478 = sphi 0, %s464
    %s482 = sphi 0, %s482
    %s484 = sphi 0, %s482
    %s485 = sphi 0, %s484
    %s499 = sphi 0, %s485
    %s503 = sphi 0, %s503
    %s505 = sphi 0, %s503
    %s506 = sphi 0, %s505
    %s520 = sphi 0, %s506
    %s524 = sphi 0, %s524
    %s526 = sphi 0, %s524
    %s527 = sphi 0, %s526
    %s541 = sphi 0, %s527
    %s545 = sphi 0, %s545
    %s547 = sphi 0, %s545
    %s548 = sphi 0, %s547
    %s562 = sphi 0, %s548
    %s566 = sphi 0, %s566
    %s568 = sphi 0, %s566
    %s569 = sphi 0, %s568
    %s583 = sphi 0, %s569
    %s587 = sphi 0, %s587
    %s589 = sphi 0, %s587
    %s590 = sphi 0, %s589
    %s604 = sphi 0, %s590
    %s610 = sphi 0, %s612
    %s613 = sphi 0, %s610
    %s614 = sphi 0, %s613
    %s630 = sphi 0, %s614
    %s636 = sphi 0, %s638
    %s639 = sphi 0, %s636
    %s640 = sphi 0, %s639
    %s656 = sphi 0, %s640
  $region4: #{bert_forward.1} parent=0 // loop_header_branch
    %37 = sbr.rel (%p35) target = $region8
  $region5: #{bert_forward.1} parent=0 // loop_body
    %s39 = ssub.s32 %s34, 1
    %s40 = ssub.s32 %s34, 2
    %s41 = sadd.s32 %s34, 1
    %s42 = ssub.s32 %s34, %s41
    %p43 = scmp.eq.s32.totalorder %s42, 0
    %s45 = sadd.s32 %s44, 1
    %s46 = scalar_select %p43, %s44, %s45
    %p49 = pneg %p43
    %p50 = scmp.eq.s32.totalorder %s34, 1
    %p51 = por %p49, %p50
    %p52 = scmp.ne.s32.totalorder %s44, %s47
    %p53 = scmp.eq.s32.totalorder %s34, 0
    %p54 = por %p52, %p53
    %p55 = scmp.ne.s32.totalorder %s44, %s47
    %p56 = scmp.eq.s32.totalorder %s39, 1
    %p57 = por %p55, %p56
    %p58 = scmp.ne.s32.totalorder %s47, %s48
    %p59 = scmp.eq.s32.totalorder %s39, 0
    %p60 = por %p58, %p59
    %p61 = scmp.ne.s32.totalorder %s47, %s48
    %p62 = scmp.eq.s32.totalorder %s40, 1
    %p63 = por %p61, %p62
    %p65 = scmp.ne.s32.totalorder %s48, %s64
    %p66 = scmp.eq.s32.totalorder %s40, 0
    %p67 = por %p65, %p66
    %s68 = ssub.s32 %s34, %s41
    %p69 = scmp.eq.s32.totalorder %s68, 0
    %s71 = sadd.s32 %s70, 1
    %s72 = scalar_select %p69, %s70, %s71
    %p75 = pneg %p69
    %p76 = scmp.eq.s32.totalorder %s34, 1
    %p77 = por %p75, %p76
    %p78 = scmp.ne.s32.totalorder %s70, %s73
    %p79 = scmp.eq.s32.totalorder %s34, 0
    %p80 = por %p78, %p79
    %p81 = scmp.ne.s32.totalorder %s70, %s73
    %p82 = scmp.eq.s32.totalorder %s39, 1
    %p83 = por %p81, %p82
    %p84 = scmp.ne.s32.totalorder %s73, %s74
    %p85 = scmp.eq.s32.totalorder %s39, 0
    %p86 = por %p84, %p85
    %p87 = scmp.ne.s32.totalorder %s73, %s74
    %p88 = scmp.eq.s32.totalorder %s40, 1
    %p89 = por %p87, %p88
    %p91 = scmp.ne.s32.totalorder %s74, %s90
    %p92 = scmp.eq.s32.totalorder %s40, 0
    %p93 = por %p91, %p92
    %s94 = ssub.s32 %s34, %s41
    %p95 = scmp.eq.s32.totalorder %s94, 0
    %s97 = sadd.s32 %s96, 1
    %s98 = scalar_select %p95, %s96, %s97
    %p101 = pneg %p95
    %p102 = scmp.eq.s32.totalorder %s34, 1
    %p103 = por %p101, %p102
    %p104 = scmp.ne.s32.totalorder %s96, %s99
    %p105 = scmp.eq.s32.totalorder %s34, 0
    %p106 = por %p104, %p105
    %p107 = scmp.ne.s32.totalorder %s96, %s99
    %p108 = scmp.eq.s32.totalorder %s39, 1
    %p109 = por %p107, %p108
    %p110 = scmp.ne.s32.totalorder %s99, %s100
    %p111 = scmp.eq.s32.totalorder %s39, 0
    %p112 = por %p110, %p111
    %p113 = scmp.ne.s32.totalorder %s99, %s100
    %p114 = scmp.eq.s32.totalorder %s40, 1
    %p115 = por %p113, %p114
    %p117 = scmp.ne.s32.totalorder %s100, %s116
    %p118 = scmp.eq.s32.totalorder %s40, 0
    %p119 = por %p117, %p118
    %s120 = ssub.s32 %s34, %s41
    %p121 = scmp.eq.s32.totalorder %s120, 0
    %s123 = sadd.s32 %s122, 1
    %s124 = scalar_select %p121, %s122, %s123
    %p127 = pneg %p121
    %p128 = scmp.eq.s32.totalorder %s34, 1
    %p129 = por %p127, %p128
    %p130 = scmp.ne.s32.totalorder %s122, %s125
    %p131 = scmp.eq.s32.totalorder %s34, 0
    %p132 = por %p130, %p131
    %p133 = scmp.ne.s32.totalorder %s122, %s125
    %p134 = scmp.eq.s32.totalorder %s39, 1
    %p135 = por %p133, %p134
    %p136 = scmp.ne.s32.totalorder %s125, %s126
    %p137 = scmp.eq.s32.totalorder %s39, 0
    %p138 = por %p136, %p137
    %p139 = scmp.ne.s32.totalorder %s125, %s126
    %p140 = scmp.eq.s32.totalorder %s40, 1
    %p141 = por %p139, %p140
    %p143 = scmp.ne.s32.totalorder %s126, %s142
    %p144 = scmp.eq.s32.totalorder %s40, 0
    %p145 = por %p143, %p144
    %s147 = sadd.s32 %s146, 1
    %p150 = scmp.eq.s32.totalorder %s34, 1
    %p151 = scmp.ne.s32.totalorder %s146, %s148
    %p152 = scmp.eq.s32.totalorder %s34, 0
    %p153 = por %p151, %p152
    %p154 = scmp.ne.s32.totalorder %s146, %s148
    %p155 = scmp.eq.s32.totalorder %s39, 1
    %p156 = por %p154, %p155
    %p157 = scmp.ne.s32.totalorder %s148, %s149
    %p158 = scmp.eq.s32.totalorder %s39, 0
    %p159 = por %p157, %p158
    %p160 = scmp.ne.s32.totalorder %s148, %s149
    %p161 = scmp.eq.s32.totalorder %s40, 1
    %p162 = por %p160, %p161
    %p164 = scmp.ne.s32.totalorder %s149, %s163
    %p165 = scmp.eq.s32.totalorder %s40, 0
    %p166 = por %p164, %p165
    %s168 = sadd.s32 %s167, 1
    %p171 = scmp.eq.s32.totalorder %s34, 1
    %p172 = scmp.ne.s32.totalorder %s167, %s169
    %p173 = scmp.eq.s32.totalorder %s34, 0
    %p174 = por %p172, %p173
    %p175 = scmp.ne.s32.totalorder %s167, %s169
    %p176 = scmp.eq.s32.totalorder %s39, 1
    %p177 = por %p175, %p176
    %p178 = scmp.ne.s32.totalorder %s169, %s170
    %p179 = scmp.eq.s32.totalorder %s39, 0
    %p180 = por %p178, %p179
    %p181 = scmp.ne.s32.totalorder %s169, %s170
    %p182 = scmp.eq.s32.totalorder %s40, 1
    %p183 = por %p181, %p182
    %p185 = scmp.ne.s32.totalorder %s170, %s184
    %p186 = scmp.eq.s32.totalorder %s40, 0
    %p187 = por %p185, %p186
    %s189 = sadd.s32 %s188, 1
    %p192 = scmp.eq.s32.totalorder %s34, 1
    %p193 = scmp.ne.s32.totalorder %s188, %s190
    %p194 = scmp.eq.s32.totalorder %s34, 0
    %p195 = por %p193, %p194
    %p196 = scmp.ne.s32.totalorder %s188, %s190
    %p197 = scmp.eq.s32.totalorder %s39, 1
    %p198 = por %p196, %p197
    %p199 = scmp.ne.s32.totalorder %s190, %s191
    %p200 = scmp.eq.s32.totalorder %s39, 0
    %p201 = por %p199, %p200
    %p202 = scmp.ne.s32.totalorder %s190, %s191
    %p203 = scmp.eq.s32.totalorder %s40, 1
    %p204 = por %p202, %p203
    %p206 = scmp.ne.s32.totalorder %s191, %s205
    %p207 = scmp.eq.s32.totalorder %s40, 0
    %p208 = por %p206, %p207
    %s210 = sadd.s32 %s209, 1
    %p213 = scmp.eq.s32.totalorder %s34, 1
    %p214 = scmp.ne.s32.totalorder %s209, %s211
    %p215 = scmp.eq.s32.totalorder %s34, 0
    %p216 = por %p214, %p215
    %p217 = scmp.ne.s32.totalorder %s209, %s211
    %p218 = scmp.eq.s32.totalorder %s39, 1
    %p219 = por %p217, %p218
    %p220 = scmp.ne.s32.totalorder %s211, %s212
    %p221 = scmp.eq.s32.totalorder %s39, 0
    %p222 = por %p220, %p221
    %p223 = scmp.ne.s32.totalorder %s211, %s212
    %p224 = scmp.eq.s32.totalorder %s40, 1
    %p225 = por %p223, %p224
    %p227 = scmp.ne.s32.totalorder %s212, %s226
    %p228 = scmp.eq.s32.totalorder %s40, 0
    %p229 = por %p227, %p228
    %s231 = sadd.s32 %s230, 1
    %p234 = scmp.eq.s32.totalorder %s34, 1
    %p235 = scmp.ne.s32.totalorder %s230, %s232
    %p236 = scmp.eq.s32.totalorder %s34, 0
    %p237 = por %p235, %p236
    %p238 = scmp.ne.s32.totalorder %s230, %s232
    %p239 = scmp.eq.s32.totalorder %s39, 1
    %p240 = por %p238, %p239
    %p241 = scmp.ne.s32.totalorder %s232, %s233
    %p242 = scmp.eq.s32.totalorder %s39, 0
    %p243 = por %p241, %p242
    %p244 = scmp.ne.s32.totalorder %s232, %s233
    %p245 = scmp.eq.s32.totalorder %s40, 1
    %p246 = por %p244, %p245
    %p248 = scmp.ne.s32.totalorder %s233, %s247
    %p249 = scmp.eq.s32.totalorder %s40, 0
    %p250 = por %p248, %p249
    %s252 = sadd.s32 %s251, 1
    %p255 = scmp.eq.s32.totalorder %s34, 1
    %p256 = scmp.ne.s32.totalorder %s251, %s253
    %p257 = scmp.eq.s32.totalorder %s34, 0
    %p258 = por %p256, %p257
    %p259 = scmp.ne.s32.totalorder %s251, %s253
    %p260 = scmp.eq.s32.totalorder %s39, 1
    %p261 = por %p259, %p260
    %p262 = scmp.ne.s32.totalorder %s253, %s254
    %p263 = scmp.eq.s32.totalorder %s39, 0
    %p264 = por %p262, %p263
    %p265 = scmp.ne.s32.totalorder %s253, %s254
    %p266 = scmp.eq.s32.totalorder %s40, 1
    %p267 = por %p265, %p266
    %p269 = scmp.ne.s32.totalorder %s254, %s268
    %p270 = scmp.eq.s32.totalorder %s40, 0
    %p271 = por %p269, %p270
    %s273 = sadd.s32 %s272, 1
    %p276 = scmp.eq.s32.totalorder %s34, 1
    %p277 = scmp.ne.s32.totalorder %s272, %s274
    %p278 = scmp.eq.s32.totalorder %s34, 0
    %p279 = por %p277, %p278
    %p280 = scmp.ne.s32.totalorder %s272, %s274
    %p281 = scmp.eq.s32.totalorder %s39, 1
    %p282 = por %p280, %p281
    %p283 = scmp.ne.s32.totalorder %s274, %s275
    %p284 = scmp.eq.s32.totalorder %s39, 0
    %p285 = por %p283, %p284
    %p286 = scmp.ne.s32.totalorder %s274, %s275
    %p287 = scmp.eq.s32.totalorder %s40, 1
    %p288 = por %p286, %p287
    %p290 = scmp.ne.s32.totalorder %s275, %s289
    %p291 = scmp.eq.s32.totalorder %s40, 0
    %p292 = por %p290, %p291
    %s294 = sadd.s32 %s293, 1
    %p297 = scmp.eq.s32.totalorder %s34, 1
    %p298 = scmp.ne.s32.totalorder %s293, %s295
    %p299 = scmp.eq.s32.totalorder %s34, 0
    %p300 = por %p298, %p299
    %p301 = scmp.ne.s32.totalorder %s293, %s295
    %p302 = scmp.eq.s32.totalorder %s39, 1
    %p303 = por %p301, %p302
    %p304 = scmp.ne.s32.totalorder %s295, %s296
    %p305 = scmp.eq.s32.totalorder %s39, 0
    %p306 = por %p304, %p305
    %p307 = scmp.ne.s32.totalorder %s295, %s296
    %p308 = scmp.eq.s32.totalorder %s40, 1
    %p309 = por %p307, %p308
    %p311 = scmp.ne.s32.totalorder %s296, %s310
    %p312 = scmp.eq.s32.totalorder %s40, 0
    %p313 = por %p311, %p312
    %s315 = sadd.s32 %s314, 1
    %p318 = scmp.eq.s32.totalorder %s34, 1
    %p319 = scmp.ne.s32.totalorder %s314, %s316
    %p320 = scmp.eq.s32.totalorder %s34, 0
    %p321 = por %p319, %p320
    %p322 = scmp.ne.s32.totalorder %s314, %s316
    %p323 = scmp.eq.s32.totalorder %s39, 1
    %p324 = por %p322, %p323
    %p325 = scmp.ne.s32.totalorder %s316, %s317
    %p326 = scmp.eq.s32.totalorder %s39, 0
    %p327 = por %p325, %p326
    %p328 = scmp.ne.s32.totalorder %s316, %s317
    %p329 = scmp.eq.s32.totalorder %s40, 1
    %p330 = por %p328, %p329
    %p332 = scmp.ne.s32.totalorder %s317, %s331
    %p333 = scmp.eq.s32.totalorder %s40, 0
    %p334 = por %p332, %p333
    %s336 = sadd.s32 %s335, 1
    %p339 = scmp.eq.s32.totalorder %s34, 1
    %p340 = scmp.ne.s32.totalorder %s335, %s337
    %p341 = scmp.eq.s32.totalorder %s34, 0
    %p342 = por %p340, %p341
    %p343 = scmp.ne.s32.totalorder %s335, %s337
    %p344 = scmp.eq.s32.totalorder %s39, 1
    %p345 = por %p343, %p344
    %p346 = scmp.ne.s32.totalorder %s337, %s338
    %p347 = scmp.eq.s32.totalorder %s39, 0
    %p348 = por %p346, %p347
    %p349 = scmp.ne.s32.totalorder %s337, %s338
    %p350 = scmp.eq.s32.totalorder %s40, 1
    %p351 = por %p349, %p350
    %p353 = scmp.ne.s32.totalorder %s338, %s352
    %p354 = scmp.eq.s32.totalorder %s40, 0
    %p355 = por %p353, %p354
    %s357 = sadd.s32 %s356, 1
    %p360 = scmp.eq.s32.totalorder %s34, 1
    %p361 = scmp.ne.s32.totalorder %s356, %s358
    %p362 = scmp.eq.s32.totalorder %s34, 0
    %p363 = por %p361, %p362
    %p364 = scmp.ne.s32.totalorder %s356, %s358
    %p365 = scmp.eq.s32.totalorder %s39, 1
    %p366 = por %p364, %p365
    %p367 = scmp.ne.s32.totalorder %s358, %s359
    %p368 = scmp.eq.s32.totalorder %s39, 0
    %p369 = por %p367, %p368
    %p370 = scmp.ne.s32.totalorder %s358, %s359
    %p371 = scmp.eq.s32.totalorder %s40, 1
    %p372 = por %p370, %p371
    %p374 = scmp.ne.s32.totalorder %s359, %s373
    %p375 = scmp.eq.s32.totalorder %s40, 0
    %p376 = por %p374, %p375
    %s378 = sadd.s32 %s377, 1
    %p381 = scmp.eq.s32.totalorder %s34, 1
    %p382 = scmp.ne.s32.totalorder %s377, %s379
    %p383 = scmp.eq.s32.totalorder %s34, 0
    %p384 = por %p382, %p383
    %p385 = scmp.ne.s32.totalorder %s377, %s379
    %p386 = scmp.eq.s32.totalorder %s39, 1
    %p387 = por %p385, %p386
    %p388 = scmp.ne.s32.totalorder %s379, %s380
    %p389 = scmp.eq.s32.totalorder %s39, 0
    %p390 = por %p388, %p389
    %p391 = scmp.ne.s32.totalorder %s379, %s380
    %p392 = scmp.eq.s32.totalorder %s40, 1
    %p393 = por %p391, %p392
    %p395 = scmp.ne.s32.totalorder %s380, %s394
    %p396 = scmp.eq.s32.totalorder %s40, 0
    %p397 = por %p395, %p396
    %s399 = sadd.s32 %s398, 1
    %p402 = scmp.eq.s32.totalorder %s34, 1
    %p403 = scmp.ne.s32.totalorder %s398, %s400
    %p404 = scmp.eq.s32.totalorder %s34, 0
    %p405 = por %p403, %p404
    %p406 = scmp.ne.s32.totalorder %s398, %s400
    %p407 = scmp.eq.s32.totalorder %s39, 1
    %p408 = por %p406, %p407
    %p409 = scmp.ne.s32.totalorder %s400, %s401
    %p410 = scmp.eq.s32.totalorder %s39, 0
    %p411 = por %p409, %p410
    %p412 = scmp.ne.s32.totalorder %s400, %s401
    %p413 = scmp.eq.s32.totalorder %s40, 1
    %p414 = por %p412, %p413
    %p416 = scmp.ne.s32.totalorder %s401, %s415
    %p417 = scmp.eq.s32.totalorder %s40, 0
    %p418 = por %p416, %p417
    %s420 = sadd.s32 %s419, 1
    %p423 = scmp.eq.s32.totalorder %s34, 1
    %p424 = scmp.ne.s32.totalorder %s419, %s421
    %p425 = scmp.eq.s32.totalorder %s34, 0
    %p426 = por %p424, %p425
    %p427 = scmp.ne.s32.totalorder %s419, %s421
    %p428 = scmp.eq.s32.totalorder %s39, 1
    %p429 = por %p427, %p428
    %p430 = scmp.ne.s32.totalorder %s421, %s422
    %p431 = scmp.eq.s32.totalorder %s39, 0
    %p432 = por %p430, %p431
    %p433 = scmp.ne.s32.totalorder %s421, %s422
    %p434 = scmp.eq.s32.totalorder %s40, 1
    %p435 = por %p433, %p434
    %p437 = scmp.ne.s32.totalorder %s422, %s436
    %p438 = scmp.eq.s32.totalorder %s40, 0
    %p439 = por %p437, %p438
    %s441 = sadd.s32 %s440, 1
    %p444 = scmp.eq.s32.totalorder %s34, 1
    %p445 = scmp.ne.s32.totalorder %s440, %s442
    %p446 = scmp.eq.s32.totalorder %s34, 0
    %p447 = por %p445, %p446
    %p448 = scmp.ne.s32.totalorder %s440, %s442
    %p449 = scmp.eq.s32.totalorder %s39, 1
    %p450 = por %p448, %p449
    %p451 = scmp.ne.s32.totalorder %s442, %s443
    %p452 = scmp.eq.s32.totalorder %s39, 0
    %p453 = por %p451, %p452
    %p454 = scmp.ne.s32.totalorder %s442, %s443
    %p455 = scmp.eq.s32.totalorder %s40, 1
    %p456 = por %p454, %p455
    %p458 = scmp.ne.s32.totalorder %s443, %s457
    %p459 = scmp.eq.s32.totalorder %s40, 0
    %p460 = por %p458, %p459
    %s462 = sadd.s32 %s461, 1
    %p465 = scmp.eq.s32.totalorder %s34, 1
    %p466 = scmp.ne.s32.totalorder %s461, %s463
    %p467 = scmp.eq.s32.totalorder %s34, 0
    %p468 = por %p466, %p467
    %p469 = scmp.ne.s32.totalorder %s461, %s463
    %p470 = scmp.eq.s32.totalorder %s39, 1
    %p471 = por %p469, %p470
    %p472 = scmp.ne.s32.totalorder %s463, %s464
    %p473 = scmp.eq.s32.totalorder %s39, 0
    %p474 = por %p472, %p473
    %p475 = scmp.ne.s32.totalorder %s463, %s464
    %p476 = scmp.eq.s32.totalorder %s40, 1
    %p477 = por %p475, %p476
    %p479 = scmp.ne.s32.totalorder %s464, %s478
    %p480 = scmp.eq.s32.totalorder %s40, 0
    %p481 = por %p479, %p480
    %s483 = sadd.s32 %s482, 1
    %p486 = scmp.eq.s32.totalorder %s34, 1
    %p487 = scmp.ne.s32.totalorder %s482, %s484
    %p488 = scmp.eq.s32.totalorder %s34, 0
    %p489 = por %p487, %p488
    %p490 = scmp.ne.s32.totalorder %s482, %s484
    %p491 = scmp.eq.s32.totalorder %s39, 1
    %p492 = por %p490, %p491
    %p493 = scmp.ne.s32.totalorder %s484, %s485
    %p494 = scmp.eq.s32.totalorder %s39, 0
    %p495 = por %p493, %p494
    %p496 = scmp.ne.s32.totalorder %s484, %s485
    %p497 = scmp.eq.s32.totalorder %s40, 1
    %p498 = por %p496, %p497
    %p500 = scmp.ne.s32.totalorder %s485, %s499
    %p501 = scmp.eq.s32.totalorder %s40, 0
    %p502 = por %p500, %p501
    %s504 = sadd.s32 %s503, 1
    %p507 = scmp.eq.s32.totalorder %s34, 1
    %p508 = scmp.ne.s32.totalorder %s503, %s505
    %p509 = scmp.eq.s32.totalorder %s34, 0
    %p510 = por %p508, %p509
    %p511 = scmp.ne.s32.totalorder %s503, %s505
    %p512 = scmp.eq.s32.totalorder %s39, 1
    %p513 = por %p511, %p512
    %p514 = scmp.ne.s32.totalorder %s505, %s506
    %p515 = scmp.eq.s32.totalorder %s39, 0
    %p516 = por %p514, %p515
    %p517 = scmp.ne.s32.totalorder %s505, %s506
    %p518 = scmp.eq.s32.totalorder %s40, 1
    %p519 = por %p517, %p518
    %p521 = scmp.ne.s32.totalorder %s506, %s520
    %p522 = scmp.eq.s32.totalorder %s40, 0
    %p523 = por %p521, %p522
    %s525 = sadd.s32 %s524, 1
    %p528 = scmp.eq.s32.totalorder %s34, 1
    %p529 = scmp.ne.s32.totalorder %s524, %s526
    %p530 = scmp.eq.s32.totalorder %s34, 0
    %p531 = por %p529, %p530
    %p532 = scmp.ne.s32.totalorder %s524, %s526
    %p533 = scmp.eq.s32.totalorder %s39, 1
    %p534 = por %p532, %p533
    %p535 = scmp.ne.s32.totalorder %s526, %s527
    %p536 = scmp.eq.s32.totalorder %s39, 0
    %p537 = por %p535, %p536
    %p538 = scmp.ne.s32.totalorder %s526, %s527
    %p539 = scmp.eq.s32.totalorder %s40, 1
    %p540 = por %p538, %p539
    %p542 = scmp.ne.s32.totalorder %s527, %s541
    %p543 = scmp.eq.s32.totalorder %s40, 0
    %p544 = por %p542, %p543
    %s546 = sadd.s32 %s545, 1
    %p549 = scmp.eq.s32.totalorder %s34, 1
    %p550 = scmp.ne.s32.totalorder %s545, %s547
    %p551 = scmp.eq.s32.totalorder %s34, 0
    %p552 = por %p550, %p551
    %p553 = scmp.ne.s32.totalorder %s545, %s547
    %p554 = scmp.eq.s32.totalorder %s39, 1
    %p555 = por %p553, %p554
    %p556 = scmp.ne.s32.totalorder %s547, %s548
    %p557 = scmp.eq.s32.totalorder %s39, 0
    %p558 = por %p556, %p557
    %p559 = scmp.ne.s32.totalorder %s547, %s548
    %p560 = scmp.eq.s32.totalorder %s40, 1
    %p561 = por %p559, %p560
    %p563 = scmp.ne.s32.totalorder %s548, %s562
    %p564 = scmp.eq.s32.totalorder %s40, 0
    %p565 = por %p563, %p564
    %s567 = sadd.s32 %s566, 1
    %p570 = scmp.eq.s32.totalorder %s34, 1
    %p571 = scmp.ne.s32.totalorder %s566, %s568
    %p572 = scmp.eq.s32.totalorder %s34, 0
    %p573 = por %p571, %p572
    %p574 = scmp.ne.s32.totalorder %s566, %s568
    %p575 = scmp.eq.s32.totalorder %s39, 1
    %p576 = por %p574, %p575
    %p577 = scmp.ne.s32.totalorder %s568, %s569
    %p578 = scmp.eq.s32.totalorder %s39, 0
    %p579 = por %p577, %p578
    %p580 = scmp.ne.s32.totalorder %s568, %s569
    %p581 = scmp.eq.s32.totalorder %s40, 1
    %p582 = por %p580, %p581
    %p584 = scmp.ne.s32.totalorder %s569, %s583
    %p585 = scmp.eq.s32.totalorder %s40, 0
    %p586 = por %p584, %p585
    %s588 = sadd.s32 %s587, 1
    %p591 = scmp.eq.s32.totalorder %s34, 1
    %p592 = scmp.ne.s32.totalorder %s587, %s589
    %p593 = scmp.eq.s32.totalorder %s34, 0
    %p594 = por %p592, %p593
    %p595 = scmp.ne.s32.totalorder %s587, %s589
    %p596 = scmp.eq.s32.totalorder %s39, 1
    %p597 = por %p595, %p596
    %p598 = scmp.ne.s32.totalorder %s589, %s590
    %p599 = scmp.eq.s32.totalorder %s39, 0
    %p600 = por %p598, %p599
    %p601 = scmp.ne.s32.totalorder %s589, %s590
    %p602 = scmp.eq.s32.totalorder %s40, 1
    %p603 = por %p601, %p602
    %p605 = scmp.ne.s32.totalorder %s590, %s604
    %p606 = scmp.eq.s32.totalorder %s40, 0
    %p607 = por %p605, %p606
    %s608 = ssub.s32 %s34, %s41
    %p609 = scmp.eq.s32.totalorder %s608, 0
    %s611 = sadd.s32 %s610, 1
    %s612 = scalar_select %p609, %s610, %s611
    %p615 = pneg %p609
    %p616 = scmp.eq.s32.totalorder %s34, 1
    %p617 = por %p615, %p616
    %p618 = scmp.ne.s32.totalorder %s610, %s613
    %p619 = scmp.eq.s32.totalorder %s34, 0
    %p620 = por %p618, %p619
    %p621 = scmp.ne.s32.totalorder %s610, %s613
    %p622 = scmp.eq.s32.totalorder %s39, 1
    %p623 = por %p621, %p622
    %p624 = scmp.ne.s32.totalorder %s613, %s614
    %p625 = scmp.eq.s32.totalorder %s39, 0
    %p626 = por %p624, %p625
    %p627 = scmp.ne.s32.totalorder %s613, %s614
    %p628 = scmp.eq.s32.totalorder %s40, 1
    %p629 = por %p627, %p628
    %p631 = scmp.ne.s32.totalorder %s614, %s630
    %p632 = scmp.eq.s32.totalorder %s40, 0
    %p633 = por %p631, %p632
    %s634 = ssub.s32 %s34, %s41
    %p635 = scmp.eq.s32.totalorder %s634, 0
    %s637 = sadd.s32 %s636, 1
    %s638 = scalar_select %p635, %s636, %s637
    %p641 = pneg %p635
    %p642 = scmp.eq.s32.totalorder %s34, 1
    %p643 = por %p641, %p642
    %p644 = scmp.ne.s32.totalorder %s636, %s639
    %p645 = scmp.eq.s32.totalorder %s34, 0
    %p646 = por %p644, %p645
    %p647 = scmp.ne.s32.totalorder %s636, %s639
    %p648 = scmp.eq.s32.totalorder %s39, 1
    %p649 = por %p647, %p648
    %p650 = scmp.ne.s32.totalorder %s639, %s640
    %p651 = scmp.eq.s32.totalorder %s39, 0
    %p652 = por %p650, %p651
    %p653 = scmp.ne.s32.totalorder %s639, %s640
    %p654 = scmp.eq.s32.totalorder %s40, 1
    %p655 = por %p653, %p654
    %p657 = scmp.ne.s32.totalorder %s640, %s656
    %p658 = scmp.eq.s32.totalorder %s40, 0
    %p659 = por %p657, %p658
    %p660 = scmp.le.s32.totalorder 1, %s34
    %p661 = scmp.lt.s32.totalorder %s34, 3
    %p662 = pnand %p660, %p661
    %p663 = pneg %p662
    // Predicated region
    $region9: #{bert_forward.1} parent=5 // pred_check
      _
    $region10: #{bert_forward.1} parent=5 // pred_check_branch
      %665 = sbr.rel (%p662) target = $region12
    $region11: #{bert_forward.1} parent=5 // pred_region
      %s666 = ssub.s32 %s34, 1
      // Predicated region
      $region13: #{bert_forward.1} parent=11 // pred_check
        %p667 = pneg %p159
      $region14: #{bert_forward.1} parent=11 // pred_check_branch
        %669 = sbr.rel (%p667) target = $region16
      $region15: #{bert_forward.1} parent=11 // pred_region
        _
      $region16: #{bert_forward.1} parent=11 // pred_fallthru
        _
      // Predicated region
      $region17: #{bert_forward.1} parent=11 // pred_check
        %p670 = pneg %p180
      $region18: #{bert_forward.1} parent=11 // pred_check_branch
        %672 = sbr.rel (%p670) target = $region20
      $region19: #{bert_forward.1} parent=11 // pred_region
        _
      $region20: #{bert_forward.1} parent=11 // pred_fallthru
        _
      // Predicated region
      $region21: #{bert_forward.1} parent=11 // pred_check
        %p673 = pneg %p201
      $region22: #{bert_forward.1} parent=11 // pred_check_branch
        %675 = sbr.rel (%p673) target = $region24
      $region23: #{bert_forward.1} parent=11 // pred_region
        _
      $region24: #{bert_forward.1} parent=11 // pred_fallthru
        _
      // Predicated region
      $region25: #{bert_forward.1} parent=11 // pred_check
        %p676 = pneg %p222
      $region26: #{bert_forward.1} parent=11 // pred_check_branch
        %678 = sbr.rel (%p676) target = $region28
      $region27: #{bert_forward.1} parent=11 // pred_region
        _
      $region28: #{bert_forward.1} parent=11 // pred_fallthru
        _
      // Predicated region
      $region29: #{bert_forward.1} parent=11 // pred_check
        %p679 = pneg %p243
      $region30: #{bert_forward.1} parent=11 // pred_check_branch
        %681 = sbr.rel (%p679) target = $region32
      $region31: #{bert_forward.1} parent=11 // pred_region
        _
      $region32: #{bert_forward.1} parent=11 // pred_fallthru
        _
      // Predicated region
      $region33: #{bert_forward.1} parent=11 // pred_check
        %p682 = pneg %p264
      $region34: #{bert_forward.1} parent=11 // pred_check_branch
        %684 = sbr.rel (%p682) target = $region36
      $region35: #{bert_forward.1} parent=11 // pred_region
        _
      $region36: #{bert_forward.1} parent=11 // pred_fallthru
        _
      // Predicated region
      $region37: #{bert_forward.1} parent=11 // pred_check
        %p685 = pneg %p285
      $region38: #{bert_forward.1} parent=11 // pred_check_branch
        %687 = sbr.rel (%p685) target = $region40
      $region39: #{bert_forward.1} parent=11 // pred_region
        _
      $region40: #{bert_forward.1} parent=11 // pred_fallthru
        _
      // Predicated region
      $region41: #{bert_forward.1} parent=11 // pred_check
        %p688 = pneg %p306
      $region42: #{bert_forward.1} parent=11 // pred_check_branch
        %690 = sbr.rel (%p688) target = $region44
      $region43: #{bert_forward.1} parent=11 // pred_region
        _
      $region44: #{bert_forward.1} parent=11 // pred_fallthru
        _
      // Predicated region
      $region45: #{bert_forward.1} parent=11 // pred_check
        %p691 = pneg %p327
      $region46: #{bert_forward.1} parent=11 // pred_check_branch
        %693 = sbr.rel (%p691) target = $region48
      $region47: #{bert_forward.1} parent=11 // pred_region
        _
      $region48: #{bert_forward.1} parent=11 // pred_fallthru
        _
      // Predicated region
      $region49: #{bert_forward.1} parent=11 // pred_check
        %p694 = pneg %p348
      $region50: #{bert_forward.1} parent=11 // pred_check_branch
        %696 = sbr.rel (%p694) target = $region52
      $region51: #{bert_forward.1} parent=11 // pred_region
        _
      $region52: #{bert_forward.1} parent=11 // pred_fallthru
        _
      // Predicated region
      $region53: #{bert_forward.1} parent=11 // pred_check
        %p697 = pneg %p369
      $region54: #{bert_forward.1} parent=11 // pred_check_branch
        %699 = sbr.rel (%p697) target = $region56
      $region55: #{bert_forward.1} parent=11 // pred_region
        _
      $region56: #{bert_forward.1} parent=11 // pred_fallthru
        _
      // Predicated region
      $region57: #{bert_forward.1} parent=11 // pred_check
        %p700 = pneg %p390
      $region58: #{bert_forward.1} parent=11 // pred_check_branch
        %702 = sbr.rel (%p700) target = $region60
      $region59: #{bert_forward.1} parent=11 // pred_region
        _
      $region60: #{bert_forward.1} parent=11 // pred_fallthru
        _
      // Predicated region
      $region61: #{bert_forward.1} parent=11 // pred_check
        %p703 = pneg %p411
      $region62: #{bert_forward.1} parent=11 // pred_check_branch
        %705 = sbr.rel (%p703) target = $region64
      $region63: #{bert_forward.1} parent=11 // pred_region
        _
      $region64: #{bert_forward.1} parent=11 // pred_fallthru
        _
      // Predicated region
      $region65: #{bert_forward.1} parent=11 // pred_check
        %p706 = pneg %p432
      $region66: #{bert_forward.1} parent=11 // pred_check_branch
        %708 = sbr.rel (%p706) target = $region68
      $region67: #{bert_forward.1} parent=11 // pred_region
        _
      $region68: #{bert_forward.1} parent=11 // pred_fallthru
        _
      // Predicated region
      $region69: #{bert_forward.1} parent=11 // pred_check
        %p709 = pneg %p453
      $region70: #{bert_forward.1} parent=11 // pred_check_branch
        %711 = sbr.rel (%p709) target = $region72
      $region71: #{bert_forward.1} parent=11 // pred_region
        _
      $region72: #{bert_forward.1} parent=11 // pred_fallthru
        _
      // Predicated region
      $region73: #{bert_forward.1} parent=11 // pred_check
        %p712 = pneg %p474
      $region74: #{bert_forward.1} parent=11 // pred_check_branch
        %714 = sbr.rel (%p712) target = $region76
      $region75: #{bert_forward.1} parent=11 // pred_region
        _
      $region76: #{bert_forward.1} parent=11 // pred_fallthru
        _
      // Predicated region
      $region77: #{bert_forward.1} parent=11 // pred_check
        %p715 = pneg %p495
      $region78: #{bert_forward.1} parent=11 // pred_check_branch
        %717 = sbr.rel (%p715) target = $region80
      $region79: #{bert_forward.1} parent=11 // pred_region
        _
      $region80: #{bert_forward.1} parent=11 // pred_fallthru
        _
      // Predicated region
      $region81: #{bert_forward.1} parent=11 // pred_check
        %p718 = pneg %p516
      $region82: #{bert_forward.1} parent=11 // pred_check_branch
        %720 = sbr.rel (%p718) target = $region84
      $region83: #{bert_forward.1} parent=11 // pred_region
        _
      $region84: #{bert_forward.1} parent=11 // pred_fallthru
        _
      // Predicated region
      $region85: #{bert_forward.1} parent=11 // pred_check
        %p721 = pneg %p537
      $region86: #{bert_forward.1} parent=11 // pred_check_branch
        %723 = sbr.rel (%p721) target = $region88
      $region87: #{bert_forward.1} parent=11 // pred_region
        _
      $region88: #{bert_forward.1} parent=11 // pred_fallthru
        _
      // Predicated region
      $region89: #{bert_forward.1} parent=11 // pred_check
        %p724 = pneg %p558
      $region90: #{bert_forward.1} parent=11 // pred_check_branch
        %726 = sbr.rel (%p724) target = $region92
      $region91: #{bert_forward.1} parent=11 // pred_region
        _
      $region92: #{bert_forward.1} parent=11 // pred_fallthru
        _
      // Predicated region
      $region93: #{bert_forward.1} parent=11 // pred_check
        %p727 = pneg %p579
      $region94: #{bert_forward.1} parent=11 // pred_check_branch
        %729 = sbr.rel (%p727) target = $region96
      $region95: #{bert_forward.1} parent=11 // pred_region
        _
      $region96: #{bert_forward.1} parent=11 // pred_fallthru
        _
      // Predicated region
      $region97: #{bert_forward.1} parent=11 // pred_check
        %p730 = pneg %p600
      $region98: #{bert_forward.1} parent=11 // pred_check_branch
        %732 = sbr.rel (%p730) target = $region100
      $region99: #{bert_forward.1} parent=11 // pred_region
        _
      $region100: #{bert_forward.1} parent=11 // pred_fallthru
        _
    $region12: #{bert_forward.1} parent=5 // pred_fallthru
      _
    %p733 = scmp.lt.s32.totalorder %s34, 2
    // Predicated region
    $region101: #{bert_forward.1} parent=5 // pred_check
      %p734 = pneg %p733
    $region102: #{bert_forward.1} parent=5 // pred_check_branch
      %736 = sbr.rel (%p734) target = $region104
    $region103: #{bert_forward.1} parent=5 // pred_region
      // Predicated region
      $region105: #{bert_forward.1} parent=103 // pred_check
        %p737 = pneg %p54
      $region106: #{bert_forward.1} parent=103 // pred_check_branch
        %739 = sbr.rel (%p737) target = $region108
      $region107: #{bert_forward.1} parent=103 // pred_region
        %p740 = scmp.lt.s32.totalorder %s34, 1
        %s741 = scalar_select %p740, %s34, 1
        %s742 = smul.addr %s741, 8
        %s743 = scalar_lea.vmem %s0, %s742
      $region108: #{bert_forward.1} parent=103 // pred_fallthru
        _
      // Predicated region
      $region109: #{bert_forward.1} parent=103 // pred_check
        %p744 = pneg %p80
      $region110: #{bert_forward.1} parent=103 // pred_check_branch
        %746 = sbr.rel (%p744) target = $region112
      $region111: #{bert_forward.1} parent=103 // pred_region
        %p747 = scmp.lt.s32.totalorder %s34, 1
        %s748 = scalar_select %p747, %s34, 1
        %s749 = smul.addr %s748, 8
        %s750 = scalar_lea.vmem %s1, %s749
      $region112: #{bert_forward.1} parent=103 // pred_fallthru
        _
      // Predicated region
      $region113: #{bert_forward.1} parent=103 // pred_check
        %p751 = pneg %p106
      $region114: #{bert_forward.1} parent=103 // pred_check_branch
        %753 = sbr.rel (%p751) target = $region116
      $region115: #{bert_forward.1} parent=103 // pred_region
        %p754 = scmp.lt.s32.totalorder %s34, 1
        %s755 = scalar_select %p754, %s34, 1
        %s756 = smul.addr %s755, 8
        %s757 = scalar_lea.vmem %s2, %s756
      $region116: #{bert_forward.1} parent=103 // pred_fallthru
        _
      // Predicated region
      $region117: #{bert_forward.1} parent=103 // pred_check
        %p758 = pneg %p132
      $region118: #{bert_forward.1} parent=103 // pred_check_branch
        %760 = sbr.rel (%p758) target = $region120
      $region119: #{bert_forward.1} parent=103 // pred_region
        %p761 = scmp.lt.s32.totalorder %s34, 1
        %s762 = scalar_select %p761, %s34, 1
        %s763 = smul.addr %s762, 8
        %s764 = scalar_lea.vmem %s3, %s763
      $region120: #{bert_forward.1} parent=103 // pred_fallthru
        _
    $region104: #{bert_forward.1} parent=5 // pred_fallthru
      _
    %p765 = scmp.le.s32.totalorder 1, %s34
    %p766 = scmp.lt.s32.totalorder %s34, 3
    %p767 = pnand %p765, %p766
    %p768 = pneg %p767
    // Predicated region
    $region121: #{bert_forward.1} parent=5 // pred_check
      _
    $region122: #{bert_forward.1} parent=5 // pred_check_branch
      %770 = sbr.rel (%p767) target = $region124
    $region123: #{bert_forward.1} parent=5 // pred_region
      %s771 = ssub.s32 %s34, 1
      %p772 = scmp.lt.s32.totalorder %s39, 1
      %s773 = scalar_select %p772, %s39, 1
      %s774 = smul.addr %s773, 8
      %s775 = scalar_lea.vmem %s0, %s774
      %p776 = pneg %p60
      %p777 = pneg %p57
      %p778 = scmp.lt.s32.totalorder %s39, 1
      %s779 = scalar_select %p778, %s39, 1
      %s780 = smul.addr %s779, 8
      %s781 = scalar_lea.vmem %s1, %s780
      %p782 = pneg %p86
      %p783 = pneg %p83
      %p784 = scmp.lt.s32.totalorder %s39, 1
      %s785 = scalar_select %p784, %s39, 1
      %s786 = smul.addr %s785, 8
      %s787 = scalar_lea.vmem %s2, %s786
      %p788 = pneg %p112
      %p789 = pneg %p109
      %p790 = scmp.lt.s32.totalorder %s39, 1
      %s791 = scalar_select %p790, %s39, 1
      %s792 = smul.addr %s791, 8
      %s793 = scalar_lea.vmem %s3, %s792
      %p794 = pneg %p138
      %p795 = pneg %p135
      %p796 = pneg %p159
      %p797 = pneg %p156
      %p798 = pneg %p180
      %p799 = pneg %p177
      %p800 = pneg %p201
      %p801 = pneg %p198
      %p802 = pneg %p222
      %p803 = pneg %p219
      %p804 = pneg %p243
      %p805 = pneg %p240
      %p806 = pneg %p264
      %p807 = pneg %p261
      %p808 = pneg %p285
      %p809 = pneg %p282
      %p810 = pneg %p306
      %p811 = pneg %p303
      %p812 = pneg %p327
      %p813 = pneg %p324
      %p814 = pneg %p348
      %p815 = pneg %p345
      %p816 = pneg %p369
      %p817 = pneg %p366
      %p818 = pneg %p390
      %p819 = pneg %p387
      %p820 = pneg %p411
      %p821 = pneg %p408
      %p822 = pneg %p432
      %p823 = pneg %p429
      %p824 = pneg %p453
      %p825 = pneg %p450
      %p826 = pneg %p474
      %p827 = pneg %p471
      %p828 = pneg %p495
      %p829 = pneg %p492
      %p830 = pneg %p516
      %p831 = pneg %p513
      %p832 = pneg %p537
      %p833 = pneg %p534
      %p834 = pneg %p558
      %p835 = pneg %p555
      %p836 = pneg %p579
      %p837 = pneg %p576
      %p838 = pneg %p600
      %p839 = pneg %p597
      %p840 = pneg %p626
      %p841 = pneg %p623
      %p842 = scmp.lt.s32.totalorder %s39, 1
      %s843 = scalar_select %p842, %s39, 1
      %s844 = smul.addr %s843, 8
      %s845 = scalar_lea.vmem %s26, %s844
      %p846 = pneg %p652
      %p847 = pneg %p649
      %p848 = scmp.lt.s32.totalorder %s39, 1
      %s849 = scalar_select %p848, %s39, 1
      %s850 = smul.addr %s849, 8
      %s851 = scalar_lea.vmem %s27, %s850
      %p852 = scmp.lt.s32.totalorder %s39, 1
      %s853 = scalar_select %p852, %s39, 1
      %s854 = smul.addr %s853, 8
      %s855 = scalar_lea.vmem %s0, %s854
      %p856 = scmp.lt.s32.totalorder %s39, 1
      %s857 = scalar_select %p856, %s39, 1
      %s858 = smul.addr %s857, 8
      %s859 = scalar_lea.vmem %s1, %s858
      %p860 = scmp.lt.s32.totalorder %s39, 1
      %s861 = scalar_select %p860, %s39, 1
      %s862 = smul.addr %s861, 8
      %s863 = scalar_lea.vmem %s2, %s862
      %p864 = scmp.lt.s32.totalorder %s39, 1
      %s865 = scalar_select %p864, %s39, 1
      %s866 = smul.addr %s865, 8
      %s867 = scalar_lea.vmem %s3, %s866
      %p868 = scmp.lt.s32.totalorder %s39, 1
      %s869 = scalar_select %p868, %s39, 1
      %s870 = smul.addr %s869, 8
      %s871 = scalar_lea.vmem %s26, %s870
      %p872 = scmp.lt.s32.totalorder %s39, 1
      %s873 = scalar_select %p872, %s39, 1
      %s874 = smul.addr %s873, 8
      %s875 = scalar_lea.vmem %s27, %s874
      %v876 = vld [vmem:[%s855] sm:$0xff]
      %v877 = vld [vmem:[%s4] sm:$0x1]
      %v878 = vld [vmem:[%s5] sm:$0x1]
      %vm879 = vcmask 261120
      %v880 = vsel %vm879, %v876, 0.0
      %881 = vadd.xlane.f32.xlu0 %v880
      %v882 = vpop.xlane.xlu0 %881
      %v883 = vrcp.pop 32.0
      %v884 = vmul.f32 %v882, %v883
      %v885 = vsub.f32 %v876, %v884
      %v886 = vmul.f32 %v885, %v885
      %v887 = vsel %vm879, %v886, 0.0
      %888 = vadd.xlane.f32.xlu0 %v887
      %v889 = vpop.xlane.xlu0 %888
      %v890 = vmul.f32 %v889, %v883
      %v891 = vadd.f32 %v890, 1e-05
      %v892 = vrsqrt.pop %v891
      %v893 = vmul.f32 %v885, %v892
      %v895 = vlaneseq
      %v896 = vshrl.u32 %v895, 7
      %v897 = vsub.s32 0, %v896
      %v898 = vrot.slane %v877, %v897
      %v900 = vmul.f32 %v893, %v898
      %v902 = vlaneseq
      %v903 = vshrl.u32 %v902, 7
      %v904 = vsub.s32 0, %v903
      %v905 = vrot.slane %v878, %v904
      %v907 = vadd.f32 %v900, %v905
      %v908 = vld [vmem:[%s859] sm:$0xff]
      %v909 = vld [vmem:[%s6] sm:$0xff]
      %v910 = vld [vmem:[%s6 + $0x8] sm:$0xff]
      %v911 = vld [vmem:[%s6 + $0x10] sm:$0xff]
      %v912 = vld [vmem:[%s6 + $0x18] sm:$0xff]
      %v913 = vld [vmem:[%s7] sm:$0x1]
      %v915 = vlaneseq
      %v916 = vshrl.u32 %v915, 7
      %v917 = vsub.s32 0, %v916
      %v918 = vrot.slane %v913, %v917
      %v921 = vsel %vm879, %v907, 0
      %923 = vmatprep.subr.mxu0 0.0
      %924 = vmatpush1.msra.mxu0 %v909
      %925 = vmatprep.subr.mxu0 0.0
      %926 = vmatpush1.msra.mxu0 %v910
      %927 = vmatprep.subr.mxu0 0.0
      %928 = vmatpush1.msra.mxu0 %v911
      %929 = vmatprep.subr.mxu0 0.0
      %930 = vmatpush1.msra.mxu0 %v912
      %931 = vmatprep.subr.mxu0 0.0
      %932 = vmatpush1.msra.mxu0 0.0
      %933 = vmatprep.subr.mxu0 0.0
      %934 = vmatpush1.msra.mxu0 0.0
      %935 = vmatprep.subr.mxu0 0.0
      %936 = vmatpush1.msra.mxu0 0.0
      %937 = vmatprep.subr.mxu0 0.0
      %938 = vmatpush1.msra.mxu0 0.0
      %939 = vmatprep.subr.mxu0 0.0
      %940 = vmatpush1.msra.mxu0 0.0
      %941 = vmatprep.subr.mxu0 0.0
      %942 = vmatpush1.msra.mxu0 0.0
      %943 = vmatprep.subr.mxu0 0.0
      %944 = vmatpush1.msra.mxu0 0.0
      %945 = vmatprep.subr.mxu0 0.0
      %946 = vmatpush1.msra.mxu0 0.0
      %947 = vmatprep.subr.mxu0 0.0
      %948 = vmatpush1.msra.mxu0 0.0
      %949 = vmatprep.subr.mxu0 0.0
      %950 = vmatpush1.msra.mxu0 0.0
      %951 = vmatprep.subr.mxu0 0.0
      %952 = vmatpush1.msra.mxu0 0.0
      %953 = vmatprep.subr.mxu0 0.0
      %954 = vmatpush1.msra.mxu0 0.0
      %955 = vmatprep.subr.mxu0 0.0
      %956 = vmatpush1.msra.mxu0 0.0
      %957 = vmatprep.subr.mxu0 0.0
      %958 = vmatpush1.msra.mxu0 0.0
      %959 = vmatprep.subr.mxu0 0.0
      %960 = vmatpush1.msra.mxu0 0.0
      %961 = vmatprep.subr.mxu0 0.0
      %962 = vmatpush1.msra.mxu0 0.0
      %963 = vmatprep.subr.mxu0 0.0
      %964 = vmatpush1.msra.mxu0 0.0
      %965 = vmatprep.subr.mxu0 0.0
      %966 = vmatpush1.msra.mxu0 0.0
      %967 = vmatprep.subr.mxu0 0.0
      %968 = vmatpush1.msra.mxu0 0.0
      %969 = vmatprep.subr.mxu0 0.0
      %970 = vmatpush1.msra.mxu0 0.0
      %971 = vmatprep.subr.mxu0 0.0
      %972 = vmatpush1.msra.mxu0 0.0
      %973 = vmatprep.subr.mxu0 0.0
      %974 = vmatpush1.msra.mxu0 0.0
      %975 = vmatprep.subr.mxu0 0.0
      %976 = vmatpush1.msra.mxu0 0.0
      %977 = vmatprep.subr.mxu0 0.0
      %978 = vmatpush1.msra.mxu0 0.0
      %979 = vmatprep.subr.mxu0 0.0
      %980 = vmatpush1.msra.mxu0 0.0
      %981 = vmatprep.subr.mxu0 0.0
      %982 = vmatpush1.msra.mxu0 0.0
      %983 = vmatprep.subr.mxu0 0.0
      %984 = vmatpush1.msra.mxu0 0.0
      %985 = vmatprep.subr.mxu0 0.0
      %986 = vmatpush1.msra.mxu0 0.0
      %987 = vmatprep.mubr.f32.mxu0 0.0
      %988 = vmatmul.mubr.f32.gmra.mrb[0].mxu0 %v921
      %v989 = vpop.f32.mrb[0].mxu0
      %v990 = vadd.f32 %v918, %v989
      %v991 = vpop.f32.mrb[0].mxu0
      %992 = vdwg.mxu0
      %994 = vrot.lane.b32.xlu0 %v990, 96
      %v995 = vpop.permute.xlu0 %994
      %vm996 = vcmask 64512
      %v997 = vsel %vm996, %v990, 0
      %v999 = vsel %vm996, %v995, 0
      %1001 = vmatprep.subr.mxu0 0.0
      %1002 = vmatpush1.xpose.msra.mxu0 %v999
      %1003 = vmatprep.subr.mxu0 0.0
      %1004 = vmatpush1.xpose.msra.mxu0 0.0
      %1005 = vmatprep.subr.mxu0 0.0
      %1006 = vmatpush1.xpose.msra.mxu0 0.0
      %1007 = vmatprep.subr.mxu0 0.0
      %1008 = vmatpush1.xpose.msra.mxu0 0.0
      %1009 = vmatprep.subr.mxu0 0.0
      %1010 = vmatpush1.xpose.msra.mxu0 0.0
      %1011 = vmatprep.subr.mxu0 0.0
      %1012 = vmatpush1.xpose.msra.mxu0 0.0
      %1013 = vmatprep.subr.mxu0 0.0
      %1014 = vmatpush1.xpose.msra.mxu0 0.0
      %1015 = vmatprep.subr.mxu0 0.0
      %1016 = vmatpush1.xpose.msra.mxu0 0.0
      %1017 = vmatprep.subr.mxu0 0.0
      %1018 = vmatpush1.xpose.msra.mxu0 0.0
      %1019 = vmatprep.subr.mxu0 0.0
      %1020 = vmatpush1.xpose.msra.mxu0 0.0
      %1021 = vmatprep.subr.mxu0 0.0
      %1022 = vmatpush1.xpose.msra.mxu0 0.0
      %1023 = vmatprep.subr.mxu0 0.0
      %1024 = vmatpush1.xpose.msra.mxu0 0.0
      %1025 = vmatprep.subr.mxu0 0.0
      %1026 = vmatpush1.xpose.msra.mxu0 0.0
      %1027 = vmatprep.subr.mxu0 0.0
      %1028 = vmatpush1.xpose.msra.mxu0 0.0
      %1029 = vmatprep.subr.mxu0 0.0
      %1030 = vmatpush1.xpose.msra.mxu0 0.0
      %1031 = vmatprep.subr.mxu0 0.0
      %1032 = vmatpush1.xpose.msra.mxu0 0.0
      %1033 = vmatprep.subr.mxu0 0.0
      %1034 = vmatpush1.xpose.msra.mxu0 0.0
      %1035 = vmatprep.subr.mxu0 0.0
      %1036 = vmatpush1.xpose.msra.mxu0 0.0
      %1037 = vmatprep.subr.mxu0 0.0
      %1038 = vmatpush1.xpose.msra.mxu0 0.0
      %1039 = vmatprep.subr.mxu0 0.0
      %1040 = vmatpush1.xpose.msra.mxu0 0.0
      %1041 = vmatprep.subr.mxu0 0.0
      %1042 = vmatpush1.xpose.msra.mxu0 0.0
      %1043 = vmatprep.subr.mxu0 0.0
      %1044 = vmatpush1.xpose.msra.mxu0 0.0
      %1045 = vmatprep.subr.mxu0 0.0
      %1046 = vmatpush1.xpose.msra.mxu0 0.0
      %1047 = vmatprep.subr.mxu0 0.0
      %1048 = vmatpush1.xpose.msra.mxu0 0.0
      %1049 = vmatprep.subr.mxu0 0.0
      %1050 = vmatpush1.xpose.msra.mxu0 0.0
      %1051 = vmatprep.subr.mxu0 0.0
      %1052 = vmatpush1.xpose.msra.mxu0 0.0
      %1053 = vmatprep.subr.mxu0 0.0
      %1054 = vmatpush1.xpose.msra.mxu0 0.0
      %1055 = vmatprep.subr.mxu0 0.0
      %1056 = vmatpush1.xpose.msra.mxu0 0.0
      %1057 = vmatprep.subr.mxu0 0.0
      %1058 = vmatpush1.xpose.msra.mxu0 0.0
      %1059 = vmatprep.subr.mxu0 0.0
      %1060 = vmatpush1.xpose.msra.mxu0 0.0
      %1061 = vmatprep.subr.mxu0 0.0
      %1062 = vmatpush1.xpose.msra.mxu0 0.0
      %1063 = vmatprep.subr.mxu0 0.0
      %1064 = vmatpush1.xpose.msra.mxu0 0.0
      %1065 = vmatprep.mubr.f32.mxu0 0.0
      %1066 = vmatmul.mubr.f32.gmra.mrb[0].mxu0 %v997
      %v1067 = vpop.f32.mrb[0].mxu0
      %v1068 = vadd.f32 %v908, %v1067
      %v1069 = vpop.f32.mrb[0].mxu0
      %1070 = vdwg.mxu0
      %v1071 = vsel %vm996, %v1068, -inf
      %1072 = vmax.xlane.f32.xlu0 %v1071
      %v1073 = vpop.xlane.xlu0 %1072
      %v1074 = vsub.f32 %v1068, %v1073
      %v1075 = vmul.f32 %v1074, 1.442695
      %v1076 = vpow.pop %v1075
      %v1077 = vsel %vm996, %v1076, 0.0
      %1078 = vadd.xlane.f32.xlu0 %v1077
      %v1079 = vpop.xlane.xlu0 %1078
      %v1080 = vrcp.pop %v1079
      %v1081 = vmul.f32 %v1076, %v1080
      %1082 = vrot.lane.b32.xlu0 %v990, 64
      %v1083 = vpop.permute.xlu0 %1082
      %v1086 = vsel %vm996, %v1081, 0
      %1088 = vmatprep.subr.mxu0 0.0
      %1089 = vmatpush1.msra.mxu0 %v1083
      %1090 = vmatprep.subr.mxu0 0.0
      %1091 = vmatpush1.msra.mxu0 0.0
      %1092 = vmatprep.subr.mxu0 0.0
      %1093 = vmatpush1.msra.mxu0 0.0
      %1094 = vmatprep.subr.mxu0 0.0
      %1095 = vmatpush1.msra.mxu0 0.0
      %1096 = vmatprep.subr.mxu0 0.0
      %1097 = vmatpush1.msra.mxu0 0.0
      %1098 = vmatprep.subr.mxu0 0.0
      %1099 = vmatpush1.msra.mxu0 0.0
      %1100 = vmatprep.subr.mxu0 0.0
      %1101 = vmatpush1.msra.mxu0 0.0
      %1102 = vmatprep.subr.mxu0 0.0
      %1103 = vmatpush1.msra.mxu0 0.0
      %1104 = vmatprep.subr.mxu0 0.0
      %1105 = vmatpush1.msra.mxu0 0.0
      %1106 = vmatprep.subr.mxu0 0.0
      %1107 = vmatpush1.msra.mxu0 0.0
      %1108 = vmatprep.subr.mxu0 0.0
      %1109 = vmatpush1.msra.mxu0 0.0
      %1110 = vmatprep.subr.mxu0 0.0
      %1111 = vmatpush1.msra.mxu0 0.0
      %1112 = vmatprep.subr.mxu0 0.0
      %1113 = vmatpush1.msra.mxu0 0.0
      %1114 = vmatprep.subr.mxu0 0.0
      %1115 = vmatpush1.msra.mxu0 0.0
      %1116 = vmatprep.subr.mxu0 0.0
      %1117 = vmatpush1.msra.mxu0 0.0
      %1118 = vmatprep.subr.mxu0 0.0
      %1119 = vmatpush1.msra.mxu0 0.0
      %1120 = vmatprep.subr.mxu0 0.0
      %1121 = vmatpush1.msra.mxu0 0.0
      %1122 = vmatprep.subr.mxu0 0.0
      %1123 = vmatpush1.msra.mxu0 0.0
      %1124 = vmatprep.subr.mxu0 0.0
      %1125 = vmatpush1.msra.mxu0 0.0
      %1126 = vmatprep.subr.mxu0 0.0
      %1127 = vmatpush1.msra.mxu0 0.0
      %1128 = vmatprep.subr.mxu0 0.0
      %1129 = vmatpush1.msra.mxu0 0.0
      %1130 = vmatprep.subr.mxu0 0.0
      %1131 = vmatpush1.msra.mxu0 0.0
      %1132 = vmatprep.subr.mxu0 0.0
      %1133 = vmatpush1.msra.mxu0 0.0
      %1134 = vmatprep.subr.mxu0 0.0
      %1135 = vmatpush1.msra.mxu0 0.0
      %1136 = vmatprep.subr.mxu0 0.0
      %1137 = vmatpush1.msra.mxu0 0.0
      %1138 = vmatprep.subr.mxu0 0.0
      %1139 = vmatpush1.msra.mxu0 0.0
      %1140 = vmatprep.subr.mxu0 0.0
      %1141 = vmatpush1.msra.mxu0 0.0
      %1142 = vmatprep.subr.mxu0 0.0
      %1143 = vmatpush1.msra.mxu0 0.0
      %1144 = vmatprep.subr.mxu0 0.0
      %1145 = vmatpush1.msra.mxu0 0.0
      %1146 = vmatprep.subr.mxu0 0.0
      %1147 = vmatpush1.msra.mxu0 0.0
      %1148 = vmatprep.subr.mxu0 0.0
      %1149 = vmatpush1.msra.mxu0 0.0
      %1150 = vmatprep.subr.mxu0 0.0
      %1151 = vmatpush1.msra.mxu0 0.0
      %1152 = vmatprep.mubr.f32.mxu0 0.0
      %1153 = vmatmul.mubr.f32.gmra.mrb[0].mxu0 %v1086
      %v1154 = vpop.f32.mrb[0].mxu0
      %v1155 = vadd.f32 0.0, %v1154
      %v1156 = vpop.f32.mrb[0].mxu0
      %1157 = vdwg.mxu0
      %1158 = vrot.lane.b32.xlu0 %v990, 120
      %v1159 = vpop.permute.xlu0 %1158
      %1160 = vrot.lane.b32.xlu0 %v990, 88
      %v1161 = vpop.permute.xlu0 %1160
      %v1162 = vsel %vm996, %v1159, 0
      %v1164 = vsel %vm996, %v1161, 0
      %1166 = vmatprep.subr.mxu0 0.0
      %1167 = vmatpush1.xpose.msra.mxu0 %v1164
      %1168 = vmatprep.subr.mxu0 0.0
      %1169 = vmatpush1.xpose.msra.mxu0 0.0
      %1170 = vmatprep.subr.mxu0 0.0
      %1171 = vmatpush1.xpose.msra.mxu0 0.0
      %1172 = vmatprep.subr.mxu0 0.0
      %1173 = vmatpush1.xpose.msra.mxu0 0.0
      %1174 = vmatprep.subr.mxu0 0.0
      %1175 = vmatpush1.xpose.msra.mxu0 0.0
      %1176 = vmatprep.subr.mxu0 0.0
      %1177 = vmatpush1.xpose.msra.mxu0 0.0
      %1178 = vmatprep.subr.mxu0 0.0
      %1179 = vmatpush1.xpose.msra.mxu0 0.0
      %1180 = vmatprep.subr.mxu0 0.0
      %1181 = vmatpush1.xpose.msra.mxu0 0.0
      %1182 = vmatprep.subr.mxu0 0.0
      %1183 = vmatpush1.xpose.msra.mxu0 0.0
      %1184 = vmatprep.subr.mxu0 0.0
      %1185 = vmatpush1.xpose.msra.mxu0 0.0
      %1186 = vmatprep.subr.mxu0 0.0
      %1187 = vmatpush1.xpose.msra.mxu0 0.0
      %1188 = vmatprep.subr.mxu0 0.0
      %1189 = vmatpush1.xpose.msra.mxu0 0.0
      %1190 = vmatprep.subr.mxu0 0.0
      %1191 = vmatpush1.xpose.msra.mxu0 0.0
      %1192 = vmatprep.subr.mxu0 0.0
      %1193 = vmatpush1.xpose.msra.mxu0 0.0
      %1194 = vmatprep.subr.mxu0 0.0
      %1195 = vmatpush1.xpose.msra.mxu0 0.0
      %1196 = vmatprep.subr.mxu0 0.0
      %1197 = vmatpush1.xpose.msra.mxu0 0.0
      %1198 = vmatprep.subr.mxu0 0.0
      %1199 = vmatpush1.xpose.msra.mxu0 0.0
      %1200 = vmatprep.subr.mxu0 0.0
      %1201 = vmatpush1.xpose.msra.mxu0 0.0
      %1202 = vmatprep.subr.mxu0 0.0
      %1203 = vmatpush1.xpose.msra.mxu0 0.0
      %1204 = vmatprep.subr.mxu0 0.0
      %1205 = vmatpush1.xpose.msra.mxu0 0.0
      %1206 = vmatprep.subr.mxu0 0.0
      %1207 = vmatpush1.xpose.msra.mxu0 0.0
      %1208 = vmatprep.subr.mxu0 0.0
      %1209 = vmatpush1.xpose.msra.mxu0 0.0
      %1210 = vmatprep.subr.mxu0 0.0
      %1211 = vmatpush1.xpose.msra.mxu0 0.0
      %1212 = vmatprep.subr.mxu0 0.0
      %1213 = vmatpush1.xpose.msra.mxu0 0.0
      %1214 = vmatprep.subr.mxu0 0.0
      %1215 = vmatpush1.xpose.msra.mxu0 0.0
      %1216 = vmatprep.subr.mxu0 0.0
      %1217 = vmatpush1.xpose.msra.mxu0 0.0
      %1218 = vmatprep.subr.mxu0 0.0
      %1219 = vmatpush1.xpose.msra.mxu0 0.0
      %1220 = vmatprep.subr.mxu0 0.0
      %1221 = vmatpush1.xpose.msra.mxu0 0.0
      %1222 = vmatprep.subr.mxu0 0.0
      %1223 = vmatpush1.xpose.msra.mxu0 0.0
      %1224 = vmatprep.subr.mxu0 0.0
      %1225 = vmatpush1.xpose.msra.mxu0 0.0
      %1226 = vmatprep.subr.mxu0 0.0
      %1227 = vmatpush1.xpose.msra.mxu0 0.0
      %1228 = vmatprep.subr.mxu0 0.0
      %1229 = vmatpush1.xpose.msra.mxu0 0.0
      %1230 = vmatprep.mubr.f32.mxu0 0.0
      %1231 = vmatmul.mubr.f32.gmra.mrb[0].mxu0 %v1162
      %v1232 = vpop.f32.mrb[0].mxu0
      %v1233 = vadd.f32 %v908, %v1232
      %v1234 = vpop.f32.mrb[0].mxu0
      %1235 = vdwg.mxu0
      %v1236 = vsel %vm996, %v1233, -inf
      %1237 = vmax.xlane.f32.xlu0 %v1236
      %v1238 = vpop.xlane.xlu0 %1237
      %v1239 = vsub.f32 %v1233, %v1238
      %v1240 = vmul.f32 %v1239, 1.442695
      %v1241 = vpow.pop %v1240
      %v1242 = vsel %vm996, %v1241, 0.0
      %1243 = vadd.xlane.f32.xlu0 %v1242
      %v1244 = vpop.xlane.xlu0 %1243
      %v1245 = vrcp.pop %v1244
      %v1246 = vmul.f32 %v1241, %v1245
      %1247 = vrot.lane.b32.xlu0 %v990, 56
      %v1248 = vpop.permute.xlu0 %1247
      %v1251 = vsel %vm996, %v1246, 0
      %1253 = vmatprep.subr.mxu0 0.0
      %1254 = vmatpush1.msra.mxu0 %v1248
      %1255 = vmatprep.subr.mxu0 0.0
      %1256 = vmatpush1.msra.mxu0 0.0
      %1257 = vmatprep.subr.mxu0 0.0
      %1258 = vmatpush1.msra.mxu0 0.0
      %1259 = vmatprep.subr.mxu0 0.0
      %1260 = vmatpush1.msra.mxu0 0.0
      %1261 = vmatprep.subr.mxu0 0.0
      %1262 = vmatpush1.msra.mxu0 0.0
      %1263 = vmatprep.subr.mxu0 0.0
      %1264 = vmatpush1.msra.mxu0 0.0
      %1265 = vmatprep.subr.mxu0 0.0
      %1266 = vmatpush1.msra.mxu0 0.0
      %1267 = vmatprep.subr.mxu0 0.0
      %1268 = vmatpush1.msra.mxu0 0.0
      %1269 = vmatprep.subr.mxu0 0.0
      %1270 = vmatpush1.msra.mxu0 0.0
      %1271 = vmatprep.subr.mxu0 0.0
      %1272 = vmatpush1.msra.mxu0 0.0
      %1273 = vmatprep.subr.mxu0 0.0
      %1274 = vmatpush1.msra.mxu0 0.0
      %1275 = vmatprep.subr.mxu0 0.0
      %1276 = vmatpush1.msra.mxu0 0.0
      %1277 = vmatprep.subr.mxu0 0.0
      %1278 = vmatpush1.msra.mxu0 0.0
      %1279 = vmatprep.subr.mxu0 0.0
      %1280 = vmatpush1.msra.mxu0 0.0
      %1281 = vmatprep.subr.mxu0 0.0
      %1282 = vmatpush1.msra.mxu0 0.0
      %1283 = vmatprep.subr.mxu0 0.0
      %1284 = vmatpush1.msra.mxu0 0.0
      %1285 = vmatprep.subr.mxu0 0.0
      %1286 = vmatpush1.msra.mxu0 0.0
      %1287 = vmatprep.subr.mxu0 0.0
      %1288 = vmatpush1.msra.mxu0 0.0
      %1289 = vmatprep.subr.mxu0 0.0
      %1290 = vmatpush1.msra.mxu0 0.0
      %1291 = vmatprep.subr.mxu0 0.0
      %1292 = vmatpush1.msra.mxu0 0.0
      %1293 = vmatprep.subr.mxu0 0.0
      %1294 = vmatpush1.msra.mxu0 0.0
      %1295 = vmatprep.subr.mxu0 0.0
      %1296 = vmatpush1.msra.mxu0 0.0
      %1297 = vmatprep.subr.mxu0 0.0
      %1298 = vmatpush1.msra.mxu0 0.0
      %1299 = vmatprep.subr.mxu0 0.0
      %1300 = vmatpush1.msra.mxu0 0.0
      %1301 = vmatprep.subr.mxu0 0.0
      %1302 = vmatpush1.msra.mxu0 0.0
      %1303 = vmatprep.subr.mxu0 0.0
      %1304 = vmatpush1.msra.mxu0 0.0
      %1305 = vmatprep.subr.mxu0 0.0
      %1306 = vmatpush1.msra.mxu0 0.0
      %1307 = vmatprep.subr.mxu0 0.0
      %1308 = vmatpush1.msra.mxu0 0.0
      %1309 = vmatprep.subr.mxu0 0.0
      %1310 = vmatpush1.msra.mxu0 0.0
      %1311 = vmatprep.subr.mxu0 0.0
      %1312 = vmatpush1.msra.mxu0 0.0
      %1313 = vmatprep.subr.mxu0 0.0
      %1314 = vmatpush1.msra.mxu0 0.0
      %1315 = vmatprep.subr.mxu0 0.0
      %1316 = vmatpush1.msra.mxu0 0.0
      %1317 = vmatprep.mubr.f32.mxu0 0.0
      %1318 = vmatmul.mubr.f32.gmra.mrb[0].mxu0 %v1251
      %v1319 = vpop.f32.mrb[0].mxu0
      %v1320 = vadd.f32 0.0, %v1319
      %v1321 = vpop.f32.mrb[0].mxu0
      %1322 = vdwg.mxu0
      %1323 = vrot.lane.b32.xlu0 %v990, 112
      %v1324 = vpop.permute.xlu0 %1323
      %1325 = vrot.lane.b32.xlu0 %v990, 80
      %v1326 = vpop.permute.xlu0 %1325
      %v1327 = vsel %vm996, %v1324, 0
      %v1329 = vsel %vm996, %v1326, 0
      %1331 = vmatprep.subr.mxu0 0.0
      %1332 = vmatpush1.xpose.msra.mxu0 %v1329
      %1333 = vmatprep.subr.mxu0 0.0
      %1334 = vmatpush1.xpose.msra.mxu0 0.0
      %1335 = vmatprep.subr.mxu0 0.0
      %1336 = vmatpush1.xpose.msra.mxu0 0.0
      %1337 = vmatprep.subr.mxu0 0.0
      %1338 = vmatpush1.xpose.msra.mxu0 0.0
      %1339 = vmatprep.subr.mxu0 0.0
      %1340 = vmatpush1.xpose.msra.mxu0 0.0
      %1341 = vmatprep.subr.mxu0 0.0
      %1342 = vmatpush1.xpose.msra.mxu0 0.0
      %1343 = vmatprep.subr.mxu0 0.0
      %1344 = vmatpush1.xpose.msra.mxu0 0.0
      %1345 = vmatprep.subr.mxu0 0.0
      %1346 = vmatpush1.xpose.msra.mxu0 0.0
      %1347 = vmatprep.subr.mxu0 0.0
      %1348 = vmatpush1.xpose.msra.mxu0 0.0
      %1349 = vmatprep.subr.mxu0 0.0
      %1350 = vmatpush1.xpose.msra.mxu0 0.0
      %1351 = vmatprep.subr.mxu0 0.0
      %1352 = vmatpush1.xpose.msra.mxu0 0.0
      %1353 = vmatprep.subr.mxu0 0.0
      %1354 = vmatpush1.xpose.msra.mxu0 0.0
      %1355 = vmatprep.subr.mxu0 0.0
      %1356 = vmatpush1.xpose.msra.mxu0 0.0
      %1357 = vmatprep.subr.mxu0 0.0
      %1358 = vmatpush1.xpose.msra.mxu0 0.0
      %1359 = vmatprep.subr.mxu0 0.0
      %1360 = vmatpush1.xpose.msra.mxu0 0.0
      %1361 = vmatprep.subr.mxu0 0.0
      %1362 = vmatpush1.xpose.msra.mxu0 0.0
      %1363 = vmatprep.subr.mxu0 0.0
      %1364 = vmatpush1.xpose.msra.mxu0 0.0
      %1365 = vmatprep.subr.mxu0 0.0
      %1366 = vmatpush1.xpose.msra.mxu0 0.0
      %1367 = vmatprep.subr.mxu0 0.0
      %1368 = vmatpush1.xpose.msra.mxu0 0.0
      %1369 = vmatprep.subr.mxu0 0.0
      %1370 = vmatpush1.xpose.msra.mxu0 0.0
      %1371 = vmatprep.subr.mxu0 0.0
      %1372 = vmatpush1.xpose.msra.mxu0 0.0
      %1373 = vmatprep.subr.mxu0 0.0
      %1374 = vmatpush1.xpose.msra.mxu0 0.0
      %1375 = vmatprep.subr.mxu0 0.0
      %1376 = vmatpush1.xpose.msra.mxu0 0.0
      %1377 = vmatprep.subr.mxu0 0.0
      %1378 = vmatpush1.xpose.msra.mxu0 0.0
      %1379 = vmatprep.subr.mxu0 0.0
      %1380 = vmatpush1.xpose.msra.mxu0 0.0
      %1381 = vmatprep.subr.mxu0 0.0
      %1382 = vmatpush1.xpose.msra.mxu0 0.0
      %1383 = vmatprep.subr.mxu0 0.0
      %1384 = vmatpush1.xpose.msra.mxu0 0.0
      %1385 = vmatprep.subr.mxu0 0.0
      %1386 = vmatpush1.xpose.msra.mxu0 0.0
      %1387 = vmatprep.subr.mxu0 0.0
      %1388 = vmatpush1.xpose.msra.mxu0 0.0
      %1389 = vmatprep.subr.mxu0 0.0
      %1390 = vmatpush1.xpose.msra.mxu0 0.0
      %1391 = vmatprep.subr.mxu0 0.0
      %1392 = vmatpush1.xpose.msra.mxu0 0.0
      %1393 = vmatprep.subr.mxu0 0.0
      %1394 = vmatpush1.xpose.msra.mxu0 0.0
      %1395 = vmatprep.mubr.f32.mxu0 0.0
      %1396 = vmatmul.mubr.f32.gmra.mrb[0].mxu0 %v1327
      %v1397 = vpop.f32.mrb[0].mxu0
      %v1398 = vadd.f32 %v908, %v1397
      %v1399 = vpop.f32.mrb[0].mxu0
      %1400 = vdwg.mxu0
      %v1401 = vsel %vm996, %v1398, -inf
      %1402 = vmax.xlane.f32.xlu0 %v1401
      %v1403 = vpop.xlane.xlu0 %1402
      %v1404 = vsub.f32 %v1398, %v1403
      %v1405 = vmul.f32 %v1404, 1.442695
      %v1406 = vpow.pop %v1405
      %v1407 = vsel %vm996, %v1406, 0.0
      %1408 = vadd.xlane.f32.xlu0 %v1407
      %v1409 = vpop.xlane.xlu0 %1408
      %v1410 = vrcp.pop %v1409
      %v1411 = vmul.f32 %v1406, %v1410
      %1412 = vrot.lane.b32.xlu0 %v990, 48
      %v1413 = vpop.permute.xlu0 %1412
      %v1416 = vsel %vm996, %v1411, 0
      %1418 = vmatprep.subr.mxu0 0.0
      %1419 = vmatpush1.msra.mxu0 %v1413
      %1420 = vmatprep.subr.mxu0 0.0
      %1421 = vmatpush1.msra.mxu0 0.0
      %1422 = vmatprep.subr.mxu0 0.0
      %1423 = vmatpush1.msra.mxu0 0.0
      %1424 = vmatprep.subr.mxu0 0.0
      %1425 = vmatpush1.msra.mxu0 0.0
      %1426 = vmatprep.subr.mxu0 0.0
      %1427 = vmatpush1.msra.mxu0 0.0
      %1428 = vmatprep.subr.mxu0 0.0
      %1429 = vmatpush1.msra.mxu0 0.0
      %1430 = vmatprep.subr.mxu0 0.0
      %1431 = vmatpush1.msra.mxu0 0.0
      %1432 = vmatprep.subr.mxu0 0.0
      %1433 = vmatpush1.msra.mxu0 0.0
      %1434 = vmatprep.subr.mxu0 0.0
      %1435 = vmatpush1.msra.mxu0 0.0
      %1436 = vmatprep.subr.mxu0 0.0
      %1437 = vmatpush1.msra.mxu0 0.0
      %1438 = vmatprep.subr.mxu0 0.0
      %1439 = vmatpush1.msra.mxu0 0.0
      %1440 = vmatprep.subr.mxu0 0.0
      %1441 = vmatpush1.msra.mxu0 0.0
      %1442 = vmatprep.subr.mxu0 0.0
      %1443 = vmatpush1.msra.mxu0 0.0
      %1444 = vmatprep.subr.mxu0 0.0
      %1445 = vmatpush1.msra.mxu0 0.0
      %1446 = vmatprep.subr.mxu0 0.0
      %1447 = vmatpush1.msra.mxu0 0.0
      %1448 = vmatprep.subr.mxu0 0.0
      %1449 = vmatpush1.msra.mxu0 0.0
      %1450 = vmatprep.subr.mxu0 0.0
      %1451 = vmatpush1.msra.mxu0 0.0
      %1452 = vmatprep.subr.mxu0 0.0
      %1453 = vmatpush1.msra.mxu0 0.0
      %1454 = vmatprep.subr.mxu0 0.0
      %1455 = vmatpush1.msra.mxu0 0.0
      %1456 = vmatprep.subr.mxu0 0.0
      %1457 = vmatpush1.msra.mxu0 0.0
      %1458 = vmatprep.subr.mxu0 0.0
      %1459 = vmatpush1.msra.mxu0 0.0
      %1460 = vmatprep.subr.mxu0 0.0
      %1461 = vmatpush1.msra.mxu0 0.0
      %1462 = vmatprep.subr.mxu0 0.0
      %1463 = vmatpush1.msra.mxu0 0.0
      %1464 = vmatprep.subr.mxu0 0.0
      %1465 = vmatpush1.msra.mxu0 0.0
      %1466 = vmatprep.subr.mxu0 0.0
      %1467 = vmatpush1.msra.mxu0 0.0
      %1468 = vmatprep.subr.mxu0 0.0
      %1469 = vmatpush1.msra.mxu0 0.0
      %1470 = vmatprep.subr.mxu0 0.0
      %1471 = vmatpush1.msra.mxu0 0.0
      %1472 = vmatprep.subr.mxu0 0.0
      %1473 = vmatpush1.msra.mxu0 0.0
      %1474 = vmatprep.subr.mxu0 0.0
      %1475 = vmatpush1.msra.mxu0 0.0
      %1476 = vmatprep.subr.mxu0 0.0
      %1477 = vmatpush1.msra.mxu0 0.0
      %1478 = vmatprep.subr.mxu0 0.0
      %1479 = vmatpush1.msra.mxu0 0.0
      %1480 = vmatprep.subr.mxu0 0.0
      %1481 = vmatpush1.msra.mxu0 0.0
      %1482 = vmatprep.mubr.f32.mxu0 0.0
      %1483 = vmatmul.mubr.f32.gmra.mrb[0].mxu0 %v1416
      %v1484 = vpop.f32.mrb[0].mxu0
      %v1485 = vadd.f32 0.0, %v1484
      %v1486 = vpop.f32.mrb[0].mxu0
      %1487 = vdwg.mxu0
      %1488 = vrot.lane.b32.xlu0 %v990, 104
      %v1489 = vpop.permute.xlu0 %1488
      %1490 = vrot.lane.b32.xlu0 %v990, 72
      %v1491 = vpop.permute.xlu0 %1490
      %v1492 = vsel %vm996, %v1489, 0
      %v1494 = vsel %vm996, %v1491, 0
      %1496 = vmatprep.subr.mxu0 0.0
      %1497 = vmatpush1.xpose.msra.mxu0 %v1494
      %1498 = vmatprep.subr.mxu0 0.0
      %1499 = vmatpush1.xpose.msra.mxu0 0.0
      %1500 = vmatprep.subr.mxu0 0.0
      %1501 = vmatpush1.xpose.msra.mxu0 0.0
      %1502 = vmatprep.subr.mxu0 0.0
      %1503 = vmatpush1.xpose.msra.mxu0 0.0
      %1504 = vmatprep.subr.mxu0 0.0
      %1505 = vmatpush1.xpose.msra.mxu0 0.0
      %1506 = vmatprep.subr.mxu0 0.0
      %1507 = vmatpush1.xpose.msra.mxu0 0.0
      %1508 = vmatprep.subr.mxu0 0.0
      %1509 = vmatpush1.xpose.msra.mxu0 0.0
      %1510 = vmatprep.subr.mxu0 0.0
      %1511 = vmatpush1.xpose.msra.mxu0 0.0
      %1512 = vmatprep.subr.mxu0 0.0
      %1513 = vmatpush1.xpose.msra.mxu0 0.0
      %1514 = vmatprep.subr.mxu0 0.0
      %1515 = vmatpush1.xpose.msra.mxu0 0.0
      %1516 = vmatprep.subr.mxu0 0.0
      %1517 = vmatpush1.xpose.msra.mxu0 0.0
      %1518 = vmatprep.subr.mxu0 0.0
      %1519 = vmatpush1.xpose.msra.mxu0 0.0
      %1520 = vmatprep.subr.mxu0 0.0
      %1521 = vmatpush1.xpose.msra.mxu0 0.0
      %1522 = vmatprep.subr.mxu0 0.0
      %1523 = vmatpush1.xpose.msra.mxu0 0.0
      %1524 = vmatprep.subr.mxu0 0.0
      %1525 = vmatpush1.xpose.msra.mxu0 0.0
      %1526 = vmatprep.subr.mxu0 0.0
      %1527 = vmatpush1.xpose.msra.mxu0 0.0
      %1528 = vmatprep.subr.mxu0 0.0
      %1529 = vmatpush1.xpose.msra.mxu0 0.0
      %1530 = vmatprep.subr.mxu0 0.0
      %1531 = vmatpush1.xpose.msra.mxu0 0.0
      %1532 = vmatprep.subr.mxu0 0.0
      %1533 = vmatpush1.xpose.msra.mxu0 0.0
      %1534 = vmatprep.subr.mxu0 0.0
      %1535 = vmatpush1.xpose.msra.mxu0 0.0
      %1536 = vmatprep.subr.mxu0 0.0
      %1537 = vmatpush1.xpose.msra.mxu0 0.0
      %1538 = vmatprep.subr.mxu0 0.0
      %1539 = vmatpush1.xpose.msra.mxu0 0.0
      %1540 = vmatprep.subr.mxu0 0.0
      %1541 = vmatpush1.xpose.msra.mxu0 0.0
      %1542 = vmatprep.subr.mxu0 0.0
      %1543 = vmatpush1.xpose.msra.mxu0 0.0
      %1544 = vmatprep.subr.mxu0 0.0
      %1545 = vmatpush1.xpose.msra.mxu0 0.0
      %1546 = vmatprep.subr.mxu0 0.0
      %1547 = vmatpush1.xpose.msra.mxu0 0.0
      %1548 = vmatprep.subr.mxu0 0.0
      %1549 = vmatpush1.xpose.msra.mxu0 0.0
      %1550 = vmatprep.subr.mxu0 0.0
      %1551 = vmatpush1.xpose.msra.mxu0 0.0
      %1552 = vmatprep.subr.mxu0 0.0
      %1553 = vmatpush1.xpose.msra.mxu0 0.0
      %1554 = vmatprep.subr.mxu0 0.0
      %1555 = vmatpush1.xpose.msra.mxu0 0.0
      %1556 = vmatprep.subr.mxu0 0.0
      %1557 = vmatpush1.xpose.msra.mxu0 0.0
      %1558 = vmatprep.subr.mxu0 0.0
      %1559 = vmatpush1.xpose.msra.mxu0 0.0
      %1560 = vmatprep.mubr.f32.mxu0 0.0
      %1561 = vmatmul.mubr.f32.gmra.mrb[0].mxu0 %v1492
      %v1562 = vpop.f32.mrb[0].mxu0
      %v1563 = vadd.f32 %v908, %v1562
      %v1564 = vpop.f32.mrb[0].mxu0
      %1565 = vdwg.mxu0
      %v1566 = vsel %vm996, %v1563, -inf
      %1567 = vmax.xlane.f32.xlu0 %v1566
      %v1568 = vpop.xlane.xlu0 %1567
      %v1569 = vsub.f32 %v1563, %v1568
      %v1570 = vmul.f32 %v1569, 1.442695
      %v1571 = vpow.pop %v1570
      %v1572 = vsel %vm996, %v1571, 0.0
      %1573 = vadd.xlane.f32.xlu0 %v1572
      %v1574 = vpop.xlane.xlu0 %1573
      %v1575 = vrcp.pop %v1574
      %v1576 = vmul.f32 %v1571, %v1575
      %1577 = vrot.lane.b32.xlu0 %v990, 40
      %v1578 = vpop.permute.xlu0 %1577
      %v1581 = vsel %vm996, %v1576, 0
      %1583 = vmatprep.subr.mxu0 0.0
      %1584 = vmatpush1.msra.mxu0 %v1578
      %1585 = vmatprep.subr.mxu0 0.0
      %1586 = vmatpush1.msra.mxu0 0.0
      %1587 = vmatprep.subr.mxu0 0.0
      %1588 = vmatpush1.msra.mxu0 0.0
      %1589 = vmatprep.subr.mxu0 0.0
      %1590 = vmatpush1.msra.mxu0 0.0
      %1591 = vmatprep.subr.mxu0 0.0
      %1592 = vmatpush1.msra.mxu0 0.0
      %1593 = vmatprep.subr.mxu0 0.0
      %1594 = vmatpush1.msra.mxu0 0.0
      %1595 = vmatprep.subr.mxu0 0.0
      %1596 = vmatpush1.msra.mxu0 0.0
      %1597 = vmatprep.subr.mxu0 0.0
      %1598 = vmatpush1.msra.mxu0 0.0
      %1599 = vmatprep.subr.mxu0 0.0
      %1600 = vmatpush1.msra.mxu0 0.0
      %1601 = vmatprep.subr.mxu0 0.0
      %1602 = vmatpush1.msra.mxu0 0.0
      %1603 = vmatprep.subr.mxu0 0.0
      %1604 = vmatpush1.msra.mxu0 0.0
      %1605 = vmatprep.subr.mxu0 0.0
      %1606 = vmatpush1.msra.mxu0 0.0
      %1607 = vmatprep.subr.mxu0 0.0
      %1608 = vmatpush1.msra.mxu0 0.0
      %1609 = vmatprep.subr.mxu0 0.0
      %1610 = vmatpush1.msra.mxu0 0.0
      %1611 = vmatprep.subr.mxu0 0.0
      %1612 = vmatpush1.msra.mxu0 0.0
      %1613 = vmatprep.subr.mxu0 0.0
      %1614 = vmatpush1.msra.mxu0 0.0
      %1615 = vmatprep.subr.mxu0 0.0
      %1616 = vmatpush1.msra.mxu0 0.0
      %1617 = vmatprep.subr.mxu0 0.0
      %1618 = vmatpush1.msra.mxu0 0.0
      %1619 = vmatprep.subr.mxu0 0.0
      %1620 = vmatpush1.msra.mxu0 0.0
      %1621 = vmatprep.subr.mxu0 0.0
      %1622 = vmatpush1.msra.mxu0 0.0
      %1623 = vmatprep.subr.mxu0 0.0
      %1624 = vmatpush1.msra.mxu0 0.0
      %1625 = vmatprep.subr.mxu0 0.0
      %1626 = vmatpush1.msra.mxu0 0.0
      %1627 = vmatprep.subr.mxu0 0.0
      %1628 = vmatpush1.msra.mxu0 0.0
      %1629 = vmatprep.subr.mxu0 0.0
      %1630 = vmatpush1.msra.mxu0 0.0
      %1631 = vmatprep.subr.mxu0 0.0
      %1632 = vmatpush1.msra.mxu0 0.0
      %1633 = vmatprep.subr.mxu0 0.0
      %1634 = vmatpush1.msra.mxu0 0.0
      %1635 = vmatprep.subr.mxu0 0.0
      %1636 = vmatpush1.msra.mxu0 0.0
      %1637 = vmatprep.subr.mxu0 0.0
      %1638 = vmatpush1.msra.mxu0 0.0
      %1639 = vmatprep.subr.mxu0 0.0
      %1640 = vmatpush1.msra.mxu0 0.0
      %1641 = vmatprep.subr.mxu0 0.0
      %1642 = vmatpush1.msra.mxu0 0.0
      %1643 = vmatprep.subr.mxu0 0.0
      %1644 = vmatpush1.msra.mxu0 0.0
      %1645 = vmatprep.subr.mxu0 0.0
      %1646 = vmatpush1.msra.mxu0 0.0
      %1647 = vmatprep.mubr.f32.mxu0 0.0
      %1648 = vmatmul.mubr.f32.gmra.mrb[0].mxu0 %v1581
      %v1649 = vpop.f32.mrb[0].mxu0
      %v1650 = vadd.f32 0.0, %v1649
      %v1651 = vpop.f32.mrb[0].mxu0
      %1652 = vdwg.mxu0
      %1654 = vrot.lane.b32.xlu0 %v1320, 8
      %v1655 = vpop.permute.xlu0 %1654
      %1658 = vrot.lane.b32.xlu0 %v1485, 16
      %v1659 = vpop.permute.xlu0 %1658
      %1662 = vrot.lane.b32.xlu0 %v1650, 24
      %v1663 = vpop.permute.xlu0 %1662
      %v1665 = vsel %vm996, %v1155, %v1655
      %vm1666 = vcmask 130048
      %v1667 = vsel %vm1666, %v1665, %v1659
      %vm1668 = vcmask 195584
      %v1669 = vsel %vm1668, %v1667, %v1663
      %v1670 = vld [vmem:[%s8] sm:$0xff]
      %v1671 = vld [vmem:[%s8 + $0x8] sm:$0xff]
      %v1672 = vld [vmem:[%s8 + $0x10] sm:$0xff]
      %v1673 = vld [vmem:[%s8 + $0x18] sm:$0xff]
      %v1674 = vld [vmem:[%s9] sm:$0x1]
      %v1676 = vlaneseq
      %v1677 = vshrl.u32 %v1676, 7
      %v1678 = vsub.s32 0, %v1677
      %v1679 = vrot.slane %v1674, %v1678
      %v1682 = vsel %vm879, %v1669, 0
      %1684 = vmatprep.subr.mxu0 0.0
      %1685 = vmatpush1.msra.mxu0 %v1670
      %1686 = vmatprep.subr.mxu0 0.0
      %1687 = vmatpush1.msra.mxu0 %v1671
      %1688 = vmatprep.subr.mxu0 0.0
      %1689 = vmatpush1.msra.mxu0 %v1672
      %1690 = vmatprep.subr.mxu0 0.0
      %1691 = vmatpush1.msra.mxu0 %v1673
      %1692 = vmatprep.subr.mxu0 0.0
      %1693 = vmatpush1.msra.mxu0 0.0
      %1694 = vmatprep.subr.mxu0 0.0
      %1695 = vmatpush1.msra.mxu0 0.0
      %1696 = vmatprep.subr.mxu0 0.0
      %1697 = vmatpush1.msra.mxu0 0.0
      %1698 = vmatprep.subr.mxu0 0.0
      %1699 = vmatpush1.msra.mxu0 0.0
      %1700 = vmatprep.subr.mxu0 0.0
      %1701 = vmatpush1.msra.mxu0 0.0
      %1702 = vmatprep.subr.mxu0 0.0
      %1703 = vmatpush1.msra.mxu0 0.0
      %1704 = vmatprep.subr.mxu0 0.0
      %1705 = vmatpush1.msra.mxu0 0.0
      %1706 = vmatprep.subr.mxu0 0.0
      %1707 = vmatpush1.msra.mxu0 0.0
      %1708 = vmatprep.subr.mxu0 0.0
      %1709 = vmatpush1.msra.mxu0 0.0
      %1710 = vmatprep.subr.mxu0 0.0
      %1711 = vmatpush1.msra.mxu0 0.0
      %1712 = vmatprep.subr.mxu0 0.0
      %1713 = vmatpush1.msra.mxu0 0.0
      %1714 = vmatprep.subr.mxu0 0.0
      %1715 = vmatpush1.msra.mxu0 0.0
      %1716 = vmatprep.subr.mxu0 0.0
      %1717 = vmatpush1.msra.mxu0 0.0
      %1718 = vmatprep.subr.mxu0 0.0
      %1719 = vmatpush1.msra.mxu0 0.0
      %1720 = vmatprep.subr.mxu0 0.0
      %1721 = vmatpush1.msra.mxu0 0.0
      %1722 = vmatprep.subr.mxu0 0.0
      %1723 = vmatpush1.msra.mxu0 0.0
      %1724 = vmatprep.subr.mxu0 0.0
      %1725 = vmatpush1.msra.mxu0 0.0
      %1726 = vmatprep.subr.mxu0 0.0
      %1727 = vmatpush1.msra.mxu0 0.0
      %1728 = vmatprep.subr.mxu0 0.0
      %1729 = vmatpush1.msra.mxu0 0.0
      %1730 = vmatprep.subr.mxu0 0.0
      %1731 = vmatpush1.msra.mxu0 0.0
      %1732 = vmatprep.subr.mxu0 0.0
      %1733 = vmatpush1.msra.mxu0 0.0
      %1734 = vmatprep.subr.mxu0 0.0
      %1735 = vmatpush1.msra.mxu0 0.0
      %1736 = vmatprep.subr.mxu0 0.0
      %1737 = vmatpush1.msra.mxu0 0.0
      %1738 = vmatprep.subr.mxu0 0.0
      %1739 = vmatpush1.msra.mxu0 0.0
      %1740 = vmatprep.subr.mxu0 0.0
      %1741 = vmatpush1.msra.mxu0 0.0
      %1742 = vmatprep.subr.mxu0 0.0
      %1743 = vmatpush1.msra.mxu0 0.0
      %1744 = vmatprep.subr.mxu0 0.0
      %1745 = vmatpush1.msra.mxu0 0.0
      %1746 = vmatprep.subr.mxu0 0.0
      %1747 = vmatpush1.msra.mxu0 0.0
      %1748 = vmatprep.mubr.f32.mxu0 0.0
      %1749 = vmatmul.mubr.f32.gmra.mrb[0].mxu0 %v1682
      %v1750 = vpop.f32.mrb[0].mxu0
      %v1751 = vadd.f32 %v1679, %v1750
      %v1752 = vpop.f32.mrb[0].mxu0
      %1753 = vdwg.mxu0
      %v1754 = vadd.f32 %v1751, %v907
      %v1755 = vld [vmem:[%s10] sm:$0x1]
      %v1756 = vld [vmem:[%s11] sm:$0x1]
      %v1757 = vsel %vm879, %v1754, 0.0
      %1758 = vadd.xlane.f32.xlu0 %v1757
      %v1759 = vpop.xlane.xlu0 %1758
      %v1760 = vmul.f32 %v1759, %v883
      %v1761 = vsub.f32 %v1754, %v1760
      %v1762 = vmul.f32 %v1761, %v1761
      %v1763 = vsel %vm879, %v1762, 0.0
      %1764 = vadd.xlane.f32.xlu0 %v1763
      %v1765 = vpop.xlane.xlu0 %1764
      %v1766 = vmul.f32 %v1765, %v883
      %v1767 = vadd.f32 %v1766, 1e-05
      %v1768 = vrsqrt.pop %v1767
      %v1769 = vmul.f32 %v1761, %v1768
      %v1771 = vlaneseq
      %v1772 = vshrl.u32 %v1771, 7
      %v1773 = vsub.s32 0, %v1772
      %v1774 = vrot.slane %v1755, %v1773
      %v1776 = vmul.f32 %v1769, %v1774
      %v1778 = vlaneseq
      %v1779 = vshrl.u32 %v1778, 7
      %v1780 = vsub.s32 0, %v1779
      %v1781 = vrot.slane %v1756, %v1780
      %v1783 = vadd.f32 %v1776, %v1781
      %v1784 = vld [vmem:[%s12] sm:$0xff]
      %v1785 = vld [vmem:[%s12 + $0x8] sm:$0xff]
      %v1786 = vld [vmem:[%s12 + $0x10] sm:$0xff]
      %v1787 = vld [vmem:[%s12 + $0x18] sm:$0xff]
      %v1788 = vld [vmem:[%s13] sm:$0x1]
      %v1790 = vlaneseq
      %v1791 = vshrl.u32 %v1790, 7
      %v1792 = vsub.s32 0, %v1791
      %v1793 = vrot.slane %v1788, %v1792
      %v1796 = vsel %vm879, %v1783, 0
      %1798 = vmatprep.subr.mxu0 0.0
      %1799 = vmatpush1.msra.mxu0 %v1784
      %1800 = vmatprep.subr.mxu0 0.0
      %1801 = vmatpush1.msra.mxu0 %v1785
      %1802 = vmatprep.subr.mxu0 0.0
      %1803 = vmatpush1.msra.mxu0 %v1786
      %1804 = vmatprep.subr.mxu0 0.0
      %1805 = vmatpush1.msra.mxu0 %v1787
      %1806 = vmatprep.subr.mxu0 0.0
      %1807 = vmatpush1.msra.mxu0 0.0
      %1808 = vmatprep.subr.mxu0 0.0
      %1809 = vmatpush1.msra.mxu0 0.0
      %1810 = vmatprep.subr.mxu0 0.0
      %1811 = vmatpush1.msra.mxu0 0.0
      %1812 = vmatprep.subr.mxu0 0.0
      %1813 = vmatpush1.msra.mxu0 0.0
      %1814 = vmatprep.subr.mxu0 0.0
      %1815 = vmatpush1.msra.mxu0 0.0
      %1816 = vmatprep.subr.mxu0 0.0
      %1817 = vmatpush1.msra.mxu0 0.0
      %1818 = vmatprep.subr.mxu0 0.0
      %1819 = vmatpush1.msra.mxu0 0.0
      %1820 = vmatprep.subr.mxu0 0.0
      %1821 = vmatpush1.msra.mxu0 0.0
      %1822 = vmatprep.subr.mxu0 0.0
      %1823 = vmatpush1.msra.mxu0 0.0
      %1824 = vmatprep.subr.mxu0 0.0
      %1825 = vmatpush1.msra.mxu0 0.0
      %1826 = vmatprep.subr.mxu0 0.0
      %1827 = vmatpush1.msra.mxu0 0.0
      %1828 = vmatprep.subr.mxu0 0.0
      %1829 = vmatpush1.msra.mxu0 0.0
      %1830 = vmatprep.subr.mxu0 0.0
      %1831 = vmatpush1.msra.mxu0 0.0
      %1832 = vmatprep.subr.mxu0 0.0
      %1833 = vmatpush1.msra.mxu0 0.0
      %1834 = vmatprep.subr.mxu0 0.0
      %1835 = vmatpush1.msra.mxu0 0.0
      %1836 = vmatprep.subr.mxu0 0.0
      %1837 = vmatpush1.msra.mxu0 0.0
      %1838 = vmatprep.subr.mxu0 0.0
      %1839 = vmatpush1.msra.mxu0 0.0
      %1840 = vmatprep.subr.mxu0 0.0
      %1841 = vmatpush1.msra.mxu0 0.0
      %1842 = vmatprep.subr.mxu0 0.0
      %1843 = vmatpush1.msra.mxu0 0.0
      %1844 = vmatprep.subr.mxu0 0.0
      %1845 = vmatpush1.msra.mxu0 0.0
      %1846 = vmatprep.subr.mxu0 0.0
      %1847 = vmatpush1.msra.mxu0 0.0
      %1848 = vmatprep.subr.mxu0 0.0
      %1849 = vmatpush1.msra.mxu0 0.0
      %1850 = vmatprep.subr.mxu0 0.0
      %1851 = vmatpush1.msra.mxu0 0.0
      %1852 = vmatprep.subr.mxu0 0.0
      %1853 = vmatpush1.msra.mxu0 0.0
      %1854 = vmatprep.subr.mxu0 0.0
      %1855 = vmatpush1.msra.mxu0 0.0
      %1856 = vmatprep.subr.mxu0 0.0
      %1857 = vmatpush1.msra.mxu0 0.0
      %1858 = vmatprep.subr.mxu0 0.0
      %1859 = vmatpush1.msra.mxu0 0.0
      %1860 = vmatprep.subr.mxu0 0.0
      %1861 = vmatpush1.msra.mxu0 0.0
      %1862 = vmatprep.mubr.f32.mxu0 0.0
      %1863 = vmatmul.mubr.f32.gmra.mrb[0].mxu0 %v1796
      %v1864 = vpop.f32.mrb[0].mxu0
      %v1865 = vadd.f32 %v1793, %v1864
      %v1866 = vpop.f32.mrb[0].mxu0
      %1867 = vdwg.mxu0
      %v1868 = vmul.f32 %v1865, 0.5
      %v1869 = vmul.f32 %v1865, 0.044715
      %v1870 = vmul.f32 %v1869, %v1865
      %v1871 = vmul.f32 %v1870, %v1865
      %v1872 = vadd.f32 %v1865, %v1871
      %v1873 = vmul.f32 %v1872, 0.7978846
      %v1874 = vtanh.pop %v1873
      %v1875 = vadd.f32 %v1874, 1.0
      %v1876 = vmul.f32 %v1868, %v1875
      %v1877 = vld [vmem:[%s14] sm:$0xff]
      %v1878 = vld [vmem:[%s14 + $0x8] sm:$0xff]
      %v1879 = vld [vmem:[%s14 + $0x10] sm:$0xff]
      %v1880 = vld [vmem:[%s14 + $0x18] sm:$0xff]
      %v1881 = vld [vmem:[%s14 + $0x20] sm:$0xff]
      %v1882 = vld [vmem:[%s14 + $0x28] sm:$0xff]
      %v1883 = vld [vmem:[%s14 + $0x30] sm:$0xff]
      %v1884 = vld [vmem:[%s14 + $0x38] sm:$0xff]
      %v1885 = vld [vmem:[%s15] sm:$0x1]
      %v1887 = vlaneseq
      %v1888 = vshrl.u32 %v1887, 7
      %v1889 = vsub.s32 0, %v1888
      %v1890 = vrot.slane %v1885, %v1889
      %vm1892 = vcmask 523264
      %v1894 = vsel %vm1892, %v1876, 0
      %1896 = vmatprep.subr.mxu0 0.0
      %1897 = vmatpush1.msra.mxu0 %v1877
      %1898 = vmatprep.subr.mxu0 0.0
      %1899 = vmatpush1.msra.mxu0 %v1878
      %1900 = vmatprep.subr.mxu0 0.0
      %1901 = vmatpush1.msra.mxu0 %v1879
      %1902 = vmatprep.subr.mxu0 0.0
      %1903 = vmatpush1.msra.mxu0 %v1880
      %1904 = vmatprep.subr.mxu0 0.0
      %1905 = vmatpush1.msra.mxu0 %v1881
      %1906 = vmatprep.subr.mxu0 0.0
      %1907 = vmatpush1.msra.mxu0 %v1882
      %1908 = vmatprep.subr.mxu0 0.0
      %1909 = vmatpush1.msra.mxu0 %v1883
      %1910 = vmatprep.subr.mxu0 0.0
      %1911 = vmatpush1.msra.mxu0 %v1884
      %1912 = vmatprep.subr.mxu0 0.0
      %1913 = vmatpush1.msra.mxu0 0.0
      %1914 = vmatprep.subr.mxu0 0.0
      %1915 = vmatpush1.msra.mxu0 0.0
      %1916 = vmatprep.subr.mxu0 0.0
      %1917 = vmatpush1.msra.mxu0 0.0
      %1918 = vmatprep.subr.mxu0 0.0
      %1919 = vmatpush1.msra.mxu0 0.0
      %1920 = vmatprep.subr.mxu0 0.0
      %1921 = vmatpush1.msra.mxu0 0.0
      %1922 = vmatprep.subr.mxu0 0.0
      %1923 = vmatpush1.msra.mxu0 0.0
      %1924 = vmatprep.subr.mxu0 0.0
      %1925 = vmatpush1.msra.mxu0 0.0
      %1926 = vmatprep.subr.mxu0 0.0
      %1927 = vmatpush1.msra.mxu0 0.0
      %1928 = vmatprep.subr.mxu0 0.0
      %1929 = vmatpush1.msra.mxu0 0.0
      %1930 = vmatprep.subr.mxu0 0.0
      %1931 = vmatpush1.msra.mxu0 0.0
      %1932 = vmatprep.subr.mxu0 0.0
      %1933 = vmatpush1.msra.mxu0 0.0
      %1934 = vmatprep.subr.mxu0 0.0
      %1935 = vmatpush1.msra.mxu0 0.0
      %1936 = vmatprep.subr.mxu0 0.0
      %1937 = vmatpush1.msra.mxu0 0.0
      %1938 = vmatprep.subr.mxu0 0.0
      %1939 = vmatpush1.msra.mxu0 0.0
      %1940 = vmatprep.subr.mxu0 0.0
      %1941 = vmatpush1.msra.mxu0 0.0
      %1942 = vmatprep.subr.mxu0 0.0
      %1943 = vmatpush1.msra.mxu0 0.0
      %1944 = vmatprep.subr.mxu0 0.0
      %1945 = vmatpush1.msra.mxu0 0.0
      %1946 = vmatprep.subr.mxu0 0.0
      %1947 = vmatpush1.msra.mxu0 0.0
      %1948 = vmatprep.subr.mxu0 0.0
      %1949 = vmatpush1.msra.mxu0 0.0
      %1950 = vmatprep.subr.mxu0 0.0
      %1951 = vmatpush1.msra.mxu0 0.0
      %1952 = vmatprep.subr.mxu0 0.0
      %1953 = vmatpush1.msra.mxu0 0.0
      %1954 = vmatprep.subr.mxu0 0.0
      %1955 = vmatpush1.msra.mxu0 0.0
      %1956 = vmatprep.subr.mxu0 0.0
      %1957 = vmatpush1.msra.mxu0 0.0
      %1958 = vmatprep.subr.mxu0 0.0
      %1959 = vmatpush1.msra.mxu0 0.0
      %1960 = vmatprep.mubr.f32.mxu0 0.0
      %1961 = vmatmul.mubr.f32.gmra.mrb[0].mxu0 %v1894
      %v1962 = vpop.f32.mrb[0].mxu0
      %v1963 = vadd.f32 %v1890, %v1962
      %v1964 = vpop.f32.mrb[0].mxu0
      %1965 = vdwg.mxu0
      %s1966 = scalar_lea.vmem %s6, 32
      %v1967 = vld [vmem:[%s1966] sm:$0xff]
      %v1968 = vld [vmem:[%s1966 + $0x8] sm:$0xff]
      %v1969 = vld [vmem:[%s1966 + $0x10] sm:$0xff]
      %v1970 = vld [vmem:[%s1966 + $0x18] sm:$0xff]
      %s1971 = scalar_lea.vmem %s7, 1
      %v1972 = vld [vmem:[%s1971] sm:$0x1]
      %v1974 = vlaneseq
      %v1975 = vshrl.u32 %v1974, 7
      %v1976 = vsub.s32 0, %v1975
      %v1977 = vrot.slane %v1972, %v1976
      %v1980 = vsel %vm879, %v1963, 0
      %1982 = vmatprep.subr.mxu0 0.0
      %1983 = vmatpush1.msra.mxu0 %v1967
      %1984 = vmatprep.subr.mxu0 0.0
      %1985 = vmatpush1.msra.mxu0 %v1968
      %1986 = vmatprep.subr.mxu0 0.0
      %1987 = vmatpush1.msra.mxu0 %v1969
      %1988 = vmatprep.subr.mxu0 0.0
      %1989 = vmatpush1.msra.mxu0 %v1970
      %1990 = vmatprep.subr.mxu0 0.0
      %1991 = vmatpush1.msra.mxu0 0.0
      %1992 = vmatprep.subr.mxu0 0.0
      %1993 = vmatpush1.msra.mxu0 0.0
      %1994 = vmatprep.subr.mxu0 0.0
      %1995 = vmatpush1.msra.mxu0 0.0
      %1996 = vmatprep.subr.mxu0 0.0
      %1997 = vmatpush1.msra.mxu0 0.0
      %1998 = vmatprep.subr.mxu0 0.0
      %1999 = vmatpush1.msra.mxu0 0.0
      %2000 = vmatprep.subr.mxu0 0.0
      %2001 = vmatpush1.msra.mxu0 0.0
      %2002 = vmatprep.subr.mxu0 0.0
      %2003 = vmatpush1.msra.mxu0 0.0
      %2004 = vmatprep.subr.mxu0 0.0
      %2005 = vmatpush1.msra.mxu0 0.0
      %2006 = vmatprep.subr.mxu0 0.0
      %2007 = vmatpush1.msra.mxu0 0.0
      %2008 = vmatprep.subr.mxu0 0.0
      %2009 = vmatpush1.msra.mxu0 0.0
      %2010 = vmatprep.subr.mxu0 0.0
      %2011 = vmatpush1.msra.mxu0 0.0
      %2012 = vmatprep.subr.mxu0 0.0
      %2013 = vmatpush1.msra.mxu0 0.0
      %2014 = vmatprep.subr.mxu0 0.0
      %2015 = vmatpush1.msra.mxu0 0.0
      %2016 = vmatprep.subr.mxu0 0.0
      %2017 = vmatpush1.msra.mxu0 0.0
      %2018 = vmatprep.subr.mxu0 0.0
      %2019 = vmatpush1.msra.mxu0 0.0
      %2020 = vmatprep.subr.mxu0 0.0
      %2021 = vmatpush1.msra.mxu0 0.0
      %2022 = vmatprep.subr.mxu0 0.0
      %2023 = vmatpush1.msra.mxu0 0.0
      %2024 = vmatprep.subr.mxu0 0.0
      %2025 = vmatpush1.msra.mxu0 0.0
      %2026 = vmatprep.subr.mxu0 0.0
      %2027 = vmatpush1.msra.mxu0 0.0
      %2028 = vmatprep.subr.mxu0 0.0
      %2029 = vmatpush1.msra.mxu0 0.0
      %2030 = vmatprep.subr.mxu0 0.0
      %2031 = vmatpush1.msra.mxu0 0.0
      %2032 = vmatprep.subr.mxu0 0.0
      %2033 = vmatpush1.msra.mxu0 0.0
      %2034 = vmatprep.subr.mxu0 0.0
      %2035 = vmatpush1.msra.mxu0 0.0
      %2036 = vmatprep.subr.mxu0 0.0
      %2037 = vmatpush1.msra.mxu0 0.0
      %2038 = vmatprep.subr.mxu0 0.0
      %2039 = vmatpush1.msra.mxu0 0.0
      %2040 = vmatprep.subr.mxu0 0.0
      %2041 = vmatpush1.msra.mxu0 0.0
      %2042 = vmatprep.subr.mxu0 0.0
      %2043 = vmatpush1.msra.mxu0 0.0
      %2044 = vmatprep.subr.mxu0 0.0
      %2045 = vmatpush1.msra.mxu0 0.0
      %2046 = vmatprep.mubr.f32.mxu0 0.0
      %2047 = vmatmul.mubr.f32.gmra.mrb[0].mxu0 %v1980
      %v2048 = vpop.f32.mrb[0].mxu0
      %v2049 = vadd.f32 %v1977, %v2048
      %v2050 = vpop.f32.mrb[0].mxu0
      %2051 = vdwg.mxu0
      %2053 = vrot.lane.b32.xlu0 %v2049, 96
      %v2054 = vpop.permute.xlu0 %2053
      %v2055 = vsel %vm996, %v2049, 0
      %v2057 = vsel %vm996, %v2054, 0
      %2059 = vmatprep.subr.mxu0 0.0
      %2060 = vmatpush1.xpose.msra.mxu0 %v2057
      %2061 = vmatprep.subr.mxu0 0.0
      %2062 = vmatpush1.xpose.msra.mxu0 0.0
      %2063 = vmatprep.subr.mxu0 0.0
      %2064 = vmatpush1.xpose.msra.mxu0 0.0
      %2065 = vmatprep.subr.mxu0 0.0
      %2066 = vmatpush1.xpose.msra.mxu0 0.0
      %2067 = vmatprep.subr.mxu0 0.0
      %2068 = vmatpush1.xpose.msra.mxu0 0.0
      %2069 = vmatprep.subr.mxu0 0.0
      %2070 = vmatpush1.xpose.msra.mxu0 0.0
      %2071 = vmatprep.subr.mxu0 0.0
      %2072 = vmatpush1.xpose.msra.mxu0 0.0
      %2073 = vmatprep.subr.mxu0 0.0
      %2074 = vmatpush1.xpose.msra.mxu0 0.0
      %2075 = vmatprep.subr.mxu0 0.0
      %2076 = vmatpush1.xpose.msra.mxu0 0.0
      %2077 = vmatprep.subr.mxu0 0.0
      %2078 = vmatpush1.xpose.msra.mxu0 0.0
      %2079 = vmatprep.subr.mxu0 0.0
      %2080 = vmatpush1.xpose.msra.mxu0 0.0
      %2081 = vmatprep.subr.mxu0 0.0
      %2082 = vmatpush1.xpose.msra.mxu0 0.0
      %2083 = vmatprep.subr.mxu0 0.0
      %2084 = vmatpush1.xpose.msra.mxu0 0.0
      %2085 = vmatprep.subr.mxu0 0.0
      %2086 = vmatpush1.xpose.msra.mxu0 0.0
      %2087 = vmatprep.subr.mxu0 0.0
      %2088 = vmatpush1.xpose.msra.mxu0 0.0
      %2089 = vmatprep.subr.mxu0 0.0
      %2090 = vmatpush1.xpose.msra.mxu0 0.0
      %2091 = vmatprep.subr.mxu0 0.0
      %2092 = vmatpush1.xpose.msra.mxu0 0.0
      %2093 = vmatprep.subr.mxu0 0.0
      %2094 = vmatpush1.xpose.msra.mxu0 0.0
      %2095 = vmatprep.subr.mxu0 0.0
      %2096 = vmatpush1.xpose.msra.mxu0 0.0
      %2097 = vmatprep.subr.mxu0 0.0
      %2098 = vmatpush1.xpose.msra.mxu0 0.0
      %2099 = vmatprep.subr.mxu0 0.0
      %2100 = vmatpush1.xpose.msra.mxu0 0.0
      %2101 = vmatprep.subr.mxu0 0.0
      %2102 = vmatpush1.xpose.msra.mxu0 0.0
      %2103 = vmatprep.subr.mxu0 0.0
      %2104 = vmatpush1.xpose.msra.mxu0 0.0
      %2105 = vmatprep.subr.mxu0 0.0
      %2106 = vmatpush1.xpose.msra.mxu0 0.0
      %2107 = vmatprep.subr.mxu0 0.0
      %2108 = vmatpush1.xpose.msra.mxu0 0.0
      %2109 = vmatprep.subr.mxu0 0.0
      %2110 = vmatpush1.xpose.msra.mxu0 0.0
      %2111 = vmatprep.subr.mxu0 0.0
      %2112 = vmatpush1.xpose.msra.mxu0 0.0
      %2113 = vmatprep.subr.mxu0 0.0
      %2114 = vmatpush1.xpose.msra.mxu0 0.0
      %2115 = vmatprep.subr.mxu0 0.0
      %2116 = vmatpush1.xpose.msra.mxu0 0.0
      %2117 = vmatprep.subr.mxu0 0.0
      %2118 = vmatpush1.xpose.msra.mxu0 0.0
      %2119 = vmatprep.subr.mxu0 0.0
      %2120 = vmatpush1.xpose.msra.mxu0 0.0
      %2121 = vmatprep.subr.mxu0 0.0
      %2122 = vmatpush1.xpose.msra.mxu0 0.0
      %2123 = vmatprep.mubr.f32.mxu0 0.0
      %2124 = vmatmul.mubr.f32.gmra.mrb[0].mxu0 %v2055
      %v2125 = vpop.f32.mrb[0].mxu0
      %v2126 = vadd.f32 %v908, %v2125
      %v2127 = vpop.f32.mrb[0].mxu0
      %2128 = vdwg.mxu0
      %v2129 = vsel %vm996, %v2126, -inf
      %2130 = vmax.xlane.f32.xlu0 %v2129
      %v2131 = vpop.xlane.xlu0 %2130
      %v2132 = vsub.f32 %v2126, %v2131
      %v2133 = vmul.f32 %v2132, 1.442695
      %v2134 = vpow.pop %v2133
      %v2135 = vsel %vm996, %v2134, 0.0
      %2136 = vadd.xlane.f32.xlu0 %v2135
      %v2137 = vpop.xlane.xlu0 %2136
      %v2138 = vrcp.pop %v2137
      %v2139 = vmul.f32 %v2134, %v2138
      %2140 = vrot.lane.b32.xlu0 %v2049, 64
      %v2141 = vpop.permute.xlu0 %2140
      %v2144 = vsel %vm996, %v2139, 0
      %2146 = vmatprep.subr.mxu0 0.0
      %2147 = vmatpush1.msra.mxu0 %v2141
      %2148 = vmatprep.subr.mxu0 0.0
      %2149 = vmatpush1.msra.mxu0 0.0
      %2150 = vmatprep.subr.mxu0 0.0
      %2151 = vmatpush1.msra.mxu0 0.0
      %2152 = vmatprep.subr.mxu0 0.0
      %2153 = vmatpush1.msra.mxu0 0.0
      %2154 = vmatprep.subr.mxu0 0.0
      %2155 = vmatpush1.msra.mxu0 0.0
      %2156 = vmatprep.subr.mxu0 0.0
      %2157 = vmatpush1.msra.mxu0 0.0
      %2158 = vmatprep.subr.mxu0 0.0
      %2159 = vmatpush1.msra.mxu0 0.0
      %2160 = vmatprep.subr.mxu0 0.0
      %2161 = vmatpush1.msra.mxu0 0.0
      %2162 = vmatprep.subr.mxu0 0.0
      %2163 = vmatpush1.msra.mxu0 0.0
      %2164 = vmatprep.subr.mxu0 0.0
      %2165 = vmatpush1.msra.mxu0 0.0
      %2166 = vmatprep.subr.mxu0 0.0
      %2167 = vmatpush1.msra.mxu0 0.0
      %2168 = vmatprep.subr.mxu0 0.0
      %2169 = vmatpush1.msra.mxu0 0.0
      %2170 = vmatprep.subr.mxu0 0.0
      %2171 = vmatpush1.msra.mxu0 0.0
      %2172 = vmatprep.subr.mxu0 0.0
      %2173 = vmatpush1.msra.mxu0 0.0
      %2174 = vmatprep.subr.mxu0 0.0
      %2175 = vmatpush1.msra.mxu0 0.0
      %2176 = vmatprep.subr.mxu0 0.0
      %2177 = vmatpush1.msra.mxu0 0.0
      %2178 = vmatprep.subr.mxu0 0.0
      %2179 = vmatpush1.msra.mxu0 0.0
      %2180 = vmatprep.subr.mxu0 0.0
      %2181 = vmatpush1.msra.mxu0 0.0
      %2182 = vmatprep.subr.mxu0 0.0
      %2183 = vmatpush1.msra.mxu0 0.0
      %2184 = vmatprep.subr.mxu0 0.0
      %2185 = vmatpush1.msra.mxu0 0.0
      %2186 = vmatprep.subr.mxu0 0.0
      %2187 = vmatpush1.msra.mxu0 0.0
      %2188 = vmatprep.subr.mxu0 0.0
      %2189 = vmatpush1.msra.mxu0 0.0
      %2190 = vmatprep.subr.mxu0 0.0
      %2191 = vmatpush1.msra.mxu0 0.0
      %2192 = vmatprep.subr.mxu0 0.0
      %2193 = vmatpush1.msra.mxu0 0.0
      %2194 = vmatprep.subr.mxu0 0.0
      %2195 = vmatpush1.msra.mxu0 0.0
      %2196 = vmatprep.subr.mxu0 0.0
      %2197 = vmatpush1.msra.mxu0 0.0
      %2198 = vmatprep.subr.mxu0 0.0
      %2199 = vmatpush1.msra.mxu0 0.0
      %2200 = vmatprep.subr.mxu0 0.0
      %2201 = vmatpush1.msra.mxu0 0.0
      %2202 = vmatprep.subr.mxu0 0.0
      %2203 = vmatpush1.msra.mxu0 0.0
      %2204 = vmatprep.subr.mxu0 0.0
      %2205 = vmatpush1.msra.mxu0 0.0
      %2206 = vmatprep.subr.mxu0 0.0
      %2207 = vmatpush1.msra.mxu0 0.0
      %2208 = vmatprep.subr.mxu0 0.0
      %2209 = vmatpush1.msra.mxu0 0.0
      %2210 = vmatprep.mubr.f32.mxu0 0.0
      %2211 = vmatmul.mubr.f32.gmra.mrb[0].mxu0 %v2144
      %v2212 = vpop.f32.mrb[0].mxu0
      %v2213 = vadd.f32 0.0, %v2212
      %v2214 = vpop.f32.mrb[0].mxu0
      %2215 = vdwg.mxu0
      %2216 = vrot.lane.b32.xlu0 %v2049, 120
      %v2217 = vpop.permute.xlu0 %2216
      %2218 = vrot.lane.b32.xlu0 %v2049, 88
      %v2219 = vpop.permute.xlu0 %2218
      %v2220 = vsel %vm996, %v2217, 0
      %v2222 = vsel %vm996, %v2219, 0
      %2224 = vmatprep.subr.mxu0 0.0
      %2225 = vmatpush1.xpose.msra.mxu0 %v2222
      %2226 = vmatprep.subr.mxu0 0.0
      %2227 = vmatpush1.xpose.msra.mxu0 0.0
      %2228 = vmatprep.subr.mxu0 0.0
      %2229 = vmatpush1.xpose.msra.mxu0 0.0
      %2230 = vmatprep.subr.mxu0 0.0
      %2231 = vmatpush1.xpose.msra.mxu0 0.0
      %2232 = vmatprep.subr.mxu0 0.0
      %2233 = vmatpush1.xpose.msra.mxu0 0.0
      %2234 = vmatprep.subr.mxu0 0.0
      %2235 = vmatpush1.xpose.msra.mxu0 0.0
      %2236 = vmatprep.subr.mxu0 0.0
      %2237 = vmatpush1.xpose.msra.mxu0 0.0
      %2238 = vmatprep.subr.mxu0 0.0
      %2239 = vmatpush1.xpose.msra.mxu0 0.0
      %2240 = vmatprep.subr.mxu0 0.0
      %2241 = vmatpush1.xpose.msra.mxu0 0.0
      %2242 = vmatprep.subr.mxu0 0.0
      %2243 = vmatpush1.xpose.msra.mxu0 0.0
      %2244 = vmatprep.subr.mxu0 0.0
      %2245 = vmatpush1.xpose.msra.mxu0 0.0
      %2246 = vmatprep.subr.mxu0 0.0
      %2247 = vmatpush1.xpose.msra.mxu0 0.0
      %2248 = vmatprep.subr.mxu0 0.0
      %2249 = vmatpush1.xpose.msra.mxu0 0.0
      %2250 = vmatprep.subr.mxu0 0.0
      %2251 = vmatpush1.xpose.msra.mxu0 0.0
      %2252 = vmatprep.subr.mxu0 0.0
      %2253 = vmatpush1.xpose.msra.mxu0 0.0
      %2254 = vmatprep.subr.mxu0 0.0
      %2255 = vmatpush1.xpose.msra.mxu0 0.0
      %2256 = vmatprep.subr.mxu0 0.0
      %2257 = vmatpush1.xpose.msra.mxu0 0.0
      %2258 = vmatprep.subr.mxu0 0.0
      %2259 = vmatpush1.xpose.msra.mxu0 0.0
      %2260 = vmatprep.subr.mxu0 0.0
      %2261 = vmatpush1.xpose.msra.mxu0 0.0
      %2262 = vmatprep.subr.mxu0 0.0
      %2263 = vmatpush1.xpose.msra.mxu0 0.0
      %2264 = vmatprep.subr.mxu0 0.0
      %2265 = vmatpush1.xpose.msra.mxu0 0.0
      %2266 = vmatprep.subr.mxu0 0.0
      %2267 = vmatpush1.xpose.msra.mxu0 0.0
      %2268 = vmatprep.subr.mxu0 0.0
      %2269 = vmatpush1.xpose.msra.mxu0 0.0
      %2270 = vmatprep.subr.mxu0 0.0
      %2271 = vmatpush1.xpose.msra.mxu0 0.0
      %2272 = vmatprep.subr.mxu0 0.0
      %2273 = vmatpush1.xpose.msra.mxu0 0.0
      %2274 = vmatprep.subr.mxu0 0.0
      %2275 = vmatpush1.xpose.msra.mxu0 0.0
      %2276 = vmatprep.subr.mxu0 0.0
      %2277 = vmatpush1.xpose.msra.mxu0 0.0
      %2278 = vmatprep.subr.mxu0 0.0
      %2279 = vmatpush1.xpose.msra.mxu0 0.0
      %2280 = vmatprep.subr.mxu0 0.0
      %2281 = vmatpush1.xpose.msra.mxu0 0.0
      %2282 = vmatprep.subr.mxu0 0.0
      %2283 = vmatpush1.xpose.msra.mxu0 0.0
      %2284 = vmatprep.subr.mxu0 0.0
      %2285 = vmatpush1.xpose.msra.mxu0 0.0
      %2286 = vmatprep.subr.mxu0 0.0
      %2287 = vmatpush1.xpose.msra.mxu0 0.0
      %2288 = vmatprep.mubr.f32.mxu0 0.0
      %2289 = vmatmul.mubr.f32.gmra.mrb[0].mxu0 %v2220
      %v2290 = vpop.f32.mrb[0].mxu0
      %v2291 = vadd.f32 %v908, %v2290
      %v2292 = vpop.f32.mrb[0].mxu0
      %2293 = vdwg.mxu0
      %v2294 = vsel %vm996, %v2291, -inf
      %2295 = vmax.xlane.f32.xlu0 %v2294
      %v2296 = vpop.xlane.xlu0 %2295
      %v2297 = vsub.f32 %v2291, %v2296
      %v2298 = vmul.f32 %v2297, 1.442695
      %v2299 = vpow.pop %v2298
      %v2300 = vsel %vm996, %v2299, 0.0
      %2301 = vadd.xlane.f32.xlu0 %v2300
      %v2302 = vpop.xlane.xlu0 %2301
      %v2303 = vrcp.pop %v2302
      %v2304 = vmul.f32 %v2299, %v2303
      %2305 = vrot.lane.b32.xlu0 %v2049, 56
      %v2306 = vpop.permute.xlu0 %2305
      %v2309 = vsel %vm996, %v2304, 0
      %2311 = vmatprep.subr.mxu0 0.0
      %2312 = vmatpush1.msra.mxu0 %v2306
      %2313 = vmatprep.subr.mxu0 0.0
      %2314 = vmatpush1.msra.mxu0 0.0
      %2315 = vmatprep.subr.mxu0 0.0
      %2316 = vmatpush1.msra.mxu0 0.0
      %2317 = vmatprep.subr.mxu0 0.0
      %2318 = vmatpush1.msra.mxu0 0.0
      %2319 = vmatprep.subr.mxu0 0.0
      %2320 = vmatpush1.msra.mxu0 0.0
      %2321 = vmatprep.subr.mxu0 0.0
      %2322 = vmatpush1.msra.mxu0 0.0
      %2323 = vmatprep.subr.mxu0 0.0
      %2324 = vmatpush1.msra.mxu0 0.0
      %2325 = vmatprep.subr.mxu0 0.0
      %2326 = vmatpush1.msra.mxu0 0.0
      %2327 = vmatprep.subr.mxu0 0.0
      %2328 = vmatpush1.msra.mxu0 0.0
      %2329 = vmatprep.subr.mxu0 0.0
      %2330 = vmatpush1.msra.mxu0 0.0
      %2331 = vmatprep.subr.mxu0 0.0
      %2332 = vmatpush1.msra.mxu0 0.0
      %2333 = vmatprep.subr.mxu0 0.0
      %2334 = vmatpush1.msra.mxu0 0.0
      %2335 = vmatprep.subr.mxu0 0.0
      %2336 = vmatpush1.msra.mxu0 0.0
      %2337 = vmatprep.subr.mxu0 0.0
      %2338 = vmatpush1.msra.mxu0 0.0
      %2339 = vmatprep.subr.mxu0 0.0
      %2340 = vmatpush1.msra.mxu0 0.0
      %2341 = vmatprep.subr.mxu0 0.0
      %2342 = vmatpush1.msra.mxu0 0.0
      %2343 = vmatprep.subr.mxu0 0.0
      %2344 = vmatpush1.msra.mxu0 0.0
      %2345 = vmatprep.subr.mxu0 0.0
      %2346 = vmatpush1.msra.mxu0 0.0
      %2347 = vmatprep.subr.mxu0 0.0
      %2348 = vmatpush1.msra.mxu0 0.0
      %2349 = vmatprep.subr.mxu0 0.0
      %2350 = vmatpush1.msra.mxu0 0.0
      %2351 = vmatprep.subr.mxu0 0.0
      %2352 = vmatpush1.msra.mxu0 0.0
      %2353 = vmatprep.subr.mxu0 0.0
      %2354 = vmatpush1.msra.mxu0 0.0
      %2355 = vmatprep.subr.mxu0 0.0
      %2356 = vmatpush1.msra.mxu0 0.0
      %2357 = vmatprep.subr.mxu0 0.0
      %2358 = vmatpush1.msra.mxu0 0.0
      %2359 = vmatprep.subr.mxu0 0.0
      %2360 = vmatpush1.msra.mxu0 0.0
      %2361 = vmatprep.subr.mxu0 0.0
      %2362 = vmatpush1.msra.mxu0 0.0
      %2363 = vmatprep.subr.mxu0 0.0
      %2364 = vmatpush1.msra.mxu0 0.0
      %2365 = vmatprep.subr.mxu0 0.0
      %2366 = vmatpush1.msra.mxu0 0.0
      %2367 = vmatprep.subr.mxu0 0.0
      %2368 = vmatpush1.msra.mxu0 0.0
      %2369 = vmatprep.subr.mxu0 0.0
      %2370 = vmatpush1.msra.mxu0 0.0
      %2371 = vmatprep.subr.mxu0 0.0
      %2372 = vmatpush1.msra.mxu0 0.0
      %2373 = vmatprep.subr.mxu0 0.0
      %2374 = vmatpush1.msra.mxu0 0.0
      %2375 = vmatprep.mubr.f32.mxu0 0.0
      %2376 = vmatmul.mubr.f32.gmra.mrb[0].mxu0 %v2309
      %v2377 = vpop.f32.mrb[0].mxu0
      %v2378 = vadd.f32 0.0, %v2377
      %v2379 = vpop.f32.mrb[0].mxu0
      %2380 = vdwg.mxu0
      %2381 = vrot.lane.b32.xlu0 %v2049, 112
      %v2382 = vpop.permute.xlu0 %2381
      %2383 = vrot.lane.b32.xlu0 %v2049, 80
      %v2384 = vpop.permute.xlu0 %2383
      %v2385 = vsel %vm996, %v2382, 0
      %v2387 = vsel %vm996, %v2384, 0
      %2389 = vmatprep.subr.mxu0 0.0
      %2390 = vmatpush1.xpose.msra.mxu0 %v2387
      %2391 = vmatprep.subr.mxu0 0.0
      %2392 = vmatpush1.xpose.msra.mxu0 0.0
      %2393 = vmatprep.subr.mxu0 0.0
      %2394 = vmatpush1.xpose.msra.mxu0 0.0
      %2395 = vmatprep.subr.mxu0 0.0
      %2396 = vmatpush1.xpose.msra.mxu0 0.0
      %2397 = vmatprep.subr.mxu0 0.0
      %2398 = vmatpush1.xpose.msra.mxu0 0.0
      %2399 = vmatprep.subr.mxu0 0.0
      %2400 = vmatpush1.xpose.msra.mxu0 0.0
      %2401 = vmatprep.subr.mxu0 0.0
      %2402 = vmatpush1.xpose.msra.mxu0 0.0
      %2403 = vmatprep.subr.mxu0 0.0
      %2404 = vmatpush1.xpose.msra.mxu0 0.0
      %2405 = vmatprep.subr.mxu0 0.0
      %2406 = vmatpush1.xpose.msra.mxu0 0.0
      %2407 = vmatprep.subr.mxu0 0.0
      %2408 = vmatpush1.xpose.msra.mxu0 0.0
      %2409 = vmatprep.subr.mxu0 0.0
      %2410 = vmatpush1.xpose.msra.mxu0 0.0
      %2411 = vmatprep.subr.mxu0 0.0
      %2412 = vmatpush1.xpose.msra.mxu0 0.0
      %2413 = vmatprep.subr.mxu0 0.0
      %2414 = vmatpush1.xpose.msra.mxu0 0.0
      %2415 = vmatprep.subr.mxu0 0.0
      %2416 = vmatpush1.xpose.msra.mxu0 0.0
      %2417 = vmatprep.subr.mxu0 0.0
      %2418 = vmatpush1.xpose.msra.mxu0 0.0
      %2419 = vmatprep.subr.mxu0 0.0
      %2420 = vmatpush1.xpose.msra.mxu0 0.0
      %2421 = vmatprep.subr.mxu0 0.0
      %2422 = vmatpush1.xpose.msra.mxu0 0.0
      %2423 = vmatprep.subr.mxu0 0.0
      %2424 = vmatpush1.xpose.msra.mxu0 0.0
      %2425 = vmatprep.subr.mxu0 0.0
      %2426 = vmatpush1.xpose.msra.mxu0 0.0
      %2427 = vmatprep.subr.mxu0 0.0
      %2428 = vmatpush1.xpose.msra.mxu0 0.0
      %2429 = vmatprep.subr.mxu0 0.0
      %2430 = vmatpush1.xpose.msra.mxu0 0.0
      %2431 = vmatprep.subr.mxu0 0.0
      %2432 = vmatpush1.xpose.msra.mxu0 0.0
      %2433 = vmatprep.subr.mxu0 0.0
      %2434 = vmatpush1.xpose.msra.mxu0 0.0
      %2435 = vmatprep.subr.mxu0 0.0
      %2436 = vmatpush1.xpose.msra.mxu0 0.0
      %2437 = vmatprep.subr.mxu0 0.0
      %2438 = vmatpush1.xpose.msra.mxu0 0.0
      %2439 = vmatprep.subr.mxu0 0.0
      %2440 = vmatpush1.xpose.msra.mxu0 0.0
      %2441 = vmatprep.subr.mxu0 0.0
      %2442 = vmatpush1.xpose.msra.mxu0 0.0
      %2443 = vmatprep.subr.mxu0 0.0
      %2444 = vmatpush1.xpose.msra.mxu0 0.0
      %2445 = vmatprep.subr.mxu0 0.0
      %2446 = vmatpush1.xpose.msra.mxu0 0.0
      %2447 = vmatprep.subr.mxu0 0.0
      %2448 = vmatpush1.xpose.msra.mxu0 0.0
      %2449 = vmatprep.subr.mxu0 0.0
      %2450 = vmatpush1.xpose.msra.mxu0 0.0
      %2451 = vmatprep.subr.mxu0 0.0
      %2452 = vmatpush1.xpose.msra.mxu0 0.0
      %2453 = vmatprep.mubr.f32.mxu0 0.0
      %2454 = vmatmul.mubr.f32.gmra.mrb[0].mxu0 %v2385
      %v2455 = vpop.f32.mrb[0].mxu0
      %v2456 = vadd.f32 %v908, %v2455
      %v2457 = vpop.f32.mrb[0].mxu0
      %2458 = vdwg.mxu0
      %v2459 = vsel %vm996, %v2456, -inf
      %2460 = vmax.xlane.f32.xlu0 %v2459
      %v2461 = vpop.xlane.xlu0 %2460
      %v2462 = vsub.f32 %v2456, %v2461
      %v2463 = vmul.f32 %v2462, 1.442695
      %v2464 = vpow.pop %v2463
      %v2465 = vsel %vm996, %v2464, 0.0
      %2466 = vadd.xlane.f32.xlu0 %v2465
      %v2467 = vpop.xlane.xlu0 %2466
      %v2468 = vrcp.pop %v2467
      %v2469 = vmul.f32 %v2464, %v2468
      %2470 = vrot.lane.b32.xlu0 %v2049, 48
      %v2471 = vpop.permute.xlu0 %2470
      %v2474 = vsel %vm996, %v2469, 0
      %2476 = vmatprep.subr.mxu0 0.0
      %2477 = vmatpush1.msra.mxu0 %v2471
      %2478 = vmatprep.subr.mxu0 0.0
      %2479 = vmatpush1.msra.mxu0 0.0
      %2480 = vmatprep.subr.mxu0 0.0
      %2481 = vmatpush1.msra.mxu0 0.0
      %2482 = vmatprep.subr.mxu0 0.0
      %2483 = vmatpush1.msra.mxu0 0.0
      %2484 = vmatprep.subr.mxu0 0.0
      %2485 = vmatpush1.msra.mxu0 0.0
      %2486 = vmatprep.subr.mxu0 0.0
      %2487 = vmatpush1.msra.mxu0 0.0
      %2488 = vmatprep.subr.mxu0 0.0
      %2489 = vmatpush1.msra.mxu0 0.0
      %2490 = vmatprep.subr.mxu0 0.0
      %2491 = vmatpush1.msra.mxu0 0.0
      %2492 = vmatprep.subr.mxu0 0.0
      %2493 = vmatpush1.msra.mxu0 0.0
      %2494 = vmatprep.subr.mxu0 0.0
      %2495 = vmatpush1.msra.mxu0 0.0
      %2496 = vmatprep.subr.mxu0 0.0
      %2497 = vmatpush1.msra.mxu0 0.0
      %2498 = vmatprep.subr.mxu0 0.0
      %2499 = vmatpush1.msra.mxu0 0.0
      %2500 = vmatprep.subr.mxu0 0.0
      %2501 = vmatpush1.msra.mxu0 0.0
      %2502 = vmatprep.subr.mxu0 0.0
      %2503 = vmatpush1.msra.mxu0 0.0
      %2504 = vmatprep.subr.mxu0 0.0
      %2505 = vmatpush1.msra.mxu0 0.0
      %2506 = vmatprep.subr.mxu0 0.0
      %2507 = vmatpush1.msra.mxu0 0.0
      %2508 = vmatprep.subr.mxu0 0.0
      %2509 = vmatpush1.msra.mxu0 0.0
      %2510 = vmatprep.subr.mxu0 0.0
      %2511 = vmatpush1.msra.mxu0 0.0
      %2512 = vmatprep.subr.mxu0 0.0
      %2513 = vmatpush1.msra.mxu0 0.0
      %2514 = vmatprep.subr.mxu0 0.0
      %2515 = vmatpush1.msra.mxu0 0.0
      %2516 = vmatprep.subr.mxu0 0.0
      %2517 = vmatpush1.msra.mxu0 0.0
      %2518 = vmatprep.subr.mxu0 0.0
      %2519 = vmatpush1.msra.mxu0 0.0
      %2520 = vmatprep.subr.mxu0 0.0
      %2521 = vmatpush1.msra.mxu0 0.0
      %2522 = vmatprep.subr.mxu0 0.0
      %2523 = vmatpush1.msra.mxu0 0.0
      %2524 = vmatprep.subr.mxu0 0.0
      %2525 = vmatpush1.msra.mxu0 0.0
      %2526 = vmatprep.subr.mxu0 0.0
      %2527 = vmatpush1.msra.mxu0 0.0
      %2528 = vmatprep.subr.mxu0 0.0
      %2529 = vmatpush1.msra.mxu0 0.0
      %2530 = vmatprep.subr.mxu0 0.0
      %2531 = vmatpush1.msra.mxu0 0.0
      %2532 = vmatprep.subr.mxu0 0.0
      %2533 = vmatpush1.msra.mxu0 0.0
      %2534 = vmatprep.subr.mxu0 0.0
      %2535 = vmatpush1.msra.mxu0 0.0
      %2536 = vmatprep.subr.mxu0 0.0
      %2537 = vmatpush1.msra.mxu0 0.0
      %2538 = vmatprep.subr.mxu0 0.0
      %2539 = vmatpush1.msra.mxu0 0.0
      %2540 = vmatprep.mubr.f32.mxu0 0.0
      %2541 = vmatmul.mubr.f32.gmra.mrb[0].mxu0 %v2474
      %v2542 = vpop.f32.mrb[0].mxu0
      %v2543 = vadd.f32 0.0, %v2542
      %v2544 = vpop.f32.mrb[0].mxu0
      %2545 = vdwg.mxu0
      %2546 = vrot.lane.b32.xlu0 %v2049, 104
      %v2547 = vpop.permute.xlu0 %2546
      %2548 = vrot.lane.b32.xlu0 %v2049, 72
      %v2549 = vpop.permute.xlu0 %2548
      %v2550 = vsel %vm996, %v2547, 0
      %v2552 = vsel %vm996, %v2549, 0
      %2554 = vmatprep.subr.mxu0 0.0
      %2555 = vmatpush1.xpose.msra.mxu0 %v2552
      %2556 = vmatprep.subr.mxu0 0.0
      %2557 = vmatpush1.xpose.msra.mxu0 0.0
      %2558 = vmatprep.subr.mxu0 0.0
      %2559 = vmatpush1.xpose.msra.mxu0 0.0
      %2560 = vmatprep.subr.mxu0 0.0
      %2561 = vmatpush1.xpose.msra.mxu0 0.0
      %2562 = vmatprep.subr.mxu0 0.0
      %2563 = vmatpush1.xpose.msra.mxu0 0.0
      %2564 = vmatprep.subr.mxu0 0.0
      %2565 = vmatpush1.xpose.msra.mxu0 0.0
      %2566 = vmatprep.subr.mxu0 0.0
      %2567 = vmatpush1.xpose.msra.mxu0 0.0
      %2568 = vmatprep.subr.mxu0 0.0
      %2569 = vmatpush1.xpose.msra.mxu0 0.0
      %2570 = vmatprep.subr.mxu0 0.0
      %2571 = vmatpush1.xpose.msra.mxu0 0.0
      %2572 = vmatprep.subr.mxu0 0.0
      %2573 = vmatpush1.xpose.msra.mxu0 0.0
      %2574 = vmatprep.subr.mxu0 0.0
      %2575 = vmatpush1.xpose.msra.mxu0 0.0
      %2576 = vmatprep.subr.mxu0 0.0
      %2577 = vmatpush1.xpose.msra.mxu0 0.0
      %2578 = vmatprep.subr.mxu0 0.0
      %2579 = vmatpush1.xpose.msra.mxu0 0.0
      %2580 = vmatprep.subr.mxu0 0.0
      %2581 = vmatpush1.xpose.msra.mxu0 0.0
      %2582 = vmatprep.subr.mxu0 0.0
      %2583 = vmatpush1.xpose.msra.mxu0 0.0
      %2584 = vmatprep.subr.mxu0 0.0
      %2585 = vmatpush1.xpose.msra.mxu0 0.0
      %2586 = vmatprep.subr.mxu0 0.0
      %2587 = vmatpush1.xpose.msra.mxu0 0.0
      %2588 = vmatprep.subr.mxu0 0.0
      %2589 = vmatpush1.xpose.msra.mxu0 0.0
      %2590 = vmatprep.subr.mxu0 0.0
      %2591 = vmatpush1.xpose.msra.mxu0 0.0
      %2592 = vmatprep.subr.mxu0 0.0
      %2593 = vmatpush1.xpose.msra.mxu0 0.0
      %2594 = vmatprep.subr.mxu0 0.0
      %2595 = vmatpush1.xpose.msra.mxu0 0.0
      %2596 = vmatprep.subr.mxu0 0.0
      %2597 = vmatpush1.xpose.msra.mxu0 0.0
      %2598 = vmatprep.subr.mxu0 0.0
      %2599 = vmatpush1.xpose.msra.mxu0 0.0
      %2600 = vmatprep.subr.mxu0 0.0
      %2601 = vmatpush1.xpose.msra.mxu0 0.0
      %2602 = vmatprep.subr.mxu0 0.0
      %2603 = vmatpush1.xpose.msra.mxu0 0.0
      %2604 = vmatprep.subr.mxu0 0.0
      %2605 = vmatpush1.xpose.msra.mxu0 0.0
      %2606 = vmatprep.subr.mxu0 0.0
      %2607 = vmatpush1.xpose.msra.mxu0 0.0
      %2608 = vmatprep.subr.mxu0 0.0
      %2609 = vmatpush1.xpose.msra.mxu0 0.0
      %2610 = vmatprep.subr.mxu0 0.0
      %2611 = vmatpush1.xpose.msra.mxu0 0.0
      %2612 = vmatprep.subr.mxu0 0.0
      %2613 = vmatpush1.xpose.msra.mxu0 0.0
      %2614 = vmatprep.subr.mxu0 0.0
      %2615 = vmatpush1.xpose.msra.mxu0 0.0
      %2616 = vmatprep.subr.mxu0 0.0
      %2617 = vmatpush1.xpose.msra.mxu0 0.0
      %2618 = vmatprep.mubr.f32.mxu0 0.0
      %2619 = vmatmul.mubr.f32.gmra.mrb[0].mxu0 %v2550
      %v2620 = vpop.f32.mrb[0].mxu0
      %v2621 = vadd.f32 %v908, %v2620
      %v2622 = vpop.f32.mrb[0].mxu0
      %2623 = vdwg.mxu0
      %v2624 = vsel %vm996, %v2621, -inf
      %2625 = vmax.xlane.f32.xlu0 %v2624
      %v2626 = vpop.xlane.xlu0 %2625
      %v2627 = vsub.f32 %v2621, %v2626
      %v2628 = vmul.f32 %v2627, 1.442695
      %v2629 = vpow.pop %v2628
      %v2630 = vsel %vm996, %v2629, 0.0
      %2631 = vadd.xlane.f32.xlu0 %v2630
      %v2632 = vpop.xlane.xlu0 %2631
      %v2633 = vrcp.pop %v2632
      %v2634 = vmul.f32 %v2629, %v2633
      %2635 = vrot.lane.b32.xlu0 %v2049, 40
      %v2636 = vpop.permute.xlu0 %2635
      %v2639 = vsel %vm996, %v2634, 0
      %2641 = vmatprep.subr.mxu0 0.0
      %2642 = vmatpush1.msra.mxu0 %v2636
      %2643 = vmatprep.subr.mxu0 0.0
      %2644 = vmatpush1.msra.mxu0 0.0
      %2645 = vmatprep.subr.mxu0 0.0
      %2646 = vmatpush1.msra.mxu0 0.0
      %2647 = vmatprep.subr.mxu0 0.0
      %2648 = vmatpush1.msra.mxu0 0.0
      %2649 = vmatprep.subr.mxu0 0.0
      %2650 = vmatpush1.msra.mxu0 0.0
      %2651 = vmatprep.subr.mxu0 0.0
      %2652 = vmatpush1.msra.mxu0 0.0
      %2653 = vmatprep.subr.mxu0 0.0
      %2654 = vmatpush1.msra.mxu0 0.0
      %2655 = vmatprep.subr.mxu0 0.0
      %2656 = vmatpush1.msra.mxu0 0.0
      %2657 = vmatprep.subr.mxu0 0.0
      %2658 = vmatpush1.msra.mxu0 0.0
      %2659 = vmatprep.subr.mxu0 0.0
      %2660 = vmatpush1.msra.mxu0 0.0
      %2661 = vmatprep.subr.mxu0 0.0
      %2662 = vmatpush1.msra.mxu0 0.0
      %2663 = vmatprep.subr.mxu0 0.0
      %2664 = vmatpush1.msra.mxu0 0.0
      %2665 = vmatprep.subr.mxu0 0.0
      %2666 = vmatpush1.msra.mxu0 0.0
      %2667 = vmatprep.subr.mxu0 0.0
      %2668 = vmatpush1.msra.mxu0 0.0
      %2669 = vmatprep.subr.mxu0 0.0
      %2670 = vmatpush1.msra.mxu0 0.0
      %2671 = vmatprep.subr.mxu0 0.0
      %2672 = vmatpush1.msra.mxu0 0.0
      %2673 = vmatprep.subr.mxu0 0.0
      %2674 = vmatpush1.msra.mxu0 0.0
      %2675 = vmatprep.subr.mxu0 0.0
      %2676 = vmatpush1.msra.mxu0 0.0
      %2677 = vmatprep.subr.mxu0 0.0
      %2678 = vmatpush1.msra.mxu0 0.0
      %2679 = vmatprep.subr.mxu0 0.0
      %2680 = vmatpush1.msra.mxu0 0.0
      %2681 = vmatprep.subr.mxu0 0.0
      %2682 = vmatpush1.msra.mxu0 0.0
      %2683 = vmatprep.subr.mxu0 0.0
      %2684 = vmatpush1.msra.mxu0 0.0
      %2685 = vmatprep.subr.mxu0 0.0
      %2686 = vmatpush1.msra.mxu0 0.0
      %2687 = vmatprep.subr.mxu0 0.0
      %2688 = vmatpush1.msra.mxu0 0.0
      %2689 = vmatprep.subr.mxu0 0.0
      %2690 = vmatpush1.msra.mxu0 0.0
      %2691 = vmatprep.subr.mxu0 0.0
      %2692 = vmatpush1.msra.mxu0 0.0
      %2693 = vmatprep.subr.mxu0 0.0
      %2694 = vmatpush1.msra.mxu0 0.0
      %2695 = vmatprep.subr.mxu0 0.0
      %2696 = vmatpush1.msra.mxu0 0.0
      %2697 = vmatprep.subr.mxu0 0.0
      %2698 = vmatpush1.msra.mxu0 0.0
      %2699 = vmatprep.subr.mxu0 0.0
      %2700 = vmatpush1.msra.mxu0 0.0
      %2701 = vmatprep.subr.mxu0 0.0
      %2702 = vmatpush1.msra.mxu0 0.0
      %2703 = vmatprep.subr.mxu0 0.0
      %2704 = vmatpush1.msra.mxu0 0.0
      %2705 = vmatprep.mubr.f32.mxu0 0.0
      %2706 = vmatmul.mubr.f32.gmra.mrb[0].mxu0 %v2639
      %v2707 = vpop.f32.mrb[0].mxu0
      %v2708 = vadd.f32 0.0, %v2707
      %v2709 = vpop.f32.mrb[0].mxu0
      %2710 = vdwg.mxu0
      %2712 = vrot.lane.b32.xlu0 %v2378, 8
      %v2713 = vpop.permute.xlu0 %2712
      %2716 = vrot.lane.b32.xlu0 %v2543, 16
      %v2717 = vpop.permute.xlu0 %2716
      %2720 = vrot.lane.b32.xlu0 %v2708, 24
      %v2721 = vpop.permute.xlu0 %2720
      %v2723 = vsel %vm996, %v2213, %v2713
      %v2724 = vsel %vm1666, %v2723, %v2717
      %v2725 = vsel %vm1668, %v2724, %v2721
      %s2726 = scalar_lea.vmem %s8, 32
      %v2727 = vld [vmem:[%s2726] sm:$0xff]
      %v2728 = vld [vmem:[%s2726 + $0x8] sm:$0xff]
      %v2729 = vld [vmem:[%s2726 + $0x10] sm:$0xff]
      %v2730 = vld [vmem:[%s2726 + $0x18] sm:$0xff]
      %s2731 = scalar_lea.vmem %s9, 1
      %v2732 = vld [vmem:[%s2731] sm:$0x1]
      %v2734 = vlaneseq
      %v2735 = vshrl.u32 %v2734, 7
      %v2736 = vsub.s32 0, %v2735
      %v2737 = vrot.slane %v2732, %v2736
      %v2740 = vsel %vm879, %v2725, 0
      %2742 = vmatprep.subr.mxu0 0.0
      %2743 = vmatpush1.msra.mxu0 %v2727
      %2744 = vmatprep.subr.mxu0 0.0
      %2745 = vmatpush1.msra.mxu0 %v2728
      %2746 = vmatprep.subr.mxu0 0.0
      %2747 = vmatpush1.msra.mxu0 %v2729
      %2748 = vmatprep.subr.mxu0 0.0
      %2749 = vmatpush1.msra.mxu0 %v2730
      %2750 = vmatprep.subr.mxu0 0.0
      %2751 = vmatpush1.msra.mxu0 0.0
      %2752 = vmatprep.subr.mxu0 0.0
      %2753 = vmatpush1.msra.mxu0 0.0
      %2754 = vmatprep.subr.mxu0 0.0
      %2755 = vmatpush1.msra.mxu0 0.0
      %2756 = vmatprep.subr.mxu0 0.0
      %2757 = vmatpush1.msra.mxu0 0.0
      %2758 = vmatprep.subr.mxu0 0.0
      %2759 = vmatpush1.msra.mxu0 0.0
      %2760 = vmatprep.subr.mxu0 0.0
      %2761 = vmatpush1.msra.mxu0 0.0
      %2762 = vmatprep.subr.mxu0 0.0
      %2763 = vmatpush1.msra.mxu0 0.0
      %2764 = vmatprep.subr.mxu0 0.0
      %2765 = vmatpush1.msra.mxu0 0.0
      %2766 = vmatprep.subr.mxu0 0.0
      %2767 = vmatpush1.msra.mxu0 0.0
      %2768 = vmatprep.subr.mxu0 0.0
      %2769 = vmatpush1.msra.mxu0 0.0
      %2770 = vmatprep.subr.mxu0 0.0
      %2771 = vmatpush1.msra.mxu0 0.0
      %2772 = vmatprep.subr.mxu0 0.0
      %2773 = vmatpush1.msra.mxu0 0.0
      %2774 = vmatprep.subr.mxu0 0.0
      %2775 = vmatpush1.msra.mxu0 0.0
      %2776 = vmatprep.subr.mxu0 0.0
      %2777 = vmatpush1.msra.mxu0 0.0
      %2778 = vmatprep.subr.mxu0 0.0
      %2779 = vmatpush1.msra.mxu0 0.0
      %2780 = vmatprep.subr.mxu0 0.0
      %2781 = vmatpush1.msra.mxu0 0.0
      %2782 = vmatprep.subr.mxu0 0.0
      %2783 = vmatpush1.msra.mxu0 0.0
      %2784 = vmatprep.subr.mxu0 0.0
      %2785 = vmatpush1.msra.mxu0 0.0
      %2786 = vmatprep.subr.mxu0 0.0
      %2787 = vmatpush1.msra.mxu0 0.0
      %2788 = vmatprep.subr.mxu0 0.0
      %2789 = vmatpush1.msra.mxu0 0.0
      %2790 = vmatprep.subr.mxu0 0.0
      %2791 = vmatpush1.msra.mxu0 0.0
      %2792 = vmatprep.subr.mxu0 0.0
      %2793 = vmatpush1.msra.mxu0 0.0
      %2794 = vmatprep.subr.mxu0 0.0
      %2795 = vmatpush1.msra.mxu0 0.0
      %2796 = vmatprep.subr.mxu0 0.0
      %2797 = vmatpush1.msra.mxu0 0.0
      %2798 = vmatprep.subr.mxu0 0.0
      %2799 = vmatpush1.msra.mxu0 0.0
      %2800 = vmatprep.subr.mxu0 0.0
      %2801 = vmatpush1.msra.mxu0 0.0
      %2802 = vmatprep.subr.mxu0 0.0
      %2803 = vmatpush1.msra.mxu0 0.0
      %2804 = vmatprep.subr.mxu0 0.0
      %2805 = vmatpush1.msra.mxu0 0.0
      %2806 = vmatprep.mubr.f32.mxu0 0.0
      %2807 = vmatmul.mubr.f32.gmra.mrb[0].mxu0 %v2740
      %v2808 = vpop.f32.mrb[0].mxu0
      %v2809 = vadd.f32 %v2737, %v2808
      %v2810 = vpop.f32.mrb[0].mxu0
      %2811 = vdwg.mxu0
      %v2812 = vadd.f32 %v2809, %v1963
      %s2813 = scalar_lea.vmem %s10, 1
      %v2814 = vld [vmem:[%s2813] sm:$0x1]
      %s2815 = scalar_lea.vmem %s11, 1
      %v2816 = vld [vmem:[%s2815] sm:$0x1]
      %v2817 = vsel %vm879, %v2812, 0.0
      %2818 = vadd.xlane.f32.xlu0 %v2817
      %v2819 = vpop.xlane.xlu0 %2818
      %v2820 = vmul.f32 %v2819, %v883
      %v2821 = vsub.f32 %v2812, %v2820
      %v2822 = vmul.f32 %v2821, %v2821
      %v2823 = vsel %vm879, %v2822, 0.0
      %2824 = vadd.xlane.f32.xlu0 %v2823
      %v2825 = vpop.xlane.xlu0 %2824
      %v2826 = vmul.f32 %v2825, %v883
      %v2827 = vadd.f32 %v2826, 1e-05
      %v2828 = vrsqrt.pop %v2827
      %v2829 = vmul.f32 %v2821, %v2828
      %v2831 = vlaneseq
      %v2832 = vshrl.u32 %v2831, 7
      %v2833 = vsub.s32 0, %v2832
      %v2834 = vrot.slane %v2814, %v2833
      %v2836 = vmul.f32 %v2829, %v2834
      %v2838 = vlaneseq
      %v2839 = vshrl.u32 %v2838, 7
      %v2840 = vsub.s32 0, %v2839
      %v2841 = vrot.slane %v2816, %v2840
      %v2843 = vadd.f32 %v2836, %v2841
      %s2844 = scalar_lea.vmem %s12, 32
      %v2845 = vld [vmem:[%s2844] sm:$0xff]
      %v2846 = vld [vmem:[%s2844 + $0x8] sm:$0xff]
      %v2847 = vld [vmem:[%s2844 + $0x10] sm:$0xff]
      %v2848 = vld [vmem:[%s2844 + $0x18] sm:$0xff]
      %s2849 = scalar_lea.vmem %s13, 1
      %v2850 = vld [vmem:[%s2849] sm:$0x1]
      %v2852 = vlaneseq
      %v2853 = vshrl.u32 %v2852, 7
      %v2854 = vsub.s32 0, %v2853
      %v2855 = vrot.slane %v2850, %v2854
      %v2858 = vsel %vm879, %v2843, 0
      %2860 = vmatprep.subr.mxu0 0.0
      %2861 = vmatpush1.msra.mxu0 %v2845
      %2862 = vmatprep.subr.mxu0 0.0
      %2863 = vmatpush1.msra.mxu0 %v2846
      %2864 = vmatprep.subr.mxu0 0.0
      %2865 = vmatpush1.msra.mxu0 %v2847
      %2866 = vmatprep.subr.mxu0 0.0
      %2867 = vmatpush1.msra.mxu0 %v2848
      %2868 = vmatprep.subr.mxu0 0.0
      %2869 = vmatpush1.msra.mxu0 0.0
      %2870 = vmatprep.subr.mxu0 0.0
      %2871 = vmatpush1.msra.mxu0 0.0
      %2872 = vmatprep.subr.mxu0 0.0
      %2873 = vmatpush1.msra.mxu0 0.0
      %2874 = vmatprep.subr.mxu0 0.0
      %2875 = vmatpush1.msra.mxu0 0.0
      %2876 = vmatprep.subr.mxu0 0.0
      %2877 = vmatpush1.msra.mxu0 0.0
      %2878 = vmatprep.subr.mxu0 0.0
      %2879 = vmatpush1.msra.mxu0 0.0
      %2880 = vmatprep.subr.mxu0 0.0
      %2881 = vmatpush1.msra.mxu0 0.0
      %2882 = vmatprep.subr.mxu0 0.0
      %2883 = vmatpush1.msra.mxu0 0.0
      %2884 = vmatprep.subr.mxu0 0.0
      %2885 = vmatpush1.msra.mxu0 0.0
      %2886 = vmatprep.subr.mxu0 0.0
      %2887 = vmatpush1.msra.mxu0 0.0
      %2888 = vmatprep.subr.mxu0 0.0
      %2889 = vmatpush1.msra.mxu0 0.0
      %2890 = vmatprep.subr.mxu0 0.0
      %2891 = vmatpush1.msra.mxu0 0.0
      %2892 = vmatprep.subr.mxu0 0.0
      %2893 = vmatpush1.msra.mxu0 0.0
      %2894 = vmatprep.subr.mxu0 0.0
      %2895 = vmatpush1.msra.mxu0 0.0
      %2896 = vmatprep.subr.mxu0 0.0
      %2897 = vmatpush1.msra.mxu0 0.0
      %2898 = vmatprep.subr.mxu0 0.0
      %2899 = vmatpush1.msra.mxu0 0.0
      %2900 = vmatprep.subr.mxu0 0.0
      %2901 = vmatpush1.msra.mxu0 0.0
      %2902 = vmatprep.subr.mxu0 0.0
      %2903 = vmatpush1.msra.mxu0 0.0
      %2904 = vmatprep.subr.mxu0 0.0
      %2905 = vmatpush1.msra.mxu0 0.0
      %2906 = vmatprep.subr.mxu0 0.0
      %2907 = vmatpush1.msra.mxu0 0.0
      %2908 = vmatprep.subr.mxu0 0.0
      %2909 = vmatpush1.msra.mxu0 0.0
      %2910 = vmatprep.subr.mxu0 0.0
      %2911 = vmatpush1.msra.mxu0 0.0
      %2912 = vmatprep.subr.mxu0 0.0
      %2913 = vmatpush1.msra.mxu0 0.0
      %2914 = vmatprep.subr.mxu0 0.0
      %2915 = vmatpush1.msra.mxu0 0.0
      %2916 = vmatprep.subr.mxu0 0.0
      %2917 = vmatpush1.msra.mxu0 0.0
      %2918 = vmatprep.subr.mxu0 0.0
      %2919 = vmatpush1.msra.mxu0 0.0
      %2920 = vmatprep.subr.mxu0 0.0
      %2921 = vmatpush1.msra.mxu0 0.0
      %2922 = vmatprep.subr.mxu0 0.0
      %2923 = vmatpush1.msra.mxu0 0.0
      %2924 = vmatprep.mubr.f32.mxu0 0.0
      %2925 = vmatmul.mubr.f32.gmra.mrb[0].mxu0 %v2858
      %v2926 = vpop.f32.mrb[0].mxu0
      %v2927 = vadd.f32 %v2855, %v2926
      %v2928 = vpop.f32.mrb[0].mxu0
      %2929 = vdwg.mxu0
      %v2930 = vmul.f32 %v2927, 0.5
      %v2931 = vmul.f32 %v2927, 0.044715
      %v2932 = vmul.f32 %v2931, %v2927
      %v2933 = vmul.f32 %v2932, %v2927
      %v2934 = vadd.f32 %v2927, %v2933
      %v2935 = vmul.f32 %v2934, 0.7978846
      %v2936 = vtanh.pop %v2935
      %v2937 = vadd.f32 %v2936, 1.0
      %v2938 = vmul.f32 %v2930, %v2937
      %s2939 = scalar_lea.vmem %s14, 64
      %v2940 = vld [vmem:[%s2939] sm:$0xff]
      %v2941 = vld [vmem:[%s2939 + $0x8] sm:$0xff]
      %v2942 = vld [vmem:[%s2939 + $0x10] sm:$0xff]
      %v2943 = vld [vmem:[%s2939 + $0x18] sm:$0xff]
      %v2944 = vld [vmem:[%s2939 + $0x20] sm:$0xff]
      %v2945 = vld [vmem:[%s2939 + $0x28] sm:$0xff]
      %v2946 = vld [vmem:[%s2939 + $0x30] sm:$0xff]
      %v2947 = vld [vmem:[%s2939 + $0x38] sm:$0xff]
      %s2948 = scalar_lea.vmem %s15, 1
      %v2949 = vld [vmem:[%s2948] sm:$0x1]
      %v2951 = vlaneseq
      %v2952 = vshrl.u32 %v2951, 7
      %v2953 = vsub.s32 0, %v2952
      %v2954 = vrot.slane %v2949, %v2953
      %v2957 = vsel %vm1892, %v2938, 0
      %2959 = vmatprep.subr.mxu0 0.0
      %2960 = vmatpush1.msra.mxu0 %v2940
      %2961 = vmatprep.subr.mxu0 0.0
      %2962 = vmatpush1.msra.mxu0 %v2941
      %2963 = vmatprep.subr.mxu0 0.0
      %2964 = vmatpush1.msra.mxu0 %v2942
      %2965 = vmatprep.subr.mxu0 0.0
      %2966 = vmatpush1.msra.mxu0 %v2943
      %2967 = vmatprep.subr.mxu0 0.0
      %2968 = vmatpush1.msra.mxu0 %v2944
      %2969 = vmatprep.subr.mxu0 0.0
      %2970 = vmatpush1.msra.mxu0 %v2945
      %2971 = vmatprep.subr.mxu0 0.0
      %2972 = vmatpush1.msra.mxu0 %v2946
      %2973 = vmatprep.subr.mxu0 0.0
      %2974 = vmatpush1.msra.mxu0 %v2947
      %2975 = vmatprep.subr.mxu0 0.0
      %2976 = vmatpush1.msra.mxu0 0.0
      %2977 = vmatprep.subr.mxu0 0.0
      %2978 = vmatpush1.msra.mxu0 0.0
      %2979 = vmatprep.subr.mxu0 0.0
      %2980 = vmatpush1.msra.mxu0 0.0
      %2981 = vmatprep.subr.mxu0 0.0
      %2982 = vmatpush1.msra.mxu0 0.0
      %2983 = vmatprep.subr.mxu0 0.0
      %2984 = vmatpush1.msra.mxu0 0.0
      %2985 = vmatprep.subr.mxu0 0.0
      %2986 = vmatpush1.msra.mxu0 0.0
      %2987 = vmatprep.subr.mxu0 0.0
      %2988 = vmatpush1.msra.mxu0 0.0
      %2989 = vmatprep.subr.mxu0 0.0
      %2990 = vmatpush1.msra.mxu0 0.0
      %2991 = vmatprep.subr.mxu0 0.0
      %2992 = vmatpush1.msra.mxu0 0.0
      %2993 = vmatprep.subr.mxu0 0.0
      %2994 = vmatpush1.msra.mxu0 0.0
      %2995 = vmatprep.subr.mxu0 0.0
      %2996 = vmatpush1.msra.mxu0 0.0
      %2997 = vmatprep.subr.mxu0 0.0
      %2998 = vmatpush1.msra.mxu0 0.0
      %2999 = vmatprep.subr.mxu0 0.0
      %3000 = vmatpush1.msra.mxu0 0.0
      %3001 = vmatprep.subr.mxu0 0.0
      %3002 = vmatpush1.msra.mxu0 0.0
      %3003 = vmatprep.subr.mxu0 0.0
      %3004 = vmatpush1.msra.mxu0 0.0
      %3005 = vmatprep.subr.mxu0 0.0
      %3006 = vmatpush1.msra.mxu0 0.0
      %3007 = vmatprep.subr.mxu0 0.0
      %3008 = vmatpush1.msra.mxu0 0.0
      %3009 = vmatprep.subr.mxu0 0.0
      %3010 = vmatpush1.msra.mxu0 0.0
      %3011 = vmatprep.subr.mxu0 0.0
      %3012 = vmatpush1.msra.mxu0 0.0
      %3013 = vmatprep.subr.mxu0 0.0
      %3014 = vmatpush1.msra.mxu0 0.0
      %3015 = vmatprep.subr.mxu0 0.0
      %3016 = vmatpush1.msra.mxu0 0.0
      %3017 = vmatprep.subr.mxu0 0.0
      %3018 = vmatpush1.msra.mxu0 0.0
      %3019 = vmatprep.subr.mxu0 0.0
      %3020 = vmatpush1.msra.mxu0 0.0
      %3021 = vmatprep.subr.mxu0 0.0
      %3022 = vmatpush1.msra.mxu0 0.0
      %3023 = vmatprep.mubr.f32.mxu0 0.0
      %3024 = vmatmul.mubr.f32.gmra.mrb[0].mxu0 %v2957
      %v3025 = vpop.f32.mrb[0].mxu0
      %v3026 = vadd.f32 %v2954, %v3025
      %v3027 = vpop.f32.mrb[0].mxu0
      %3028 = vdwg.mxu0
      %v3029 = vld [vmem:[%s863] sm:$0xff]
      %v3031 = vsel %vm996, %v3029, 0
      %3033 = vmatprep.subr.mxu0 0.0
      %3034 = vmatpush1.msra.mxu0 %v3026
      %3035 = vmatprep.subr.mxu0 0.0
      %3036 = vmatpush1.msra.mxu0 0.0
      %3037 = vmatprep.subr.mxu0 0.0
      %3038 = vmatpush1.msra.mxu0 0.0
      %3039 = vmatprep.subr.mxu0 0.0
      %3040 = vmatpush1.msra.mxu0 0.0
      %3041 = vmatprep.subr.mxu0 0.0
      %3042 = vmatpush1.msra.mxu0 0.0
      %3043 = vmatprep.subr.mxu0 0.0
      %3044 = vmatpush1.msra.mxu0 0.0
      %3045 = vmatprep.subr.mxu0 0.0
      %3046 = vmatpush1.msra.mxu0 0.0
      %3047 = vmatprep.subr.mxu0 0.0
      %3048 = vmatpush1.msra.mxu0 0.0
      %3049 = vmatprep.subr.mxu0 0.0
      %3050 = vmatpush1.msra.mxu0 0.0
      %3051 = vmatprep.subr.mxu0 0.0
      %3052 = vmatpush1.msra.mxu0 0.0
      %3053 = vmatprep.subr.mxu0 0.0
      %3054 = vmatpush1.msra.mxu0 0.0
      %3055 = vmatprep.subr.mxu0 0.0
      %3056 = vmatpush1.msra.mxu0 0.0
      %3057 = vmatprep.subr.mxu0 0.0
      %3058 = vmatpush1.msra.mxu0 0.0
      %3059 = vmatprep.subr.mxu0 0.0
      %3060 = vmatpush1.msra.mxu0 0.0
      %3061 = vmatprep.subr.mxu0 0.0
      %3062 = vmatpush1.msra.mxu0 0.0
      %3063 = vmatprep.subr.mxu0 0.0
      %3064 = vmatpush1.msra.mxu0 0.0
      %3065 = vmatprep.subr.mxu0 0.0
      %3066 = vmatpush1.msra.mxu0 0.0
      %3067 = vmatprep.subr.mxu0 0.0
      %3068 = vmatpush1.msra.mxu0 0.0
      %3069 = vmatprep.subr.mxu0 0.0
      %3070 = vmatpush1.msra.mxu0 0.0
      %3071 = vmatprep.subr.mxu0 0.0
      %3072 = vmatpush1.msra.mxu0 0.0
      %3073 = vmatprep.subr.mxu0 0.0
      %3074 = vmatpush1.msra.mxu0 0.0
      %3075 = vmatprep.subr.mxu0 0.0
      %3076 = vmatpush1.msra.mxu0 0.0
      %3077 = vmatprep.subr.mxu0 0.0
      %3078 = vmatpush1.msra.mxu0 0.0
      %3079 = vmatprep.subr.mxu0 0.0
      %3080 = vmatpush1.msra.mxu0 0.0
      %3081 = vmatprep.subr.mxu0 0.0
      %3082 = vmatpush1.msra.mxu0 0.0
      %3083 = vmatprep.subr.mxu0 0.0
      %3084 = vmatpush1.msra.mxu0 0.0
      %3085 = vmatprep.subr.mxu0 0.0
      %3086 = vmatpush1.msra.mxu0 0.0
      %3087 = vmatprep.subr.mxu0 0.0
      %3088 = vmatpush1.msra.mxu0 0.0
      %3089 = vmatprep.subr.mxu0 0.0
      %3090 = vmatpush1.msra.mxu0 0.0
      %3091 = vmatprep.subr.mxu0 0.0
      %3092 = vmatpush1.msra.mxu0 0.0
      %3093 = vmatprep.subr.mxu0 0.0
      %3094 = vmatpush1.msra.mxu0 0.0
      %3095 = vmatprep.subr.mxu0 0.0
      %3096 = vmatpush1.msra.mxu0 0.0
      %3097 = vmatprep.mubr.f32.mxu0 0.0
      %3098 = vmatmul.mubr.f32.gmra.mrb[0].mxu0 %v3031
      %v3099 = vpop.f32.mrb[0].mxu0
      %v3100 = vadd.f32 0.0, %v3099
      %v3101 = vpop.f32.mrb[0].mxu0
      %3102 = vdwg.mxu0
      %v3103 = vld [vmem:[%s16] sm:$0xff]
      %v3104 = vld [vmem:[%s16 + $0x8] sm:$0xff]
      %v3105 = vld [vmem:[%s16 + $0x10] sm:$0xff]
      %v3106 = vld [vmem:[%s16 + $0x18] sm:$0xff]
      %v3107 = vld [vmem:[%s17] sm:$0x1]
      %v3109 = vlaneseq
      %v3110 = vshrl.u32 %v3109, 7
      %v3111 = vsub.s32 0, %v3110
      %v3112 = vrot.slane %v3107, %v3111
      %v3115 = vsel %vm879, %v3100, 0
      %3117 = vmatprep.subr.mxu0 0.0
      %3118 = vmatpush1.msra.mxu0 %v3103
      %3119 = vmatprep.subr.mxu0 0.0
      %3120 = vmatpush1.msra.mxu0 %v3104
      %3121 = vmatprep.subr.mxu0 0.0
      %3122 = vmatpush1.msra.mxu0 %v3105
      %3123 = vmatprep.subr.mxu0 0.0
      %3124 = vmatpush1.msra.mxu0 %v3106
      %3125 = vmatprep.subr.mxu0 0.0
      %3126 = vmatpush1.msra.mxu0 0.0
      %3127 = vmatprep.subr.mxu0 0.0
      %3128 = vmatpush1.msra.mxu0 0.0
      %3129 = vmatprep.subr.mxu0 0.0
      %3130 = vmatpush1.msra.mxu0 0.0
      %3131 = vmatprep.subr.mxu0 0.0
      %3132 = vmatpush1.msra.mxu0 0.0
      %3133 = vmatprep.subr.mxu0 0.0
      %3134 = vmatpush1.msra.mxu0 0.0
      %3135 = vmatprep.subr.mxu0 0.0
      %3136 = vmatpush1.msra.mxu0 0.0
      %3137 = vmatprep.subr.mxu0 0.0
      %3138 = vmatpush1.msra.mxu0 0.0
      %3139 = vmatprep.subr.mxu0 0.0
      %3140 = vmatpush1.msra.mxu0 0.0
      %3141 = vmatprep.subr.mxu0 0.0
      %3142 = vmatpush1.msra.mxu0 0.0
      %3143 = vmatprep.subr.mxu0 0.0
      %3144 = vmatpush1.msra.mxu0 0.0
      %3145 = vmatprep.subr.mxu0 0.0
      %3146 = vmatpush1.msra.mxu0 0.0
      %3147 = vmatprep.subr.mxu0 0.0
      %3148 = vmatpush1.msra.mxu0 0.0
      %3149 = vmatprep.subr.mxu0 0.0
      %3150 = vmatpush1.msra.mxu0 0.0
      %3151 = vmatprep.subr.mxu0 0.0
      %3152 = vmatpush1.msra.mxu0 0.0
      %3153 = vmatprep.subr.mxu0 0.0
      %3154 = vmatpush1.msra.mxu0 0.0
      %3155 = vmatprep.subr.mxu0 0.0
      %3156 = vmatpush1.msra.mxu0 0.0
      %3157 = vmatprep.subr.mxu0 0.0
      %3158 = vmatpush1.msra.mxu0 0.0
      %3159 = vmatprep.subr.mxu0 0.0
      %3160 = vmatpush1.msra.mxu0 0.0
      %3161 = vmatprep.subr.mxu0 0.0
      %3162 = vmatpush1.msra.mxu0 0.0
      %3163 = vmatprep.subr.mxu0 0.0
      %3164 = vmatpush1.msra.mxu0 0.0
      %3165 = vmatprep.subr.mxu0 0.0
      %3166 = vmatpush1.msra.mxu0 0.0
      %3167 = vmatprep.subr.mxu0 0.0
      %3168 = vmatpush1.msra.mxu0 0.0
      %3169 = vmatprep.subr.mxu0 0.0
      %3170 = vmatpush1.msra.mxu0 0.0
      %3171 = vmatprep.subr.mxu0 0.0
      %3172 = vmatpush1.msra.mxu0 0.0
      %3173 = vmatprep.subr.mxu0 0.0
      %3174 = vmatpush1.msra.mxu0 0.0
      %3175 = vmatprep.subr.mxu0 0.0
      %3176 = vmatpush1.msra.mxu0 0.0
      %3177 = vmatprep.subr.mxu0 0.0
      %3178 = vmatpush1.msra.mxu0 0.0
      %3179 = vmatprep.subr.mxu0 0.0
      %3180 = vmatpush1.msra.mxu0 0.0
      %3181 = vmatprep.mubr.f32.mxu0 0.0
      %3182 = vmatmul.mubr.f32.gmra.mrb[0].mxu0 %v3115
      %v3183 = vpop.f32.mrb[0].mxu0
      %v3184 = vadd.f32 %v3112, %v3183
      %v3185 = vpop.f32.mrb[0].mxu0
      %3186 = vdwg.mxu0
      %v3187 = vtanh.pop %v3184
      %v3188 = vld [vmem:[%s18] sm:$0xff]
      %v3189 = vld [vmem:[%s18 + $0x8] sm:$0xff]
      %v3190 = vld [vmem:[%s18 + $0x10] sm:$0xff]
      %v3191 = vld [vmem:[%s18 + $0x18] sm:$0xff]
      %v3192 = vld [vmem:[%s19] sm:$0x1]
      %v3194 = vlaneseq
      %v3195 = vshrl.u32 %v3194, 7
      %v3196 = vsub.s32 0, %v3195
      %v3197 = vrot.slane %v3192, %v3196
      %v3200 = vsel %vm879, %v3187, 0
      %3202 = vmatprep.subr.mxu0 0.0
      %3203 = vmatpush1.msra.mxu0 %v3188
      %3204 = vmatprep.subr.mxu0 0.0
      %3205 = vmatpush1.msra.mxu0 %v3189
      %3206 = vmatprep.subr.mxu0 0.0
      %3207 = vmatpush1.msra.mxu0 %v3190
      %3208 = vmatprep.subr.mxu0 0.0
      %3209 = vmatpush1.msra.mxu0 %v3191
      %3210 = vmatprep.subr.mxu0 0.0
      %3211 = vmatpush1.msra.mxu0 0.0
      %3212 = vmatprep.subr.mxu0 0.0
      %3213 = vmatpush1.msra.mxu0 0.0
      %3214 = vmatprep.subr.mxu0 0.0
      %3215 = vmatpush1.msra.mxu0 0.0
      %3216 = vmatprep.subr.mxu0 0.0
      %3217 = vmatpush1.msra.mxu0 0.0
      %3218 = vmatprep.subr.mxu0 0.0
      %3219 = vmatpush1.msra.mxu0 0.0
      %3220 = vmatprep.subr.mxu0 0.0
      %3221 = vmatpush1.msra.mxu0 0.0
      %3222 = vmatprep.subr.mxu0 0.0
      %3223 = vmatpush1.msra.mxu0 0.0
      %3224 = vmatprep.subr.mxu0 0.0
      %3225 = vmatpush1.msra.mxu0 0.0
      %3226 = vmatprep.subr.mxu0 0.0
      %3227 = vmatpush1.msra.mxu0 0.0
      %3228 = vmatprep.subr.mxu0 0.0
      %3229 = vmatpush1.msra.mxu0 0.0
      %3230 = vmatprep.subr.mxu0 0.0
      %3231 = vmatpush1.msra.mxu0 0.0
      %3232 = vmatprep.subr.mxu0 0.0
      %3233 = vmatpush1.msra.mxu0 0.0
      %3234 = vmatprep.subr.mxu0 0.0
      %3235 = vmatpush1.msra.mxu0 0.0
      %3236 = vmatprep.subr.mxu0 0.0
      %3237 = vmatpush1.msra.mxu0 0.0
      %3238 = vmatprep.subr.mxu0 0.0
      %3239 = vmatpush1.msra.mxu0 0.0
      %3240 = vmatprep.subr.mxu0 0.0
      %3241 = vmatpush1.msra.mxu0 0.0
      %3242 = vmatprep.subr.mxu0 0.0
      %3243 = vmatpush1.msra.mxu0 0.0
      %3244 = vmatprep.subr.mxu0 0.0
      %3245 = vmatpush1.msra.mxu0 0.0
      %3246 = vmatprep.subr.mxu0 0.0
      %3247 = vmatpush1.msra.mxu0 0.0
      %3248 = vmatprep.subr.mxu0 0.0
      %3249 = vmatpush1.msra.mxu0 0.0
      %3250 = vmatprep.subr.mxu0 0.0
      %3251 = vmatpush1.msra.mxu0 0.0
      %3252 = vmatprep.subr.mxu0 0.0
      %3253 = vmatpush1.msra.mxu0 0.0
      %3254 = vmatprep.subr.mxu0 0.0
      %3255 = vmatpush1.msra.mxu0 0.0
      %3256 = vmatprep.subr.mxu0 0.0
      %3257 = vmatpush1.msra.mxu0 0.0
      %3258 = vmatprep.subr.mxu0 0.0
      %3259 = vmatpush1.msra.mxu0 0.0
      %3260 = vmatprep.subr.mxu0 0.0
      %3261 = vmatpush1.msra.mxu0 0.0
      %3262 = vmatprep.subr.mxu0 0.0
      %3263 = vmatpush1.msra.mxu0 0.0
      %3264 = vmatprep.subr.mxu0 0.0
      %3265 = vmatpush1.msra.mxu0 0.0
      %3266 = vmatprep.mubr.f32.mxu0 0.0
      %3267 = vmatmul.mubr.f32.gmra.mrb[0].mxu0 %v3200
      %v3268 = vpop.f32.mrb[0].mxu0
      %v3269 = vadd.f32 %v3197, %v3268
      %v3270 = vpop.f32.mrb[0].mxu0
      %3271 = vdwg.mxu0
      %3272 = vst [vmem:[%s875] sm:$0xff] %v3269
      %v3273 = vld [vmem:[%s867] sm:$0xff]
      %v3275 = vsel %vm996, %v3273, 0
      %3277 = vmatprep.subr.mxu0 0.0
      %3278 = vmatpush1.msra.mxu0 %v3026
      %3279 = vmatprep.subr.mxu0 0.0
      %3280 = vmatpush1.msra.mxu0 0.0
      %3281 = vmatprep.subr.mxu0 0.0
      %3282 = vmatpush1.msra.mxu0 0.0
      %3283 = vmatprep.subr.mxu0 0.0
      %3284 = vmatpush1.msra.mxu0 0.0
      %3285 = vmatprep.subr.mxu0 0.0
      %3286 = vmatpush1.msra.mxu0 0.0
      %3287 = vmatprep.subr.mxu0 0.0
      %3288 = vmatpush1.msra.mxu0 0.0
      %3289 = vmatprep.subr.mxu0 0.0
      %3290 = vmatpush1.msra.mxu0 0.0
      %3291 = vmatprep.subr.mxu0 0.0
      %3292 = vmatpush1.msra.mxu0 0.0
      %3293 = vmatprep.subr.mxu0 0.0
      %3294 = vmatpush1.msra.mxu0 0.0
      %3295 = vmatprep.subr.mxu0 0.0
      %3296 = vmatpush1.msra.mxu0 0.0
      %3297 = vmatprep.subr.mxu0 0.0
      %3298 = vmatpush1.msra.mxu0 0.0
      %3299 = vmatprep.subr.mxu0 0.0
      %3300 = vmatpush1.msra.mxu0 0.0
      %3301 = vmatprep.subr.mxu0 0.0
      %3302 = vmatpush1.msra.mxu0 0.0
      %3303 = vmatprep.subr.mxu0 0.0
      %3304 = vmatpush1.msra.mxu0 0.0
      %3305 = vmatprep.subr.mxu0 0.0
      %3306 = vmatpush1.msra.mxu0 0.0
      %3307 = vmatprep.subr.mxu0 0.0
      %3308 = vmatpush1.msra.mxu0 0.0
      %3309 = vmatprep.subr.mxu0 0.0
      %3310 = vmatpush1.msra.mxu0 0.0
      %3311 = vmatprep.subr.mxu0 0.0
      %3312 = vmatpush1.msra.mxu0 0.0
      %3313 = vmatprep.subr.mxu0 0.0
      %3314 = vmatpush1.msra.mxu0 0.0
      %3315 = vmatprep.subr.mxu0 0.0
      %3316 = vmatpush1.msra.mxu0 0.0
      %3317 = vmatprep.subr.mxu0 0.0
      %3318 = vmatpush1.msra.mxu0 0.0
      %3319 = vmatprep.subr.mxu0 0.0
      %3320 = vmatpush1.msra.mxu0 0.0
      %3321 = vmatprep.subr.mxu0 0.0
      %3322 = vmatpush1.msra.mxu0 0.0
      %3323 = vmatprep.subr.mxu0 0.0
      %3324 = vmatpush1.msra.mxu0 0.0
      %3325 = vmatprep.subr.mxu0 0.0
      %3326 = vmatpush1.msra.mxu0 0.0
      %3327 = vmatprep.subr.mxu0 0.0
      %3328 = vmatpush1.msra.mxu0 0.0
      %3329 = vmatprep.subr.mxu0 0.0
      %3330 = vmatpush1.msra.mxu0 0.0
      %3331 = vmatprep.subr.mxu0 0.0
      %3332 = vmatpush1.msra.mxu0 0.0
      %3333 = vmatprep.subr.mxu0 0.0
      %3334 = vmatpush1.msra.mxu0 0.0
      %3335 = vmatprep.subr.mxu0 0.0
      %3336 = vmatpush1.msra.mxu0 0.0
      %3337 = vmatprep.subr.mxu0 0.0
      %3338 = vmatpush1.msra.mxu0 0.0
      %3339 = vmatprep.subr.mxu0 0.0
      %3340 = vmatpush1.msra.mxu0 0.0
      %3341 = vmatprep.mubr.f32.mxu0 0.0
      %3342 = vmatmul.mubr.f32.gmra.mrb[0].mxu0 %v3275
      %v3343 = vpop.f32.mrb[0].mxu0
      %v3344 = vadd.f32 0.0, %v3343
      %v3345 = vpop.f32.mrb[0].mxu0
      %3346 = vdwg.mxu0
      %v3347 = vld [vmem:[%s20] sm:$0xff]
      %v3348 = vld [vmem:[%s20 + $0x8] sm:$0xff]
      %v3349 = vld [vmem:[%s20 + $0x10] sm:$0xff]
      %v3350 = vld [vmem:[%s20 + $0x18] sm:$0xff]
      %v3351 = vld [vmem:[%s21] sm:$0x1]
      %v3353 = vlaneseq
      %v3354 = vshrl.u32 %v3353, 7
      %v3355 = vsub.s32 0, %v3354
      %v3356 = vrot.slane %v3351, %v3355
      %v3359 = vsel %vm879, %v3344, 0
      %3361 = vmatprep.subr.mxu0 0.0
      %3362 = vmatpush1.msra.mxu0 %v3347
      %3363 = vmatprep.subr.mxu0 0.0
      %3364 = vmatpush1.msra.mxu0 %v3348
      %3365 = vmatprep.subr.mxu0 0.0
      %3366 = vmatpush1.msra.mxu0 %v3349
      %3367 = vmatprep.subr.mxu0 0.0
      %3368 = vmatpush1.msra.mxu0 %v3350
      %3369 = vmatprep.subr.mxu0 0.0
      %3370 = vmatpush1.msra.mxu0 0.0
      %3371 = vmatprep.subr.mxu0 0.0
      %3372 = vmatpush1.msra.mxu0 0.0
      %3373 = vmatprep.subr.mxu0 0.0
      %3374 = vmatpush1.msra.mxu0 0.0
      %3375 = vmatprep.subr.mxu0 0.0
      %3376 = vmatpush1.msra.mxu0 0.0
      %3377 = vmatprep.subr.mxu0 0.0
      %3378 = vmatpush1.msra.mxu0 0.0
      %3379 = vmatprep.subr.mxu0 0.0
      %3380 = vmatpush1.msra.mxu0 0.0
      %3381 = vmatprep.subr.mxu0 0.0
      %3382 = vmatpush1.msra.mxu0 0.0
      %3383 = vmatprep.subr.mxu0 0.0
      %3384 = vmatpush1.msra.mxu0 0.0
      %3385 = vmatprep.subr.mxu0 0.0
      %3386 = vmatpush1.msra.mxu0 0.0
      %3387 = vmatprep.subr.mxu0 0.0
      %3388 = vmatpush1.msra.mxu0 0.0
      %3389 = vmatprep.subr.mxu0 0.0
      %3390 = vmatpush1.msra.mxu0 0.0
      %3391 = vmatprep.subr.mxu0 0.0
      %3392 = vmatpush1.msra.mxu0 0.0
      %3393 = vmatprep.subr.mxu0 0.0
      %3394 = vmatpush1.msra.mxu0 0.0
      %3395 = vmatprep.subr.mxu0 0.0
      %3396 = vmatpush1.msra.mxu0 0.0
      %3397 = vmatprep.subr.mxu0 0.0
      %3398 = vmatpush1.msra.mxu0 0.0
      %3399 = vmatprep.subr.mxu0 0.0
      %3400 = vmatpush1.msra.mxu0 0.0
      %3401 = vmatprep.subr.mxu0 0.0
      %3402 = vmatpush1.msra.mxu0 0.0
      %3403 = vmatprep.subr.mxu0 0.0
      %3404 = vmatpush1.msra.mxu0 0.0
      %3405 = vmatprep.subr.mxu0 0.0
      %3406 = vmatpush1.msra.mxu0 0.0
      %3407 = vmatprep.subr.mxu0 0.0
      %3408 = vmatpush1.msra.mxu0 0.0
      %3409 = vmatprep.subr.mxu0 0.0
      %3410 = vmatpush1.msra.mxu0 0.0
      %3411 = vmatprep.subr.mxu0 0.0
      %3412 = vmatpush1.msra.mxu0 0.0
      %3413 = vmatprep.subr.mxu0 0.0
      %3414 = vmatpush1.msra.mxu0 0.0
      %3415 = vmatprep.subr.mxu0 0.0
      %3416 = vmatpush1.msra.mxu0 0.0
      %3417 = vmatprep.subr.mxu0 0.0
      %3418 = vmatpush1.msra.mxu0 0.0
      %3419 = vmatprep.subr.mxu0 0.0
      %3420 = vmatpush1.msra.mxu0 0.0
      %3421 = vmatprep.subr.mxu0 0.0
      %3422 = vmatpush1.msra.mxu0 0.0
      %3423 = vmatprep.subr.mxu0 0.0
      %3424 = vmatpush1.msra.mxu0 0.0
      %3425 = vmatprep.mubr.f32.mxu0 0.0
      %3426 = vmatmul.mubr.f32.gmra.mrb[0].mxu0 %v3359
      %v3427 = vpop.f32.mrb[0].mxu0
      %v3428 = vadd.f32 %v3356, %v3427
      %v3429 = vpop.f32.mrb[0].mxu0
      %3430 = vdwg.mxu0
      %v3431 = vmul.f32 %v3428, 0.5
      %v3432 = vmul.f32 %v3428, 0.044715
      %v3433 = vmul.f32 %v3432, %v3428
      %v3434 = vmul.f32 %v3433, %v3428
      %v3435 = vadd.f32 %v3428, %v3434
      %v3436 = vmul.f32 %v3435, 0.7978846
      %v3437 = vtanh.pop %v3436
      %v3438 = vadd.f32 %v3437, 1.0
      %v3439 = vmul.f32 %v3431, %v3438
      %v3440 = vld [vmem:[%s22] sm:$0x1]
      %v3441 = vld [vmem:[%s23] sm:$0x1]
      %v3442 = vsel %vm879, %v3439, 0.0
      %3443 = vadd.xlane.f32.xlu0 %v3442
      %v3444 = vpop.xlane.xlu0 %3443
      %v3445 = vmul.f32 %v3444, %v883
      %v3446 = vsub.f32 %v3439, %v3445
      %v3447 = vmul.f32 %v3446, %v3446
      %v3448 = vsel %vm879, %v3447, 0.0
      %3449 = vadd.xlane.f32.xlu0 %v3448
      %v3450 = vpop.xlane.xlu0 %3449
      %v3451 = vmul.f32 %v3450, %v883
      %v3452 = vadd.f32 %v3451, 1e-05
      %v3453 = vrsqrt.pop %v3452
      %v3454 = vmul.f32 %v3446, %v3453
      %v3456 = vlaneseq
      %v3457 = vshrl.u32 %v3456, 7
      %v3458 = vsub.s32 0, %v3457
      %v3459 = vrot.slane %v3440, %v3458
      %v3461 = vmul.f32 %v3454, %v3459
      %v3463 = vlaneseq
      %v3464 = vshrl.u32 %v3463, 7
      %v3465 = vsub.s32 0, %v3464
      %v3466 = vrot.slane %v3441, %v3465
      %v3468 = vadd.f32 %v3461, %v3466
      %v3469 = vld [vmem:[%s24] sm:$0xff]
      %v3470 = vld [vmem:[%s24 + $0x8] sm:$0xff]
      %v3471 = vld [vmem:[%s24 + $0x10] sm:$0xff]
      %v3472 = vld [vmem:[%s24 + $0x18] sm:$0xff]
      %v3473 = vld [vmem:[%s25] sm:$0x1]
      %v3475 = vlaneseq
      %v3476 = vshrl.u32 %v3475, 7
      %v3477 = vsub.s32 0, %v3476
      %v3478 = vrot.slane %v3473, %v3477
      %v3481 = vsel %vm879, %v3468, 0
      %3483 = vmatprep.subr.mxu0 0.0
      %3484 = vmatpush1.msra.mxu0 %v3469
      %3485 = vmatprep.subr.mxu0 0.0
      %3486 = vmatpush1.msra.mxu0 %v3470
      %3487 = vmatprep.subr.mxu0 0.0
      %3488 = vmatpush1.msra.mxu0 %v3471
      %3489 = vmatprep.subr.mxu0 0.0
      %3490 = vmatpush1.msra.mxu0 %v3472
      %3491 = vmatprep.subr.mxu0 0.0
      %3492 = vmatpush1.msra.mxu0 0.0
      %3493 = vmatprep.subr.mxu0 0.0
      %3494 = vmatpush1.msra.mxu0 0.0
      %3495 = vmatprep.subr.mxu0 0.0
      %3496 = vmatpush1.msra.mxu0 0.0
      %3497 = vmatprep.subr.mxu0 0.0
      %3498 = vmatpush1.msra.mxu0 0.0
      %3499 = vmatprep.subr.mxu0 0.0
      %3500 = vmatpush1.msra.mxu0 0.0
      %3501 = vmatprep.subr.mxu0 0.0
      %3502 = vmatpush1.msra.mxu0 0.0
      %3503 = vmatprep.subr.mxu0 0.0
      %3504 = vmatpush1.msra.mxu0 0.0
      %3505 = vmatprep.subr.mxu0 0.0
      %3506 = vmatpush1.msra.mxu0 0.0
      %3507 = vmatprep.subr.mxu0 0.0
      %3508 = vmatpush1.msra.mxu0 0.0
      %3509 = vmatprep.subr.mxu0 0.0
      %3510 = vmatpush1.msra.mxu0 0.0
      %3511 = vmatprep.subr.mxu0 0.0
      %3512 = vmatpush1.msra.mxu0 0.0
      %3513 = vmatprep.subr.mxu0 0.0
      %3514 = vmatpush1.msra.mxu0 0.0
      %3515 = vmatprep.subr.mxu0 0.0
      %3516 = vmatpush1.msra.mxu0 0.0
      %3517 = vmatprep.subr.mxu0 0.0
      %3518 = vmatpush1.msra.mxu0 0.0
      %3519 = vmatprep.subr.mxu0 0.0
      %3520 = vmatpush1.msra.mxu0 0.0
      %3521 = vmatprep.subr.mxu0 0.0
      %3522 = vmatpush1.msra.mxu0 0.0
      %3523 = vmatprep.subr.mxu0 0.0
      %3524 = vmatpush1.msra.mxu0 0.0
      %3525 = vmatprep.subr.mxu0 0.0
      %3526 = vmatpush1.msra.mxu0 0.0
      %3527 = vmatprep.subr.mxu0 0.0
      %3528 = vmatpush1.msra.mxu0 0.0
      %3529 = vmatprep.subr.mxu0 0.0
      %3530 = vmatpush1.msra.mxu0 0.0
      %3531 = vmatprep.subr.mxu0 0.0
      %3532 = vmatpush1.msra.mxu0 0.0
      %3533 = vmatprep.subr.mxu0 0.0
      %3534 = vmatpush1.msra.mxu0 0.0
      %3535 = vmatprep.subr.mxu0 0.0
      %3536 = vmatpush1.msra.mxu0 0.0
      %3537 = vmatprep.subr.mxu0 0.0
      %3538 = vmatpush1.msra.mxu0 0.0
      %3539 = vmatprep.subr.mxu0 0.0
      %3540 = vmatpush1.msra.mxu0 0.0
      %3541 = vmatprep.subr.mxu0 0.0
      %3542 = vmatpush1.msra.mxu0 0.0
      %3543 = vmatprep.subr.mxu0 0.0
      %3544 = vmatpush1.msra.mxu0 0.0
      %3545 = vmatprep.subr.mxu0 0.0
      %3546 = vmatpush1.msra.mxu0 0.0
      %3547 = vmatprep.mubr.f32.mxu0 0.0
      %3548 = vmatmul.mubr.f32.gmra.mrb[0].mxu0 %v3481
      %v3549 = vpop.f32.mrb[0].mxu0
      %v3550 = vadd.f32 %v3478, %v3549
      %v3551 = vpop.f32.mrb[0].mxu0
      %3552 = vdwg.mxu0
      %3553 = vst [vmem:[%s871] sm:$0xff] %v3550
      %p3554 = scmp.lt.s32.totalorder %s39, 1
      %s3555 = scalar_select %p3554, %s39, 1
      %s3556 = smul.addr %s3555, 8
      %s3557 = scalar_lea.vmem %s26, %s3556
      %p3558 = scmp.lt.s32.totalorder %s39, 1
      %s3559 = scalar_select %p3558, %s39, 1
      %s3560 = smul.addr %s3559, 8
      %s3561 = scalar_lea.vmem %s27, %s3560
      // Predicated region
      $region125: #{bert_forward.1} parent=123 // pred_check
        %p3562 = pneg %p623
      $region126: #{bert_forward.1} parent=123 // pred_check_branch
        %3564 = sbr.rel (%p3562) target = $region128
      $region127: #{bert_forward.1} parent=123 // pred_region
        _
      $region128: #{bert_forward.1} parent=123 // pred_fallthru
        _
      // Predicated region
      $region129: #{bert_forward.1} parent=123 // pred_check
        %p3565 = pneg %p649
      $region130: #{bert_forward.1} parent=123 // pred_check_branch
        %3567 = sbr.rel (%p3565) target = $region132
      $region131: #{bert_forward.1} parent=123 // pred_region
        _
      $region132: #{bert_forward.1} parent=123 // pred_fallthru
        _
    $region124: #{bert_forward.1} parent=5 // pred_fallthru
      _
    %p3568 = scmp.le.s32.totalorder 2, %s34
    // Predicated region
    $region133: #{bert_forward.1} parent=5 // pred_check
      %p3569 = pneg %p3568
    $region134: #{bert_forward.1} parent=5 // pred_check_branch
      %3571 = sbr.rel (%p3569) target = $region136
    $region135: #{bert_forward.1} parent=5 // pred_region
      %s3572 = ssub.s32 %s34, 2
      // Predicated region
      $region137: #{bert_forward.1} parent=135 // pred_check
        %p3573 = pneg %p629
      $region138: #{bert_forward.1} parent=135 // pred_check_branch
        %3575 = sbr.rel (%p3573) target = $region140
      $region139: #{bert_forward.1} parent=135 // pred_region
        %p3576 = scmp.lt.s32.totalorder %s40, 1
        %s3577 = scalar_select %p3576, %s40, 1
        %s3578 = smul.addr %s3577, 8
        %s3579 = scalar_lea.vmem %s26, %s3578
      $region140: #{bert_forward.1} parent=135 // pred_fallthru
        _
      // Predicated region
      $region141: #{bert_forward.1} parent=135 // pred_check
        %p3580 = pneg %p655
      $region142: #{bert_forward.1} parent=135 // pred_check_branch
        %3582 = sbr.rel (%p3580) target = $region144
      $region143: #{bert_forward.1} parent=135 // pred_region
        %p3583 = scmp.lt.s32.totalorder %s40, 1
        %s3584 = scalar_select %p3583, %s40, 1
        %s3585 = smul.addr %s3584, 8
        %s3586 = scalar_lea.vmem %s27, %s3585
      $region144: #{bert_forward.1} parent=135 // pred_fallthru
        _
    $region136: #{bert_forward.1} parent=5 // pred_fallthru
      _
  $region6: #{bert_forward.1} parent=0 // loop_footer
    %s38 = sadd.s32 1, %s34
  $region7: #{bert_forward.1} parent=0 // loop_footer_branch
    %33 = sbr.rel target = $region3
  $region8: #{bert_forward.1} parent=0 // loop_exit
    _

</llo_original>
